<compile_context>
chip_gen: v7x
topology: tpu7x:2x2x1
jax: 0.10.0
libtpu: 0.0.40
codegen_flags: <defaults>
</compile_context>

<pallas_src>
import functools

import numpy as np
import jax
import jax.numpy as jnp
from jax.experimental import pallas as pl
from jax.experimental.pallas import tpu as pltpu


# ----------------------------------------------------------------------------
# Fused Actor forward kernel
# ----------------------------------------------------------------------------
def _actor_fused_kernel(p1_ref, g_ref,
                        c1w_ref, c1b_ref,
                        c2w_ref, c2b_ref,
                        f3w_ref, f3b_ref,
                        t1w_ref, t1b_ref,
                        t2w_ref, t2b_ref,
                        t3w_ref, t3b_ref,
                        noise_ref,
                        out_ref,
                        h2_scr,
                        *, qt2, log_std_min, log_std_max):
    f32 = jnp.float32
    n_batch, act_dim = noise_ref.shape
    n_pos2 = f3w_ref.shape[0]            # conv2 spatial positions (OH2*OW2)
    n_taps = g_ref.shape[0]              # 9 taps of the 3x3 kernel

    # ---- conv1 (3x3, stride 2) as im2col-matmul + ReLU; rows = (n, oh1, ow1)
    h1 = jnp.dot(p1_ref[...], c1w_ref[...], preferred_element_type=f32)
    h1 = jnp.maximum(h1 + c1b_ref[...], 0.0)

    # ---- conv2 (3x3, stride 1): the patch gather is expressed as constant 0/1
    #      row-gather matmuls accumulated over the 9 taps.  Output rows are
    #      ordered (spatial position, batch) so the fc3 step below can consume
    #      contiguous per-position blocks without any in-kernel reshape.
    acc = jnp.zeros((g_ref.shape[1], c2w_ref.shape[2]), f32) + c2b_ref[...]
    for j in range(n_taps):
        acc = acc + jnp.dot(
            g_ref[j],
            jnp.dot(h1, c2w_ref[j], preferred_element_type=f32),
            preferred_element_type=f32)
    h2_scr[...] = jnp.maximum(acc, 0.0)          # keep conv2 output in VMEM

    # ---- fc3 -> z3_mean: Linear over the channels-last flattened conv output,
    #      with the flatten folded into a per-position accumulation.
    z3 = jnp.zeros((n_batch, f3w_ref.shape[2]), f32) + f3b_ref[...]
    for p in range(n_pos2):
        z3 = z3 + jnp.dot(h2_scr[p * n_batch:(p + 1) * n_batch, :],
                          f3w_ref[p], preferred_element_type=f32)

    # ---- EntropyBottleneck-style hard quantization: round(z * qt) / qt
    #      (multiply by the precomputed reciprocal; round via floor(x + 0.5)).
    zq = jnp.floor(z3 * qt2 + 0.5) * (1.0 / qt2)

    # ---- trunk MLP: Linear-ReLU-Linear-ReLU-Linear(2A), then chunk(2, -1)
    h = jnp.maximum(
        jnp.dot(zq, t1w_ref[...], preferred_element_type=f32) + t1b_ref[...], 0.0)
    h = jnp.maximum(
        jnp.dot(h, t2w_ref[...], preferred_element_type=f32) + t2b_ref[...], 0.0)
    raw = jnp.dot(h, t3w_ref[...], preferred_element_type=f32) + t3b_ref[...]
    mu = raw[:, :act_dim]
    log_std = jnp.tanh(raw[:, act_dim:2 * act_dim])
    log_std = log_std_min + 0.5 * (log_std_max - log_std_min) * (log_std + 1.0)
    std = jnp.exp(log_std)

    # ---- reparameterized sample + gaussian_logprob + tanh squash
    noise = noise_ref[...]
    pi = mu + noise * std
    log_pi = jnp.sum(-0.5 * noise * noise - log_std, axis=-1, keepdims=True)
    log_pi = log_pi - 0.5 * float(np.log(2.0 * np.pi)) * act_dim
    mu_t = jnp.tanh(mu)
    pi_t = jnp.tanh(pi)
    log_pi = log_pi - jnp.sum(
        jnp.log(jnp.maximum(1.0 - pi_t * pi_t, 0.0) + 1e-6),
        axis=-1, keepdims=True)

    # ---- single lane-dense (N, 128) output slab: [mu | pi | log_std | log_pi | 0]
    #      (one padded-to-128 output array; HBM writeback is one dense block)
    out_ref[...] = jnp.zeros(out_ref.shape, f32)
    out_ref[:, 0:act_dim] = mu_t
    out_ref[:, act_dim:2 * act_dim] = pi_t
    out_ref[:, 2 * act_dim:3 * act_dim] = log_std
    out_ref[:, 3 * act_dim:3 * act_dim + 1] = log_pi


# ----------------------------------------------------------------------------
# Wrapper
# ----------------------------------------------------------------------------
def _full_spec(shape):
    nd = len(shape)
    return pl.BlockSpec(shape, lambda i: (0,) * nd)


def _build_gather_mats(n_batch, oh1, ow1, oh2, ow2):
    """Constant 0/1 matrices G[j] such that (G[j] @ h1) picks, for the 3x3 tap
    j = di*3 + dj, the conv1 activations feeding each conv2 output position.
    Output rows are ordered (spatial position, batch)."""
    p1 = oh1 * ow1
    g = np.zeros((9, oh2 * ow2 * n_batch, p1 * n_batch), np.float32)
    for di in range(3):
        for dj in range(3):
            j = di * 3 + dj
            for r in range(oh2):
                for c in range(ow2):
                    p = r * ow2 + c
                    for n in range(n_batch):
                        r_out = p * n_batch + n
                        r_in = n * p1 + (r + di) * ow1 + (c + dj)
                        g[j, r_out, r_in] = 1.0
    return jnp.asarray(g)


def actor_forward(obs, params, noise, *, qt, log_std_min, log_std_max,
                  out_width=128):
    """eval=False path of the PyTorch Actor: returns (mu, pi, log_pi, log_std)."""
    n, c, h, w = obs.shape
    act_dim = noise.shape[1]

    # Single NCHW -> NHWC layout change of the raw obs; all activations stay
    # channels-last afterwards (no relayout between the convs).
    x = jnp.transpose(obs, (0, 2, 3, 1))

    # conv1 im2col (3x3 stride 2): feature order (kh, kw, c), rows (n, oh, ow).
    oh1 = (h - 3) // 2 + 1
    ow1 = (w - 3) // 2 + 1
    cols = []
    for di in range(3):
        for dj in range(3):
            cols.append(x[:, di:di + 2 * oh1:2, dj:dj + 2 * ow1:2, :])
    p1 = jnp.concatenate(cols, axis=-1).reshape(n * oh1 * ow1, 9 * c)

    oh2, ow2 = oh1 - 2, ow1 - 2
    g = _build_gather_mats(n, oh1, ow1, oh2, ow2)

    nf = params["conv1_w"].shape[1]
    feat = params["fc3_w"].shape[2]
    hid = params["w1"].shape[1]

    kernel = functools.partial(
        _actor_fused_kernel,
        qt2=float(qt[2]),
        log_std_min=float(log_std_min),
        log_std_max=float(log_std_max),
    )

    operands = (
        p1, g,
        params["conv1_w"], params["conv1_b"].reshape(1, nf),
        params["conv2_w"], params["conv2_b"].reshape(1, nf),
        params["fc3_w"], params["fc3_b"].reshape(1, feat),
        params["w1"], params["b1"].reshape(1, hid),
        params["w2"], params["b2"].reshape(1, hid),
        params["w3"], params["b3"].reshape(1, 2 * act_dim),
        noise,
    )

    slab = pl.pallas_call(
        kernel,
        grid=(1,),
        in_specs=[_full_spec(op.shape) for op in operands],
        out_specs=_full_spec((n, out_width)),
        out_shape=jax.ShapeDtypeStruct((n, out_width), jnp.float32),
        scratch_shapes=[pltpu.VMEM((oh2 * ow2 * n, nf), jnp.float32)],
        compiler_params=pltpu.CompilerParams(
            dimension_semantics=("arbitrary",)),
    )(*operands)

    mu = slab[:, 0:act_dim]
    pi = slab[:, act_dim:2 * act_dim]
    log_std = slab[:, 2 * act_dim:3 * act_dim]
    log_pi = slab[:, 3 * act_dim:3 * act_dim + 1]
    return mu, pi, log_pi, log_std


# ----------------------------------------------------------------------------
def init_params(key, *, obs_c, num_filters, n_pos2, feature_dim, hidden_dim,
                action_dim):
    keys = jax.random.split(key, 6)

    def lin(k, shape, fan_in):
        return (1.0 / np.sqrt(fan_in)) * jax.random.normal(k, shape, jnp.float32)

    return {
        # conv weights: channels-last feature order (kh, kw, cin) -> cout
        "conv1_w": lin(keys[0], (9 * obs_c, num_filters), 9 * obs_c),
        "conv1_b": jnp.zeros((num_filters,), jnp.float32),
        "conv2_w": lin(keys[1], (9, num_filters, num_filters), 9 * num_filters),
        "conv2_b": jnp.zeros((num_filters,), jnp.float32),
        # z3_mean head: rows ordered (spatial position, channel) = NHWC flatten
        "fc3_w": lin(keys[2], (n_pos2, num_filters, feature_dim),
                     n_pos2 * num_filters),
        "fc3_b": jnp.zeros((feature_dim,), jnp.float32),
        # trunk (mu / log_std heads fused into one (H, 2A) Linear, chunked in-kernel)
        "w1": lin(keys[3], (feature_dim, hidden_dim), feature_dim),
        "b1": jnp.zeros((hidden_dim,), jnp.float32),
        "w2": lin(keys[4], (hidden_dim, hidden_dim), hidden_dim),
        "b2": jnp.zeros((hidden_dim,), jnp.float32),
        "w3": lin(keys[5], (hidden_dim, 2 * action_dim), hidden_dim),
        "b3": jnp.zeros((2 * action_dim,), jnp.float32),
    }


if __name__ == "__main__":
    # small, module-consistent shapes
    N, C, H, W = 2, 3, 16, 16                # obs (NCHW, torch convention)
    num_filters = 8
    feature_dim = 32
    hidden_dim = 32
    action_dim = 4
    log_std_min, log_std_max = -10.0, 2.0
    qt = (1.0, 2.0, 4.0)

    oh1 = (H - 3) // 2 + 1                   # conv1 (3x3, stride 2) -> 7
    oh2 = oh1 - 2                            # conv2 (3x3, stride 1) -> 5
    n_pos2 = oh2 * oh2

    key = jax.random.PRNGKey(0)
    k_obs, k_noise, k_params = jax.random.split(key, 3)
    obs = jax.random.normal(k_obs, (N, C, H, W), jnp.float32)
    noise = jax.random.normal(k_noise, (N, action_dim), jnp.float32)

    params = init_params(
        k_params, obs_c=C, num_filters=num_filters, n_pos2=n_pos2,
        feature_dim=feature_dim, hidden_dim=hidden_dim, action_dim=action_dim)

    fwd = jax.jit(functools.partial(
        actor_forward, qt=qt, log_std_min=log_std_min, log_std_max=log_std_max))

    mu, pi, log_pi, log_std = fwd(obs, params, noise)
    jax.block_until_ready((mu, pi, log_pi, log_std))

    assert mu.shape == (N, action_dim)
    assert pi.shape == (N, action_dim)
    assert log_pi.shape == (N, 1)
    assert log_std.shape == (N, action_dim)
    assert bool(jnp.all(jnp.isfinite(mu)))
    assert bool(jnp.all(jnp.isfinite(pi)))
    assert bool(jnp.all(jnp.isfinite(log_pi)))
    assert bool(jnp.all(jnp.isfinite(log_std)))
    print("KERNEL_OK")
</pallas_src>

<mosaic_0001>
module attributes {stable_mosaic.version = 11 : i64} {
  func.func @_actor_fused_kernel(%arg0: i32, %arg1: memref<98x27xf32, #tpu.memory_space<vmem>>, %arg2: memref<9x50x98xf32, #tpu.memory_space<vmem>>, %arg3: memref<27x8xf32, #tpu.memory_space<vmem>>, %arg4: memref<1x8xf32, #tpu.memory_space<vmem>>, %arg5: memref<9x8x8xf32, #tpu.memory_space<vmem>>, %arg6: memref<1x8xf32, #tpu.memory_space<vmem>>, %arg7: memref<25x8x32xf32, #tpu.memory_space<vmem>>, %arg8: memref<1x32xf32, #tpu.memory_space<vmem>>, %arg9: memref<32x32xf32, #tpu.memory_space<vmem>>, %arg10: memref<1x32xf32, #tpu.memory_space<vmem>>, %arg11: memref<32x32xf32, #tpu.memory_space<vmem>>, %arg12: memref<1x32xf32, #tpu.memory_space<vmem>>, %arg13: memref<32x8xf32, #tpu.memory_space<vmem>>, %arg14: memref<1x8xf32, #tpu.memory_space<vmem>>, %arg15: memref<2x4xf32, #tpu.memory_space<vmem>>, %arg16: memref<2x128xf32, #tpu.memory_space<vmem>>, %arg17: memref<50x8xf32, #tpu.memory_space<vmem>>) attributes {dimension_semantics = [#tpu.dimension_semantics<arbitrary>], iteration_bounds = array<i64: 1>, scalar_prefetch = 0 : i64, scratch_operands = 1 : i64, tpu.core_type = #tpu.core_type<tc>, window_params = [{pipeline_mode = #tpu.pipeline_mode<synchronous>, transform_indices = @transform_0, window_bounds = array<i64: 98, 27>}, {pipeline_mode = #tpu.pipeline_mode<synchronous>, transform_indices = @transform_1, window_bounds = array<i64: 9, 50, 98>}, {pipeline_mode = #tpu.pipeline_mode<synchronous>, transform_indices = @transform_2, window_bounds = array<i64: 27, 8>}, {pipeline_mode = #tpu.pipeline_mode<synchronous>, transform_indices = @transform_3, window_bounds = array<i64: 1, 8>}, {pipeline_mode = #tpu.pipeline_mode<synchronous>, transform_indices = @transform_4, window_bounds = array<i64: 9, 8, 8>}, {pipeline_mode = #tpu.pipeline_mode<synchronous>, transform_indices = @transform_5, window_bounds = array<i64: 1, 8>}, {pipeline_mode = #tpu.pipeline_mode<synchronous>, transform_indices = @transform_6, window_bounds = array<i64: 25, 8, 32>}, {pipeline_mode = #tpu.pipeline_mode<synchronous>, transform_indices = @transform_7, window_bounds = array<i64: 1, 32>}, {pipeline_mode = #tpu.pipeline_mode<synchronous>, transform_indices = @transform_8, window_bounds = array<i64: 32, 32>}, {pipeline_mode = #tpu.pipeline_mode<synchronous>, transform_indices = @transform_9, window_bounds = array<i64: 1, 32>}, {pipeline_mode = #tpu.pipeline_mode<synchronous>, transform_indices = @transform_10, window_bounds = array<i64: 32, 32>}, {pipeline_mode = #tpu.pipeline_mode<synchronous>, transform_indices = @transform_11, window_bounds = array<i64: 1, 32>}, {pipeline_mode = #tpu.pipeline_mode<synchronous>, transform_indices = @transform_12, window_bounds = array<i64: 32, 8>}, {pipeline_mode = #tpu.pipeline_mode<synchronous>, transform_indices = @transform_13, window_bounds = array<i64: 1, 8>}, {pipeline_mode = #tpu.pipeline_mode<synchronous>, transform_indices = @transform_14, window_bounds = array<i64: 2, 4>}, {pipeline_mode = #tpu.pipeline_mode<synchronous>, transform_indices = @transform_15, window_bounds = array<i64: 2, 128>}]} {
    %c0 = arith.constant 0 : index
    %c0_0 = arith.constant 0 : index
    %0 = vector.load %arg1[%c0, %c0_0] : memref<98x27xf32, #tpu.memory_space<vmem>>, vector<98x27xf32>
    %c0_1 = arith.constant 0 : index
    %c0_2 = arith.constant 0 : index
    %1 = vector.load %arg3[%c0_1, %c0_2] : memref<27x8xf32, #tpu.memory_space<vmem>>, vector<27x8xf32>
    %cst = arith.constant dense<0.000000e+00> : vector<98x8xf32>
    %2 = tpu.matmul %0, %1, %cst {dimension_numbers = #tpu.dot_dimension_numbers<[1], [0], [0], [1], [0, 0, 1, 1], [], []>} : vector<98x27xf32>, vector<27x8xf32>, vector<98x8xf32> -> vector<98x8xf32>
    %c0_3 = arith.constant 0 : index
    %c0_4 = arith.constant 0 : index
    %3 = vector.load %arg4[%c0_3, %c0_4] : memref<1x8xf32, #tpu.memory_space<vmem>>, vector<1x8xf32>
    %4 = vector.broadcast %3 : vector<1x8xf32> to vector<98x8xf32>
    %5 = arith.addf %2, %4 : vector<98x8xf32>
    %cst_5 = arith.constant 0.000000e+00 : f32
    %6 = vector.broadcast %cst_5 : f32 to vector<98x8xf32>
    %7 = arith.maximumf %5, %6 : vector<98x8xf32>
    %cst_6 = arith.constant 0.000000e+00 : f32
    %8 = vector.broadcast %cst_6 : f32 to vector<50x8xf32>
    %c0_7 = arith.constant 0 : index
    %c0_8 = arith.constant 0 : index
    %9 = vector.load %arg6[%c0_7, %c0_8] : memref<1x8xf32, #tpu.memory_space<vmem>>, vector<1x8xf32>
    %10 = vector.broadcast %9 : vector<1x8xf32> to vector<50x8xf32>
    %11 = arith.addf %8, %10 : vector<50x8xf32>
    %c0_9 = arith.constant 0 : index
    %c0_10 = arith.constant 0 : index
    %c0_11 = arith.constant 0 : index
    %12 = vector.load %arg2[%c0_9, %c0_10, %c0_11] : memref<9x50x98xf32, #tpu.memory_space<vmem>>, vector<1x50x98xf32>
    %13 = vector.shape_cast %12 : vector<1x50x98xf32> to vector<50x98xf32>
    %c0_12 = arith.constant 0 : index
    %c0_13 = arith.constant 0 : index
    %c0_14 = arith.constant 0 : index
    %14 = vector.load %arg5[%c0_12, %c0_13, %c0_14] : memref<9x8x8xf32, #tpu.memory_space<vmem>>, vector<1x8x8xf32>
    %15 = vector.shape_cast %14 : vector<1x8x8xf32> to vector<8x8xf32>
    %cst_15 = arith.constant dense<0.000000e+00> : vector<98x8xf32>
    %16 = tpu.matmul %7, %15, %cst_15 {dimension_numbers = #tpu.dot_dimension_numbers<[1], [0], [0], [1], [0, 0, 1, 1], [], []>} : vector<98x8xf32>, vector<8x8xf32>, vector<98x8xf32> -> vector<98x8xf32>
    %cst_16 = arith.constant dense<0.000000e+00> : vector<50x8xf32>
    %17 = tpu.matmul %13, %16, %cst_16 {dimension_numbers = #tpu.dot_dimension_numbers<[1], [0], [0], [1], [0, 0, 1, 1], [], []>} : vector<50x98xf32>, vector<98x8xf32>, vector<50x8xf32> -> vector<50x8xf32>
    %18 = arith.addf %11, %17 : vector<50x8xf32>
    %c1 = arith.constant 1 : index
    %c0_17 = arith.constant 0 : index
    %c0_18 = arith.constant 0 : index
    %19 = vector.load %arg2[%c1, %c0_17, %c0_18] : memref<9x50x98xf32, #tpu.memory_space<vmem>>, vector<1x50x98xf32>
    %20 = vector.shape_cast %19 : vector<1x50x98xf32> to vector<50x98xf32>
    %c1_19 = arith.constant 1 : index
    %c0_20 = arith.constant 0 : index
    %c0_21 = arith.constant 0 : index
    %21 = vector.load %arg5[%c1_19, %c0_20, %c0_21] : memref<9x8x8xf32, #tpu.memory_space<vmem>>, vector<1x8x8xf32>
    %22 = vector.shape_cast %21 : vector<1x8x8xf32> to vector<8x8xf32>
    %cst_22 = arith.constant dense<0.000000e+00> : vector<98x8xf32>
    %23 = tpu.matmul %7, %22, %cst_22 {dimension_numbers = #tpu.dot_dimension_numbers<[1], [0], [0], [1], [0, 0, 1, 1], [], []>} : vector<98x8xf32>, vector<8x8xf32>, vector<98x8xf32> -> vector<98x8xf32>
    %cst_23 = arith.constant dense<0.000000e+00> : vector<50x8xf32>
    %24 = tpu.matmul %20, %23, %cst_23 {dimension_numbers = #tpu.dot_dimension_numbers<[1], [0], [0], [1], [0, 0, 1, 1], [], []>} : vector<50x98xf32>, vector<98x8xf32>, vector<50x8xf32> -> vector<50x8xf32>
    %25 = arith.addf %18, %24 : vector<50x8xf32>
    %c2 = arith.constant 2 : index
    %c0_24 = arith.constant 0 : index
    %c0_25 = arith.constant 0 : index
    %26 = vector.load %arg2[%c2, %c0_24, %c0_25] : memref<9x50x98xf32, #tpu.memory_space<vmem>>, vector<1x50x98xf32>
    %27 = vector.shape_cast %26 : vector<1x50x98xf32> to vector<50x98xf32>
    %c2_26 = arith.constant 2 : index
    %c0_27 = arith.constant 0 : index
    %c0_28 = arith.constant 0 : index
    %28 = vector.load %arg5[%c2_26, %c0_27, %c0_28] : memref<9x8x8xf32, #tpu.memory_space<vmem>>, vector<1x8x8xf32>
    %29 = vector.shape_cast %28 : vector<1x8x8xf32> to vector<8x8xf32>
    %cst_29 = arith.constant dense<0.000000e+00> : vector<98x8xf32>
    %30 = tpu.matmul %7, %29, %cst_29 {dimension_numbers = #tpu.dot_dimension_numbers<[1], [0], [0], [1], [0, 0, 1, 1], [], []>} : vector<98x8xf32>, vector<8x8xf32>, vector<98x8xf32> -> vector<98x8xf32>
    %cst_30 = arith.constant dense<0.000000e+00> : vector<50x8xf32>
    %31 = tpu.matmul %27, %30, %cst_30 {dimension_numbers = #tpu.dot_dimension_numbers<[1], [0], [0], [1], [0, 0, 1, 1], [], []>} : vector<50x98xf32>, vector<98x8xf32>, vector<50x8xf32> -> vector<50x8xf32>
    %32 = arith.addf %25, %31 : vector<50x8xf32>
    %c3 = arith.constant 3 : index
    %c0_31 = arith.constant 0 : index
    %c0_32 = arith.constant 0 : index
    %33 = vector.load %arg2[%c3, %c0_31, %c0_32] : memref<9x50x98xf32, #tpu.memory_space<vmem>>, vector<1x50x98xf32>
    %34 = vector.shape_cast %33 : vector<1x50x98xf32> to vector<50x98xf32>
    %c3_33 = arith.constant 3 : index
    %c0_34 = arith.constant 0 : index
    %c0_35 = arith.constant 0 : index
    %35 = vector.load %arg5[%c3_33, %c0_34, %c0_35] : memref<9x8x8xf32, #tpu.memory_space<vmem>>, vector<1x8x8xf32>
    %36 = vector.shape_cast %35 : vector<1x8x8xf32> to vector<8x8xf32>
    %cst_36 = arith.constant dense<0.000000e+00> : vector<98x8xf32>
    %37 = tpu.matmul %7, %36, %cst_36 {dimension_numbers = #tpu.dot_dimension_numbers<[1], [0], [0], [1], [0, 0, 1, 1], [], []>} : vector<98x8xf32>, vector<8x8xf32>, vector<98x8xf32> -> vector<98x8xf32>
    %cst_37 = arith.constant dense<0.000000e+00> : vector<50x8xf32>
    %38 = tpu.matmul %34, %37, %cst_37 {dimension_numbers = #tpu.dot_dimension_numbers<[1], [0], [0], [1], [0, 0, 1, 1], [], []>} : vector<50x98xf32>, vector<98x8xf32>, vector<50x8xf32> -> vector<50x8xf32>
    %39 = arith.addf %32, %38 : vector<50x8xf32>
    %c4 = arith.constant 4 : index
    %c0_38 = arith.constant 0 : index
    %c0_39 = arith.constant 0 : index
    %40 = vector.load %arg2[%c4, %c0_38, %c0_39] : memref<9x50x98xf32, #tpu.memory_space<vmem>>, vector<1x50x98xf32>
    %41 = vector.shape_cast %40 : vector<1x50x98xf32> to vector<50x98xf32>
    %c4_40 = arith.constant 4 : index
    %c0_41 = arith.constant 0 : index
    %c0_42 = arith.constant 0 : index
    %42 = vector.load %arg5[%c4_40, %c0_41, %c0_42] : memref<9x8x8xf32, #tpu.memory_space<vmem>>, vector<1x8x8xf32>
    %43 = vector.shape_cast %42 : vector<1x8x8xf32> to vector<8x8xf32>
    %cst_43 = arith.constant dense<0.000000e+00> : vector<98x8xf32>
    %44 = tpu.matmul %7, %43, %cst_43 {dimension_numbers = #tpu.dot_dimension_numbers<[1], [0], [0], [1], [0, 0, 1, 1], [], []>} : vector<98x8xf32>, vector<8x8xf32>, vector<98x8xf32> -> vector<98x8xf32>
    %cst_44 = arith.constant dense<0.000000e+00> : vector<50x8xf32>
    %45 = tpu.matmul %41, %44, %cst_44 {dimension_numbers = #tpu.dot_dimension_numbers<[1], [0], [0], [1], [0, 0, 1, 1], [], []>} : vector<50x98xf32>, vector<98x8xf32>, vector<50x8xf32> -> vector<50x8xf32>
    %46 = arith.addf %39, %45 : vector<50x8xf32>
    %c5 = arith.constant 5 : index
    %c0_45 = arith.constant 0 : index
    %c0_46 = arith.constant 0 : index
    %47 = vector.load %arg2[%c5, %c0_45, %c0_46] : memref<9x50x98xf32, #tpu.memory_space<vmem>>, vector<1x50x98xf32>
    %48 = vector.shape_cast %47 : vector<1x50x98xf32> to vector<50x98xf32>
    %c5_47 = arith.constant 5 : index
    %c0_48 = arith.constant 0 : index
    %c0_49 = arith.constant 0 : index
    %49 = vector.load %arg5[%c5_47, %c0_48, %c0_49] : memref<9x8x8xf32, #tpu.memory_space<vmem>>, vector<1x8x8xf32>
    %50 = vector.shape_cast %49 : vector<1x8x8xf32> to vector<8x8xf32>
    %cst_50 = arith.constant dense<0.000000e+00> : vector<98x8xf32>
    %51 = tpu.matmul %7, %50, %cst_50 {dimension_numbers = #tpu.dot_dimension_numbers<[1], [0], [0], [1], [0, 0, 1, 1], [], []>} : vector<98x8xf32>, vector<8x8xf32>, vector<98x8xf32> -> vector<98x8xf32>
    %cst_51 = arith.constant dense<0.000000e+00> : vector<50x8xf32>
    %52 = tpu.matmul %48, %51, %cst_51 {dimension_numbers = #tpu.dot_dimension_numbers<[1], [0], [0], [1], [0, 0, 1, 1], [], []>} : vector<50x98xf32>, vector<98x8xf32>, vector<50x8xf32> -> vector<50x8xf32>
    %53 = arith.addf %46, %52 : vector<50x8xf32>
    %c6 = arith.constant 6 : index
    %c0_52 = arith.constant 0 : index
    %c0_53 = arith.constant 0 : index
    %54 = vector.load %arg2[%c6, %c0_52, %c0_53] : memref<9x50x98xf32, #tpu.memory_space<vmem>>, vector<1x50x98xf32>
    %55 = vector.shape_cast %54 : vector<1x50x98xf32> to vector<50x98xf32>
    %c6_54 = arith.constant 6 : index
    %c0_55 = arith.constant 0 : index
    %c0_56 = arith.constant 0 : index
    %56 = vector.load %arg5[%c6_54, %c0_55, %c0_56] : memref<9x8x8xf32, #tpu.memory_space<vmem>>, vector<1x8x8xf32>
    %57 = vector.shape_cast %56 : vector<1x8x8xf32> to vector<8x8xf32>
    %cst_57 = arith.constant dense<0.000000e+00> : vector<98x8xf32>
    %58 = tpu.matmul %7, %57, %cst_57 {dimension_numbers = #tpu.dot_dimension_numbers<[1], [0], [0], [1], [0, 0, 1, 1], [], []>} : vector<98x8xf32>, vector<8x8xf32>, vector<98x8xf32> -> vector<98x8xf32>
    %cst_58 = arith.constant dense<0.000000e+00> : vector<50x8xf32>
    %59 = tpu.matmul %55, %58, %cst_58 {dimension_numbers = #tpu.dot_dimension_numbers<[1], [0], [0], [1], [0, 0, 1, 1], [], []>} : vector<50x98xf32>, vector<98x8xf32>, vector<50x8xf32> -> vector<50x8xf32>
    %60 = arith.addf %53, %59 : vector<50x8xf32>
    %c7 = arith.constant 7 : index
    %c0_59 = arith.constant 0 : index
    %c0_60 = arith.constant 0 : index
    %61 = vector.load %arg2[%c7, %c0_59, %c0_60] : memref<9x50x98xf32, #tpu.memory_space<vmem>>, vector<1x50x98xf32>
    %62 = vector.shape_cast %61 : vector<1x50x98xf32> to vector<50x98xf32>
    %c7_61 = arith.constant 7 : index
    %c0_62 = arith.constant 0 : index
    %c0_63 = arith.constant 0 : index
    %63 = vector.load %arg5[%c7_61, %c0_62, %c0_63] : memref<9x8x8xf32, #tpu.memory_space<vmem>>, vector<1x8x8xf32>
    %64 = vector.shape_cast %63 : vector<1x8x8xf32> to vector<8x8xf32>
    %cst_64 = arith.constant dense<0.000000e+00> : vector<98x8xf32>
    %65 = tpu.matmul %7, %64, %cst_64 {dimension_numbers = #tpu.dot_dimension_numbers<[1], [0], [0], [1], [0, 0, 1, 1], [], []>} : vector<98x8xf32>, vector<8x8xf32>, vector<98x8xf32> -> vector<98x8xf32>
    %cst_65 = arith.constant dense<0.000000e+00> : vector<50x8xf32>
    %66 = tpu.matmul %62, %65, %cst_65 {dimension_numbers = #tpu.dot_dimension_numbers<[1], [0], [0], [1], [0, 0, 1, 1], [], []>} : vector<50x98xf32>, vector<98x8xf32>, vector<50x8xf32> -> vector<50x8xf32>
    %67 = arith.addf %60, %66 : vector<50x8xf32>
    %c8 = arith.constant 8 : index
    %c0_66 = arith.constant 0 : index
    %c0_67 = arith.constant 0 : index
    %68 = vector.load %arg2[%c8, %c0_66, %c0_67] : memref<9x50x98xf32, #tpu.memory_space<vmem>>, vector<1x50x98xf32>
    %69 = vector.shape_cast %68 : vector<1x50x98xf32> to vector<50x98xf32>
    %c8_68 = arith.constant 8 : index
    %c0_69 = arith.constant 0 : index
    %c0_70 = arith.constant 0 : index
    %70 = vector.load %arg5[%c8_68, %c0_69, %c0_70] : memref<9x8x8xf32, #tpu.memory_space<vmem>>, vector<1x8x8xf32>
    %71 = vector.shape_cast %70 : vector<1x8x8xf32> to vector<8x8xf32>
    %cst_71 = arith.constant dense<0.000000e+00> : vector<98x8xf32>
    %72 = tpu.matmul %7, %71, %cst_71 {dimension_numbers = #tpu.dot_dimension_numbers<[1], [0], [0], [1], [0, 0, 1, 1], [], []>} : vector<98x8xf32>, vector<8x8xf32>, vector<98x8xf32> -> vector<98x8xf32>
    %cst_72 = arith.constant dense<0.000000e+00> : vector<50x8xf32>
    %73 = tpu.matmul %69, %72, %cst_72 {dimension_numbers = #tpu.dot_dimension_numbers<[1], [0], [0], [1], [0, 0, 1, 1], [], []>} : vector<50x98xf32>, vector<98x8xf32>, vector<50x8xf32> -> vector<50x8xf32>
    %74 = arith.addf %67, %73 : vector<50x8xf32>
    %cst_73 = arith.constant 0.000000e+00 : f32
    %75 = vector.broadcast %cst_73 : f32 to vector<50x8xf32>
    %76 = arith.maximumf %74, %75 : vector<50x8xf32>
    %c0_74 = arith.constant 0 : index
    %c0_75 = arith.constant 0 : index
    %77 = vector.load %arg17[%c0_74, %c0_75] : memref<50x8xf32, #tpu.memory_space<vmem>>, vector<50x8xf32>
    tpu.vector_store %arg17[%c0_74, %c0_75], %76 {strides = array<i32>} : memref<50x8xf32, #tpu.memory_space<vmem>>, vector<50x8xf32>,
    %cst_76 = arith.constant 0.000000e+00 : f32
    %78 = vector.broadcast %cst_76 : f32 to vector<2x32xf32>
    %c0_77 = arith.constant 0 : index
    %c0_78 = arith.constant 0 : index
    %79 = vector.load %arg8[%c0_77, %c0_78] : memref<1x32xf32, #tpu.memory_space<vmem>>, vector<1x32xf32>
    %80 = vector.broadcast %79 : vector<1x32xf32> to vector<2x32xf32>
    %81 = arith.addf %78, %80 : vector<2x32xf32>
    %c0_79 = arith.constant 0 : index
    %c0_80 = arith.constant 0 : index
    %82 = vector.load %arg17[%c0_79, %c0_80] : memref<50x8xf32, #tpu.memory_space<vmem>>, vector<2x8xf32>
    %c0_81 = arith.constant 0 : index
    %c0_82 = arith.constant 0 : index
    %c0_83 = arith.constant 0 : index
    %83 = vector.load %arg7[%c0_81, %c0_82, %c0_83] : memref<25x8x32xf32, #tpu.memory_space<vmem>>, vector<1x8x32xf32>
    %84 = vector.shape_cast %83 : vector<1x8x32xf32> to vector<8x32xf32>
    %cst_84 = arith.constant dense<0.000000e+00> : vector<2x32xf32>
    %85 = tpu.matmul %82, %84, %cst_84 {dimension_numbers = #tpu.dot_dimension_numbers<[1], [0], [0], [1], [0, 0, 1, 1], [], []>} : vector<2x8xf32>, vector<8x32xf32>, vector<2x32xf32> -> vector<2x32xf32>
    %86 = arith.addf %81, %85 : vector<2x32xf32>
    %c2_85 = arith.constant 2 : index
    %c0_86 = arith.constant 0 : index
    %87 = vector.load %arg17[%c2_85, %c0_86] : memref<50x8xf32, #tpu.memory_space<vmem>>, vector<2x8xf32>
    %c1_87 = arith.constant 1 : index
    %c0_88 = arith.constant 0 : index
    %c0_89 = arith.constant 0 : index
    %88 = vector.load %arg7[%c1_87, %c0_88, %c0_89] : memref<25x8x32xf32, #tpu.memory_space<vmem>>, vector<1x8x32xf32>
    %89 = vector.shape_cast %88 : vector<1x8x32xf32> to vector<8x32xf32>
    %cst_90 = arith.constant dense<0.000000e+00> : vector<2x32xf32>
    %90 = tpu.matmul %87, %89, %cst_90 {dimension_numbers = #tpu.dot_dimension_numbers<[1], [0], [0], [1], [0, 0, 1, 1], [], []>} : vector<2x8xf32>, vector<8x32xf32>, vector<2x32xf32> -> vector<2x32xf32>
    %91 = arith.addf %86, %90 : vector<2x32xf32>
    %c4_91 = arith.constant 4 : index
    %c0_92 = arith.constant 0 : index
    %92 = vector.load %arg17[%c4_91, %c0_92] : memref<50x8xf32, #tpu.memory_space<vmem>>, vector<2x8xf32>
    %c2_93 = arith.constant 2 : index
    %c0_94 = arith.constant 0 : index
    %c0_95 = arith.constant 0 : index
    %93 = vector.load %arg7[%c2_93, %c0_94, %c0_95] : memref<25x8x32xf32, #tpu.memory_space<vmem>>, vector<1x8x32xf32>
    %94 = vector.shape_cast %93 : vector<1x8x32xf32> to vector<8x32xf32>
    %cst_96 = arith.constant dense<0.000000e+00> : vector<2x32xf32>
    %95 = tpu.matmul %92, %94, %cst_96 {dimension_numbers = #tpu.dot_dimension_numbers<[1], [0], [0], [1], [0, 0, 1, 1], [], []>} : vector<2x8xf32>, vector<8x32xf32>, vector<2x32xf32> -> vector<2x32xf32>
    %96 = arith.addf %91, %95 : vector<2x32xf32>
    %c6_97 = arith.constant 6 : index
    %c0_98 = arith.constant 0 : index
    %97 = vector.load %arg17[%c6_97, %c0_98] : memref<50x8xf32, #tpu.memory_space<vmem>>, vector<2x8xf32>
    %c3_99 = arith.constant 3 : index
    %c0_100 = arith.constant 0 : index
    %c0_101 = arith.constant 0 : index
    %98 = vector.load %arg7[%c3_99, %c0_100, %c0_101] : memref<25x8x32xf32, #tpu.memory_space<vmem>>, vector<1x8x32xf32>
    %99 = vector.shape_cast %98 : vector<1x8x32xf32> to vector<8x32xf32>
    %cst_102 = arith.constant dense<0.000000e+00> : vector<2x32xf32>
    %100 = tpu.matmul %97, %99, %cst_102 {dimension_numbers = #tpu.dot_dimension_numbers<[1], [0], [0], [1], [0, 0, 1, 1], [], []>} : vector<2x8xf32>, vector<8x32xf32>, vector<2x32xf32> -> vector<2x32xf32>
    %101 = arith.addf %96, %100 : vector<2x32xf32>
    %c8_103 = arith.constant 8 : index
    %c0_104 = arith.constant 0 : index
    %102 = vector.load %arg17[%c8_103, %c0_104] : memref<50x8xf32, #tpu.memory_space<vmem>>, vector<2x8xf32>
    %c4_105 = arith.constant 4 : index
    %c0_106 = arith.constant 0 : index
    %c0_107 = arith.constant 0 : index
    %103 = vector.load %arg7[%c4_105, %c0_106, %c0_107] : memref<25x8x32xf32, #tpu.memory_space<vmem>>, vector<1x8x32xf32>
    %104 = vector.shape_cast %103 : vector<1x8x32xf32> to vector<8x32xf32>
    %cst_108 = arith.constant dense<0.000000e+00> : vector<2x32xf32>
    %105 = tpu.matmul %102, %104, %cst_108 {dimension_numbers = #tpu.dot_dimension_numbers<[1], [0], [0], [1], [0, 0, 1, 1], [], []>} : vector<2x8xf32>, vector<8x32xf32>, vector<2x32xf32> -> vector<2x32xf32>
    %106 = arith.addf %101, %105 : vector<2x32xf32>
    %c10 = arith.constant 10 : index
    %c0_109 = arith.constant 0 : index
    %107 = vector.load %arg17[%c10, %c0_109] : memref<50x8xf32, #tpu.memory_space<vmem>>, vector<2x8xf32>
    %c5_110 = arith.constant 5 : index
    %c0_111 = arith.constant 0 : index
    %c0_112 = arith.constant 0 : index
    %108 = vector.load %arg7[%c5_110, %c0_111, %c0_112] : memref<25x8x32xf32, #tpu.memory_space<vmem>>, vector<1x8x32xf32>
    %109 = vector.shape_cast %108 : vector<1x8x32xf32> to vector<8x32xf32>
    %cst_113 = arith.constant dense<0.000000e+00> : vector<2x32xf32>
    %110 = tpu.matmul %107, %109, %cst_113 {dimension_numbers = #tpu.dot_dimension_numbers<[1], [0], [0], [1], [0, 0, 1, 1], [], []>} : vector<2x8xf32>, vector<8x32xf32>, vector<2x32xf32> -> vector<2x32xf32>
    %111 = arith.addf %106, %110 : vector<2x32xf32>
    %c12 = arith.constant 12 : index
    %c0_114 = arith.constant 0 : index
    %112 = vector.load %arg17[%c12, %c0_114] : memref<50x8xf32, #tpu.memory_space<vmem>>, vector<2x8xf32>
    %c6_115 = arith.constant 6 : index
    %c0_116 = arith.constant 0 : index
    %c0_117 = arith.constant 0 : index
    %113 = vector.load %arg7[%c6_115, %c0_116, %c0_117] : memref<25x8x32xf32, #tpu.memory_space<vmem>>, vector<1x8x32xf32>
    %114 = vector.shape_cast %113 : vector<1x8x32xf32> to vector<8x32xf32>
    %cst_118 = arith.constant dense<0.000000e+00> : vector<2x32xf32>
    %115 = tpu.matmul %112, %114, %cst_118 {dimension_numbers = #tpu.dot_dimension_numbers<[1], [0], [0], [1], [0, 0, 1, 1], [], []>} : vector<2x8xf32>, vector<8x32xf32>, vector<2x32xf32> -> vector<2x32xf32>
    %116 = arith.addf %111, %115 : vector<2x32xf32>
    %c14 = arith.constant 14 : index
    %c0_119 = arith.constant 0 : index
    %117 = vector.load %arg17[%c14, %c0_119] : memref<50x8xf32, #tpu.memory_space<vmem>>, vector<2x8xf32>
    %c7_120 = arith.constant 7 : index
    %c0_121 = arith.constant 0 : index
    %c0_122 = arith.constant 0 : index
    %118 = vector.load %arg7[%c7_120, %c0_121, %c0_122] : memref<25x8x32xf32, #tpu.memory_space<vmem>>, vector<1x8x32xf32>
    %119 = vector.shape_cast %118 : vector<1x8x32xf32> to vector<8x32xf32>
    %cst_123 = arith.constant dense<0.000000e+00> : vector<2x32xf32>
    %120 = tpu.matmul %117, %119, %cst_123 {dimension_numbers = #tpu.dot_dimension_numbers<[1], [0], [0], [1], [0, 0, 1, 1], [], []>} : vector<2x8xf32>, vector<8x32xf32>, vector<2x32xf32> -> vector<2x32xf32>
    %121 = arith.addf %116, %120 : vector<2x32xf32>
    %c16 = arith.constant 16 : index
    %c0_124 = arith.constant 0 : index
    %122 = vector.load %arg17[%c16, %c0_124] : memref<50x8xf32, #tpu.memory_space<vmem>>, vector<2x8xf32>
    %c8_125 = arith.constant 8 : index
    %c0_126 = arith.constant 0 : index
    %c0_127 = arith.constant 0 : index
    %123 = vector.load %arg7[%c8_125, %c0_126, %c0_127] : memref<25x8x32xf32, #tpu.memory_space<vmem>>, vector<1x8x32xf32>
    %124 = vector.shape_cast %123 : vector<1x8x32xf32> to vector<8x32xf32>
    %cst_128 = arith.constant dense<0.000000e+00> : vector<2x32xf32>
    %125 = tpu.matmul %122, %124, %cst_128 {dimension_numbers = #tpu.dot_dimension_numbers<[1], [0], [0], [1], [0, 0, 1, 1], [], []>} : vector<2x8xf32>, vector<8x32xf32>, vector<2x32xf32> -> vector<2x32xf32>
    %126 = arith.addf %121, %125 : vector<2x32xf32>
    %c18 = arith.constant 18 : index
    %c0_129 = arith.constant 0 : index
    %127 = vector.load %arg17[%c18, %c0_129] : memref<50x8xf32, #tpu.memory_space<vmem>>, vector<2x8xf32>
    %c9 = arith.constant 9 : index
    %c0_130 = arith.constant 0 : index
    %c0_131 = arith.constant 0 : index
    %128 = vector.load %arg7[%c9, %c0_130, %c0_131] : memref<25x8x32xf32, #tpu.memory_space<vmem>>, vector<1x8x32xf32>
    %129 = vector.shape_cast %128 : vector<1x8x32xf32> to vector<8x32xf32>
    %cst_132 = arith.constant dense<0.000000e+00> : vector<2x32xf32>
    %130 = tpu.matmul %127, %129, %cst_132 {dimension_numbers = #tpu.dot_dimension_numbers<[1], [0], [0], [1], [0, 0, 1, 1], [], []>} : vector<2x8xf32>, vector<8x32xf32>, vector<2x32xf32> -> vector<2x32xf32>
    %131 = arith.addf %126, %130 : vector<2x32xf32>
    %c20 = arith.constant 20 : index
    %c0_133 = arith.constant 0 : index
    %132 = vector.load %arg17[%c20, %c0_133] : memref<50x8xf32, #tpu.memory_space<vmem>>, vector<2x8xf32>
    %c10_134 = arith.constant 10 : index
    %c0_135 = arith.constant 0 : index
    %c0_136 = arith.constant 0 : index
    %133 = vector.load %arg7[%c10_134, %c0_135, %c0_136] : memref<25x8x32xf32, #tpu.memory_space<vmem>>, vector<1x8x32xf32>
    %134 = vector.shape_cast %133 : vector<1x8x32xf32> to vector<8x32xf32>
    %cst_137 = arith.constant dense<0.000000e+00> : vector<2x32xf32>
    %135 = tpu.matmul %132, %134, %cst_137 {dimension_numbers = #tpu.dot_dimension_numbers<[1], [0], [0], [1], [0, 0, 1, 1], [], []>} : vector<2x8xf32>, vector<8x32xf32>, vector<2x32xf32> -> vector<2x32xf32>
    %136 = arith.addf %131, %135 : vector<2x32xf32>
    %c22 = arith.constant 22 : index
    %c0_138 = arith.constant 0 : index
    %137 = vector.load %arg17[%c22, %c0_138] : memref<50x8xf32, #tpu.memory_space<vmem>>, vector<2x8xf32>
    %c11 = arith.constant 11 : index
    %c0_139 = arith.constant 0 : index
    %c0_140 = arith.constant 0 : index
    %138 = vector.load %arg7[%c11, %c0_139, %c0_140] : memref<25x8x32xf32, #tpu.memory_space<vmem>>, vector<1x8x32xf32>
    %139 = vector.shape_cast %138 : vector<1x8x32xf32> to vector<8x32xf32>
    %cst_141 = arith.constant dense<0.000000e+00> : vector<2x32xf32>
    %140 = tpu.matmul %137, %139, %cst_141 {dimension_numbers = #tpu.dot_dimension_numbers<[1], [0], [0], [1], [0, 0, 1, 1], [], []>} : vector<2x8xf32>, vector<8x32xf32>, vector<2x32xf32> -> vector<2x32xf32>
    %141 = arith.addf %136, %140 : vector<2x32xf32>
    %c24 = arith.constant 24 : index
    %c0_142 = arith.constant 0 : index
    %142 = vector.load %arg17[%c24, %c0_142] : memref<50x8xf32, #tpu.memory_space<vmem>>, vector<2x8xf32>
    %c12_143 = arith.constant 12 : index
    %c0_144 = arith.constant 0 : index
    %c0_145 = arith.constant 0 : index
    %143 = vector.load %arg7[%c12_143, %c0_144, %c0_145] : memref<25x8x32xf32, #tpu.memory_space<vmem>>, vector<1x8x32xf32>
    %144 = vector.shape_cast %143 : vector<1x8x32xf32> to vector<8x32xf32>
    %cst_146 = arith.constant dense<0.000000e+00> : vector<2x32xf32>
    %145 = tpu.matmul %142, %144, %cst_146 {dimension_numbers = #tpu.dot_dimension_numbers<[1], [0], [0], [1], [0, 0, 1, 1], [], []>} : vector<2x8xf32>, vector<8x32xf32>, vector<2x32xf32> -> vector<2x32xf32>
    %146 = arith.addf %141, %145 : vector<2x32xf32>
    %c26 = arith.constant 26 : index
    %c0_147 = arith.constant 0 : index
    %147 = vector.load %arg17[%c26, %c0_147] : memref<50x8xf32, #tpu.memory_space<vmem>>, vector<2x8xf32>
    %c13 = arith.constant 13 : index
    %c0_148 = arith.constant 0 : index
    %c0_149 = arith.constant 0 : index
    %148 = vector.load %arg7[%c13, %c0_148, %c0_149] : memref<25x8x32xf32, #tpu.memory_space<vmem>>, vector<1x8x32xf32>
    %149 = vector.shape_cast %148 : vector<1x8x32xf32> to vector<8x32xf32>
    %cst_150 = arith.constant dense<0.000000e+00> : vector<2x32xf32>
    %150 = tpu.matmul %147, %149, %cst_150 {dimension_numbers = #tpu.dot_dimension_numbers<[1], [0], [0], [1], [0, 0, 1, 1], [], []>} : vector<2x8xf32>, vector<8x32xf32>, vector<2x32xf32> -> vector<2x32xf32>
    %151 = arith.addf %146, %150 : vector<2x32xf32>
    %c28 = arith.constant 28 : index
    %c0_151 = arith.constant 0 : index
    %152 = vector.load %arg17[%c28, %c0_151] : memref<50x8xf32, #tpu.memory_space<vmem>>, vector<2x8xf32>
    %c14_152 = arith.constant 14 : index
    %c0_153 = arith.constant 0 : index
    %c0_154 = arith.constant 0 : index
    %153 = vector.load %arg7[%c14_152, %c0_153, %c0_154] : memref<25x8x32xf32, #tpu.memory_space<vmem>>, vector<1x8x32xf32>
    %154 = vector.shape_cast %153 : vector<1x8x32xf32> to vector<8x32xf32>
    %cst_155 = arith.constant dense<0.000000e+00> : vector<2x32xf32>
    %155 = tpu.matmul %152, %154, %cst_155 {dimension_numbers = #tpu.dot_dimension_numbers<[1], [0], [0], [1], [0, 0, 1, 1], [], []>} : vector<2x8xf32>, vector<8x32xf32>, vector<2x32xf32> -> vector<2x32xf32>
    %156 = arith.addf %151, %155 : vector<2x32xf32>
    %c30 = arith.constant 30 : index
    %c0_156 = arith.constant 0 : index
    %157 = vector.load %arg17[%c30, %c0_156] : memref<50x8xf32, #tpu.memory_space<vmem>>, vector<2x8xf32>
    %c15 = arith.constant 15 : index
    %c0_157 = arith.constant 0 : index
    %c0_158 = arith.constant 0 : index
    %158 = vector.load %arg7[%c15, %c0_157, %c0_158] : memref<25x8x32xf32, #tpu.memory_space<vmem>>, vector<1x8x32xf32>
    %159 = vector.shape_cast %158 : vector<1x8x32xf32> to vector<8x32xf32>
    %cst_159 = arith.constant dense<0.000000e+00> : vector<2x32xf32>
    %160 = tpu.matmul %157, %159, %cst_159 {dimension_numbers = #tpu.dot_dimension_numbers<[1], [0], [0], [1], [0, 0, 1, 1], [], []>} : vector<2x8xf32>, vector<8x32xf32>, vector<2x32xf32> -> vector<2x32xf32>
    %161 = arith.addf %156, %160 : vector<2x32xf32>
    %c32 = arith.constant 32 : index
    %c0_160 = arith.constant 0 : index
    %162 = vector.load %arg17[%c32, %c0_160] : memref<50x8xf32, #tpu.memory_space<vmem>>, vector<2x8xf32>
    %c16_161 = arith.constant 16 : index
    %c0_162 = arith.constant 0 : index
    %c0_163 = arith.constant 0 : index
    %163 = vector.load %arg7[%c16_161, %c0_162, %c0_163] : memref<25x8x32xf32, #tpu.memory_space<vmem>>, vector<1x8x32xf32>
    %164 = vector.shape_cast %163 : vector<1x8x32xf32> to vector<8x32xf32>
    %cst_164 = arith.constant dense<0.000000e+00> : vector<2x32xf32>
    %165 = tpu.matmul %162, %164, %cst_164 {dimension_numbers = #tpu.dot_dimension_numbers<[1], [0], [0], [1], [0, 0, 1, 1], [], []>} : vector<2x8xf32>, vector<8x32xf32>, vector<2x32xf32> -> vector<2x32xf32>
    %166 = arith.addf %161, %165 : vector<2x32xf32>
    %c34 = arith.constant 34 : index
    %c0_165 = arith.constant 0 : index
    %167 = vector.load %arg17[%c34, %c0_165] : memref<50x8xf32, #tpu.memory_space<vmem>>, vector<2x8xf32>
    %c17 = arith.constant 17 : index
    %c0_166 = arith.constant 0 : index
    %c0_167 = arith.constant 0 : index
    %168 = vector.load %arg7[%c17, %c0_166, %c0_167] : memref<25x8x32xf32, #tpu.memory_space<vmem>>, vector<1x8x32xf32>
    %169 = vector.shape_cast %168 : vector<1x8x32xf32> to vector<8x32xf32>
    %cst_168 = arith.constant dense<0.000000e+00> : vector<2x32xf32>
    %170 = tpu.matmul %167, %169, %cst_168 {dimension_numbers = #tpu.dot_dimension_numbers<[1], [0], [0], [1], [0, 0, 1, 1], [], []>} : vector<2x8xf32>, vector<8x32xf32>, vector<2x32xf32> -> vector<2x32xf32>
    %171 = arith.addf %166, %170 : vector<2x32xf32>
    %c36 = arith.constant 36 : index
    %c0_169 = arith.constant 0 : index
    %172 = vector.load %arg17[%c36, %c0_169] : memref<50x8xf32, #tpu.memory_space<vmem>>, vector<2x8xf32>
    %c18_170 = arith.constant 18 : index
    %c0_171 = arith.constant 0 : index
    %c0_172 = arith.constant 0 : index
    %173 = vector.load %arg7[%c18_170, %c0_171, %c0_172] : memref<25x8x32xf32, #tpu.memory_space<vmem>>, vector<1x8x32xf32>
    %174 = vector.shape_cast %173 : vector<1x8x32xf32> to vector<8x32xf32>
    %cst_173 = arith.constant dense<0.000000e+00> : vector<2x32xf32>
    %175 = tpu.matmul %172, %174, %cst_173 {dimension_numbers = #tpu.dot_dimension_numbers<[1], [0], [0], [1], [0, 0, 1, 1], [], []>} : vector<2x8xf32>, vector<8x32xf32>, vector<2x32xf32> -> vector<2x32xf32>
    %176 = arith.addf %171, %175 : vector<2x32xf32>
    %c38 = arith.constant 38 : index
    %c0_174 = arith.constant 0 : index
    %177 = vector.load %arg17[%c38, %c0_174] : memref<50x8xf32, #tpu.memory_space<vmem>>, vector<2x8xf32>
    %c19 = arith.constant 19 : index
    %c0_175 = arith.constant 0 : index
    %c0_176 = arith.constant 0 : index
    %178 = vector.load %arg7[%c19, %c0_175, %c0_176] : memref<25x8x32xf32, #tpu.memory_space<vmem>>, vector<1x8x32xf32>
    %179 = vector.shape_cast %178 : vector<1x8x32xf32> to vector<8x32xf32>
    %cst_177 = arith.constant dense<0.000000e+00> : vector<2x32xf32>
    %180 = tpu.matmul %177, %179, %cst_177 {dimension_numbers = #tpu.dot_dimension_numbers<[1], [0], [0], [1], [0, 0, 1, 1], [], []>} : vector<2x8xf32>, vector<8x32xf32>, vector<2x32xf32> -> vector<2x32xf32>
    %181 = arith.addf %176, %180 : vector<2x32xf32>
    %c40 = arith.constant 40 : index
    %c0_178 = arith.constant 0 : index
    %182 = vector.load %arg17[%c40, %c0_178] : memref<50x8xf32, #tpu.memory_space<vmem>>, vector<2x8xf32>
    %c20_179 = arith.constant 20 : index
    %c0_180 = arith.constant 0 : index
    %c0_181 = arith.constant 0 : index
    %183 = vector.load %arg7[%c20_179, %c0_180, %c0_181] : memref<25x8x32xf32, #tpu.memory_space<vmem>>, vector<1x8x32xf32>
    %184 = vector.shape_cast %183 : vector<1x8x32xf32> to vector<8x32xf32>
    %cst_182 = arith.constant dense<0.000000e+00> : vector<2x32xf32>
    %185 = tpu.matmul %182, %184, %cst_182 {dimension_numbers = #tpu.dot_dimension_numbers<[1], [0], [0], [1], [0, 0, 1, 1], [], []>} : vector<2x8xf32>, vector<8x32xf32>, vector<2x32xf32> -> vector<2x32xf32>
    %186 = arith.addf %181, %185 : vector<2x32xf32>
    %c42 = arith.constant 42 : index
    %c0_183 = arith.constant 0 : index
    %187 = vector.load %arg17[%c42, %c0_183] : memref<50x8xf32, #tpu.memory_space<vmem>>, vector<2x8xf32>
    %c21 = arith.constant 21 : index
    %c0_184 = arith.constant 0 : index
    %c0_185 = arith.constant 0 : index
    %188 = vector.load %arg7[%c21, %c0_184, %c0_185] : memref<25x8x32xf32, #tpu.memory_space<vmem>>, vector<1x8x32xf32>
    %189 = vector.shape_cast %188 : vector<1x8x32xf32> to vector<8x32xf32>
    %cst_186 = arith.constant dense<0.000000e+00> : vector<2x32xf32>
    %190 = tpu.matmul %187, %189, %cst_186 {dimension_numbers = #tpu.dot_dimension_numbers<[1], [0], [0], [1], [0, 0, 1, 1], [], []>} : vector<2x8xf32>, vector<8x32xf32>, vector<2x32xf32> -> vector<2x32xf32>
    %191 = arith.addf %186, %190 : vector<2x32xf32>
    %c44 = arith.constant 44 : index
    %c0_187 = arith.constant 0 : index
    %192 = vector.load %arg17[%c44, %c0_187] : memref<50x8xf32, #tpu.memory_space<vmem>>, vector<2x8xf32>
    %c22_188 = arith.constant 22 : index
    %c0_189 = arith.constant 0 : index
    %c0_190 = arith.constant 0 : index
    %193 = vector.load %arg7[%c22_188, %c0_189, %c0_190] : memref<25x8x32xf32, #tpu.memory_space<vmem>>, vector<1x8x32xf32>
    %194 = vector.shape_cast %193 : vector<1x8x32xf32> to vector<8x32xf32>
    %cst_191 = arith.constant dense<0.000000e+00> : vector<2x32xf32>
    %195 = tpu.matmul %192, %194, %cst_191 {dimension_numbers = #tpu.dot_dimension_numbers<[1], [0], [0], [1], [0, 0, 1, 1], [], []>} : vector<2x8xf32>, vector<8x32xf32>, vector<2x32xf32> -> vector<2x32xf32>
    %196 = arith.addf %191, %195 : vector<2x32xf32>
    %c46 = arith.constant 46 : index
    %c0_192 = arith.constant 0 : index
    %197 = vector.load %arg17[%c46, %c0_192] : memref<50x8xf32, #tpu.memory_space<vmem>>, vector<2x8xf32>
    %c23 = arith.constant 23 : index
    %c0_193 = arith.constant 0 : index
    %c0_194 = arith.constant 0 : index
    %198 = vector.load %arg7[%c23, %c0_193, %c0_194] : memref<25x8x32xf32, #tpu.memory_space<vmem>>, vector<1x8x32xf32>
    %199 = vector.shape_cast %198 : vector<1x8x32xf32> to vector<8x32xf32>
    %cst_195 = arith.constant dense<0.000000e+00> : vector<2x32xf32>
    %200 = tpu.matmul %197, %199, %cst_195 {dimension_numbers = #tpu.dot_dimension_numbers<[1], [0], [0], [1], [0, 0, 1, 1], [], []>} : vector<2x8xf32>, vector<8x32xf32>, vector<2x32xf32> -> vector<2x32xf32>
    %201 = arith.addf %196, %200 : vector<2x32xf32>
    %c48 = arith.constant 48 : index
    %c0_196 = arith.constant 0 : index
    %202 = vector.load %arg17[%c48, %c0_196] : memref<50x8xf32, #tpu.memory_space<vmem>>, vector<2x8xf32>
    %c24_197 = arith.constant 24 : index
    %c0_198 = arith.constant 0 : index
    %c0_199 = arith.constant 0 : index
    %203 = vector.load %arg7[%c24_197, %c0_198, %c0_199] : memref<25x8x32xf32, #tpu.memory_space<vmem>>, vector<1x8x32xf32>
    %204 = vector.shape_cast %203 : vector<1x8x32xf32> to vector<8x32xf32>
    %cst_200 = arith.constant dense<0.000000e+00> : vector<2x32xf32>
    %205 = tpu.matmul %202, %204, %cst_200 {dimension_numbers = #tpu.dot_dimension_numbers<[1], [0], [0], [1], [0, 0, 1, 1], [], []>} : vector<2x8xf32>, vector<8x32xf32>, vector<2x32xf32> -> vector<2x32xf32>
    %206 = arith.addf %201, %205 : vector<2x32xf32>
    %cst_201 = arith.constant 4.000000e+00 : f32
    %207 = vector.broadcast %cst_201 : f32 to vector<2x32xf32>
    %208 = arith.mulf %206, %207 : vector<2x32xf32>
    %cst_202 = arith.constant 5.000000e-01 : f32
    %209 = vector.broadcast %cst_202 : f32 to vector<2x32xf32>
    %210 = arith.addf %208, %209 : vector<2x32xf32>
    %211 = math.floor %210 : vector<2x32xf32>
    %cst_203 = arith.constant 2.500000e-01 : f32
    %212 = vector.broadcast %cst_203 : f32 to vector<2x32xf32>
    %213 = arith.mulf %211, %212 : vector<2x32xf32>
    %c0_204 = arith.constant 0 : index
    %c0_205 = arith.constant 0 : index
    %214 = vector.load %arg9[%c0_204, %c0_205] : memref<32x32xf32, #tpu.memory_space<vmem>>, vector<32x32xf32>
    %cst_206 = arith.constant dense<0.000000e+00> : vector<2x32xf32>
    %215 = tpu.matmul %213, %214, %cst_206 {dimension_numbers = #tpu.dot_dimension_numbers<[1], [0], [0], [1], [0, 0, 1, 1], [], []>} : vector<2x32xf32>, vector<32x32xf32>, vector<2x32xf32> -> vector<2x32xf32>
    %c0_207 = arith.constant 0 : index
    %c0_208 = arith.constant 0 : index
    %216 = vector.load %arg10[%c0_207, %c0_208] : memref<1x32xf32, #tpu.memory_space<vmem>>, vector<1x32xf32>
    %217 = vector.broadcast %216 : vector<1x32xf32> to vector<2x32xf32>
    %218 = arith.addf %215, %217 : vector<2x32xf32>
    %cst_209 = arith.constant 0.000000e+00 : f32
    %219 = vector.broadcast %cst_209 : f32 to vector<2x32xf32>
    %220 = arith.maximumf %218, %219 : vector<2x32xf32>
    %c0_210 = arith.constant 0 : index
    %c0_211 = arith.constant 0 : index
    %221 = vector.load %arg11[%c0_210, %c0_211] : memref<32x32xf32, #tpu.memory_space<vmem>>, vector<32x32xf32>
    %cst_212 = arith.constant dense<0.000000e+00> : vector<2x32xf32>
    %222 = tpu.matmul %220, %221, %cst_212 {dimension_numbers = #tpu.dot_dimension_numbers<[1], [0], [0], [1], [0, 0, 1, 1], [], []>} : vector<2x32xf32>, vector<32x32xf32>, vector<2x32xf32> -> vector<2x32xf32>
    %c0_213 = arith.constant 0 : index
    %c0_214 = arith.constant 0 : index
    %223 = vector.load %arg12[%c0_213, %c0_214] : memref<1x32xf32, #tpu.memory_space<vmem>>, vector<1x32xf32>
    %224 = vector.broadcast %223 : vector<1x32xf32> to vector<2x32xf32>
    %225 = arith.addf %222, %224 : vector<2x32xf32>
    %cst_215 = arith.constant 0.000000e+00 : f32
    %226 = vector.broadcast %cst_215 : f32 to vector<2x32xf32>
    %227 = arith.maximumf %225, %226 : vector<2x32xf32>
    %c0_216 = arith.constant 0 : index
    %c0_217 = arith.constant 0 : index
    %228 = vector.load %arg13[%c0_216, %c0_217] : memref<32x8xf32, #tpu.memory_space<vmem>>, vector<32x8xf32>
    %cst_218 = arith.constant dense<0.000000e+00> : vector<2x8xf32>
    %229 = tpu.matmul %227, %228, %cst_218 {dimension_numbers = #tpu.dot_dimension_numbers<[1], [0], [0], [1], [0, 0, 1, 1], [], []>} : vector<2x32xf32>, vector<32x8xf32>, vector<2x8xf32> -> vector<2x8xf32>
    %c0_219 = arith.constant 0 : index
    %c0_220 = arith.constant 0 : index
    %230 = vector.load %arg14[%c0_219, %c0_220] : memref<1x8xf32, #tpu.memory_space<vmem>>, vector<1x8xf32>
    %231 = vector.broadcast %230 : vector<1x8xf32> to vector<2x8xf32>
    %232 = arith.addf %229, %231 : vector<2x8xf32>
    %233 = vector.extract_strided_slice %232 {offsets = [0, 0], sizes = [2, 4], strides = [1, 1]} : vector<2x8xf32> to vector<2x4xf32>
    %234 = vector.extract_strided_slice %232 {offsets = [0, 4], sizes = [2, 4], strides = [1, 1]} : vector<2x8xf32> to vector<2x4xf32>
    %235 = math.tanh %234 : vector<2x4xf32>
    %cst_221 = arith.constant 1.000000e+00 : f32
    %236 = vector.broadcast %cst_221 : f32 to vector<2x4xf32>
    %237 = arith.addf %235, %236 : vector<2x4xf32>
    %cst_222 = arith.constant 6.000000e+00 : f32
    %238 = vector.broadcast %cst_222 : f32 to vector<2x4xf32>
    %239 = arith.mulf %238, %237 : vector<2x4xf32>
    %cst_223 = arith.constant -1.000000e+01 : f32
    %240 = vector.broadcast %cst_223 : f32 to vector<2x4xf32>
    %241 = arith.addf %240, %239 : vector<2x4xf32>
    %242 = math.exp %241 : vector<2x4xf32>
    %c0_224 = arith.constant 0 : index
    %c0_225 = arith.constant 0 : index
    %243 = vector.load %arg15[%c0_224, %c0_225] : memref<2x4xf32, #tpu.memory_space<vmem>>, vector<2x4xf32>
    %244 = arith.mulf %243, %242 : vector<2x4xf32>
    %245 = arith.addf %233, %244 : vector<2x4xf32>
    %cst_226 = arith.constant -5.000000e-01 : f32
    %246 = vector.broadcast %cst_226 : f32 to vector<2x4xf32>
    %247 = arith.mulf %246, %243 : vector<2x4xf32>
    %248 = arith.mulf %247, %243 : vector<2x4xf32>
    %249 = arith.subf %248, %241 : vector<2x4xf32>
    %cst_227 = arith.constant dense<0.000000e+00> : vector<2xf32>
    %250 = vector.multi_reduction <add>, %249, %cst_227 [1] : vector<2x4xf32> to vector<2xf32>
    %251 = vector.shape_cast %250 : vector<2xf32> to vector<2x1xf32>
    %cst_228 = arith.constant 3.67575407 : f32
    %252 = vector.broadcast %cst_228 : f32 to vector<2x1xf32>
    %253 = arith.subf %251, %252 : vector<2x1xf32>
    %254 = math.tanh %233 : vector<2x4xf32>
    %255 = math.tanh %245 : vector<2x4xf32>
    %256 = arith.mulf %255, %255 : vector<2x4xf32>
    %cst_229 = arith.constant 1.000000e+00 : f32
    %257 = vector.broadcast %cst_229 : f32 to vector<2x4xf32>
    %258 = arith.subf %257, %256 : vector<2x4xf32>
    %cst_230 = arith.constant 0.000000e+00 : f32
    %259 = vector.broadcast %cst_230 : f32 to vector<2x4xf32>
    %260 = arith.maximumf %258, %259 : vector<2x4xf32>
    %cst_231 = arith.constant 9.99999997E-7 : f32
    %261 = vector.broadcast %cst_231 : f32 to vector<2x4xf32>
    %262 = arith.addf %260, %261 : vector<2x4xf32>
    %263 = math.log %262 : vector<2x4xf32>
    %cst_232 = arith.constant dense<0.000000e+00> : vector<2xf32>
    %264 = vector.multi_reduction <add>, %263, %cst_232 [1] : vector<2x4xf32> to vector<2xf32>
    %265 = vector.shape_cast %264 : vector<2xf32> to vector<2x1xf32>
    %266 = arith.subf %253, %265 : vector<2x1xf32>
    %cst_233 = arith.constant 0.000000e+00 : f32
    %267 = vector.broadcast %cst_233 : f32 to vector<2x128xf32>
    %c0_234 = arith.constant 0 : index
    %c0_235 = arith.constant 0 : index
    %268 = vector.load %arg16[%c0_234, %c0_235] : memref<2x128xf32, #tpu.memory_space<vmem>>, vector<2x128xf32>
    tpu.vector_store %arg16[%c0_234, %c0_235], %267 {strides = array<i32>} : memref<2x128xf32, #tpu.memory_space<vmem>>, vector<2x128xf32>,
    %c0_236 = arith.constant 0 : index
    %c0_237 = arith.constant 0 : index
    %269 = vector.load %arg16[%c0_236, %c0_237] : memref<2x128xf32, #tpu.memory_space<vmem>>, vector<2x4xf32>
    tpu.vector_store %arg16[%c0_236, %c0_237], %254 {strides = array<i32>} : memref<2x128xf32, #tpu.memory_space<vmem>>, vector<2x4xf32>,
    %c0_238 = arith.constant 0 : index
    %c4_239 = arith.constant 4 : index
    %270 = vector.load %arg16[%c0_238, %c4_239] : memref<2x128xf32, #tpu.memory_space<vmem>>, vector<2x4xf32>
    tpu.vector_store %arg16[%c0_238, %c4_239], %255 {strides = array<i32>} : memref<2x128xf32, #tpu.memory_space<vmem>>, vector<2x4xf32>,
    %c0_240 = arith.constant 0 : index
    %c8_241 = arith.constant 8 : index
    %271 = vector.load %arg16[%c0_240, %c8_241] : memref<2x128xf32, #tpu.memory_space<vmem>>, vector<2x4xf32>
    tpu.vector_store %arg16[%c0_240, %c8_241], %241 {strides = array<i32>} : memref<2x128xf32, #tpu.memory_space<vmem>>, vector<2x4xf32>,
    %c0_242 = arith.constant 0 : index
    %c12_243 = arith.constant 12 : index
    %272 = vector.load %arg16[%c0_242, %c12_243] : memref<2x128xf32, #tpu.memory_space<vmem>>, vector<2x1xf32>
    tpu.vector_store %arg16[%c0_242, %c12_243], %266 {strides = array<i32>} : memref<2x128xf32, #tpu.memory_space<vmem>>, vector<2x1xf32>,
    return
  }
  func.func @transform_0(%arg0: i32) -> (i32, i32) {
    %c0_i32 = arith.constant 0 : i32
    %c0_i32_0 = arith.constant 0 : i32
    %c0_i32_1 = arith.constant 0 : i32
    return %c0_i32, %c0_i32_0 : i32, i32
  }
  func.func @transform_1(%arg0: i32) -> (i32, i32, i32) {
    %c0_i32 = arith.constant 0 : i32
    %c0_i32_0 = arith.constant 0 : i32
    %c0_i32_1 = arith.constant 0 : i32
    %c0_i32_2 = arith.constant 0 : i32
    return %c0_i32, %c0_i32_0, %c0_i32_1 : i32, i32, i32
  }
  func.func @transform_2(%arg0: i32) -> (i32, i32) {
    %c0_i32 = arith.constant 0 : i32
    %c0_i32_0 = arith.constant 0 : i32
    %c0_i32_1 = arith.constant 0 : i32
    return %c0_i32, %c0_i32_0 : i32, i32
  }
  func.func @transform_3(%arg0: i32) -> (i32, i32) {
    %c0_i32 = arith.constant 0 : i32
    %c0_i32_0 = arith.constant 0 : i32
    %c0_i32_1 = arith.constant 0 : i32
    return %c0_i32, %c0_i32_0 : i32, i32
  }
  func.func @transform_4(%arg0: i32) -> (i32, i32, i32) {
    %c0_i32 = arith.constant 0 : i32
    %c0_i32_0 = arith.constant 0 : i32
    %c0_i32_1 = arith.constant 0 : i32
    %c0_i32_2 = arith.constant 0 : i32
    return %c0_i32, %c0_i32_0, %c0_i32_1 : i32, i32, i32
  }
  func.func @transform_5(%arg0: i32) -> (i32, i32) {
    %c0_i32 = arith.constant 0 : i32
    %c0_i32_0 = arith.constant 0 : i32
    %c0_i32_1 = arith.constant 0 : i32
    return %c0_i32, %c0_i32_0 : i32, i32
  }
  func.func @transform_6(%arg0: i32) -> (i32, i32, i32) {
    %c0_i32 = arith.constant 0 : i32
    %c0_i32_0 = arith.constant 0 : i32
    %c0_i32_1 = arith.constant 0 : i32
    %c0_i32_2 = arith.constant 0 : i32
    return %c0_i32, %c0_i32_0, %c0_i32_1 : i32, i32, i32
  }
  func.func @transform_7(%arg0: i32) -> (i32, i32) {
    %c0_i32 = arith.constant 0 : i32
    %c0_i32_0 = arith.constant 0 : i32
    %c0_i32_1 = arith.constant 0 : i32
    return %c0_i32, %c0_i32_0 : i32, i32
  }
  func.func @transform_8(%arg0: i32) -> (i32, i32) {
    %c0_i32 = arith.constant 0 : i32
    %c0_i32_0 = arith.constant 0 : i32
    %c0_i32_1 = arith.constant 0 : i32
    return %c0_i32, %c0_i32_0 : i32, i32
  }
  func.func @transform_9(%arg0: i32) -> (i32, i32) {
    %c0_i32 = arith.constant 0 : i32
    %c0_i32_0 = arith.constant 0 : i32
    %c0_i32_1 = arith.constant 0 : i32
    return %c0_i32, %c0_i32_0 : i32, i32
  }
  func.func @transform_10(%arg0: i32) -> (i32, i32) {
    %c0_i32 = arith.constant 0 : i32
    %c0_i32_0 = arith.constant 0 : i32
    %c0_i32_1 = arith.constant 0 : i32
    return %c0_i32, %c0_i32_0 : i32, i32
  }
  func.func @transform_11(%arg0: i32) -> (i32, i32) {
    %c0_i32 = arith.constant 0 : i32
    %c0_i32_0 = arith.constant 0 : i32
    %c0_i32_1 = arith.constant 0 : i32
    return %c0_i32, %c0_i32_0 : i32, i32
  }
  func.func @transform_12(%arg0: i32) -> (i32, i32) {
    %c0_i32 = arith.constant 0 : i32
    %c0_i32_0 = arith.constant 0 : i32
    %c0_i32_1 = arith.constant 0 : i32
    return %c0_i32, %c0_i32_0 : i32, i32
  }
  func.func @transform_13(%arg0: i32) -> (i32, i32) {
    %c0_i32 = arith.constant 0 : i32
    %c0_i32_0 = arith.constant 0 : i32
    %c0_i32_1 = arith.constant 0 : i32
    return %c0_i32, %c0_i32_0 : i32, i32
  }
  func.func @transform_14(%arg0: i32) -> (i32, i32) {
    %c0_i32 = arith.constant 0 : i32
    %c0_i32_0 = arith.constant 0 : i32
    %c0_i32_1 = arith.constant 0 : i32
    return %c0_i32, %c0_i32_0 : i32, i32
  }
  func.func @transform_15(%arg0: i32) -> (i32, i32) {
    %c0_i32 = arith.constant 0 : i32
    %c0_i32_0 = arith.constant 0 : i32
    %c0_i32_1 = arith.constant 0 : i32
    return %c0_i32, %c0_i32_0 : i32, i32
  }
}

</mosaic_0001>

<llo_original>
// kernel: actor_forward.1
$region0: #{actor_forward.1}
  #allocation0 [shape = 'u32[]', space=smem, size = 0x4, offset = 0x4, fixed_abs, tag = 'smem constant byte address 0x4 - core index']
  #allocation1 [shape = 'u32[144,128]{1,0:T(1,128)}', space=vmem, size = 0x12000, scoped, tag = 'internal scratch']
  #allocation2 [shape = 'f32[50,8]{1,0:T(8,128)}', space=vmem, size = 0x7000, scoped, tag = 'scratch operand']
  %s0 = inlined_call_operand.vmem [shape: f32[98,27], index: 0, kind: input, shape index: {}]
  %s1 = inlined_call_operand.vmem [shape: f32[9,50,98], index: 1, kind: input, shape index: {}]
  %s2 = inlined_call_operand.vmem [shape: f32[27,8], index: 2, kind: input, shape index: {}]
  %s3 = inlined_call_operand.vmem [shape: f32[1,8], index: 3, kind: input, shape index: {}]
  %s4 = inlined_call_operand.vmem [shape: f32[9,8,8], index: 4, kind: input, shape index: {}]
  %s5 = inlined_call_operand.vmem [shape: f32[1,8], index: 5, kind: input, shape index: {}]
  %s6 = inlined_call_operand.vmem [shape: f32[25,8,32], index: 6, kind: input, shape index: {}]
  %s7 = inlined_call_operand.vmem [shape: f32[1,32], index: 7, kind: input, shape index: {}]
  %s8 = inlined_call_operand.vmem [shape: f32[32,32], index: 8, kind: input, shape index: {}]
  %s9 = inlined_call_operand.vmem [shape: f32[1,32], index: 9, kind: input, shape index: {}]
  %s10 = inlined_call_operand.vmem [shape: f32[32,32], index: 10, kind: input, shape index: {}]
  %s11 = inlined_call_operand.vmem [shape: f32[1,32], index: 11, kind: input, shape index: {}]
  %s12 = inlined_call_operand.vmem [shape: f32[32,8], index: 12, kind: input, shape index: {}]
  %s13 = inlined_call_operand.vmem [shape: f32[1,8], index: 13, kind: input, shape index: {}]
  %s14 = inlined_call_operand.vmem [shape: f32[2,4], index: 14, kind: input, shape index: {}]
  %s15 = inlined_call_operand.vmem [shape: f32[2,128], index: 15, kind: output, shape index: {}]
  %s16 = sld [smem:[#allocation0]]
  $region70: #{actor_forward.1} parent=0
    _
  %s18 = ssub.s32 1, %s16
  %s19 = scalar_select 0, %s18, %s16
  // Predicated region
  $region2: #{actor_forward.1} parent=0 // pred_check
    _
  $region3: #{actor_forward.1} parent=0 // pred_check_branch
    %21 = sbr.rel (0) target = $region5
  $region4: #{actor_forward.1} parent=0 // pred_region
    _
  $region5: #{actor_forward.1} parent=0 // pred_fallthru
    _
  // Predicated region
  $region6: #{actor_forward.1} parent=0 // pred_check
    _
  $region7: #{actor_forward.1} parent=0 // pred_check_branch
    %23 = sbr.rel (0) target = $region9
  $region8: #{actor_forward.1} parent=0 // pred_region
    _
  $region9: #{actor_forward.1} parent=0 // pred_fallthru
    _
  // Predicated region
  $region10: #{actor_forward.1} parent=0 // pred_check
    _
  $region11: #{actor_forward.1} parent=0 // pred_check_branch
    %25 = sbr.rel (0) target = $region13
  $region12: #{actor_forward.1} parent=0 // pred_region
    _
  $region13: #{actor_forward.1} parent=0 // pred_fallthru
    _
  // Predicated region
  $region14: #{actor_forward.1} parent=0 // pred_check
    _
  $region15: #{actor_forward.1} parent=0 // pred_check_branch
    %27 = sbr.rel (0) target = $region17
  $region16: #{actor_forward.1} parent=0 // pred_region
    _
  $region17: #{actor_forward.1} parent=0 // pred_fallthru
    _
  // Predicated region
  $region18: #{actor_forward.1} parent=0 // pred_check
    _
  $region19: #{actor_forward.1} parent=0 // pred_check_branch
    %29 = sbr.rel (0) target = $region21
  $region20: #{actor_forward.1} parent=0 // pred_region
    _
  $region21: #{actor_forward.1} parent=0 // pred_fallthru
    _
  // Predicated region
  $region22: #{actor_forward.1} parent=0 // pred_check
    _
  $region23: #{actor_forward.1} parent=0 // pred_check_branch
    %31 = sbr.rel (0) target = $region25
  $region24: #{actor_forward.1} parent=0 // pred_region
    _
  $region25: #{actor_forward.1} parent=0 // pred_fallthru
    _
  // Predicated region
  $region26: #{actor_forward.1} parent=0 // pred_check
    _
  $region27: #{actor_forward.1} parent=0 // pred_check_branch
    %33 = sbr.rel (0) target = $region29
  $region28: #{actor_forward.1} parent=0 // pred_region
    _
  $region29: #{actor_forward.1} parent=0 // pred_fallthru
    _
  // Predicated region
  $region30: #{actor_forward.1} parent=0 // pred_check
    _
  $region31: #{actor_forward.1} parent=0 // pred_check_branch
    %35 = sbr.rel (0) target = $region33
  $region32: #{actor_forward.1} parent=0 // pred_region
    _
  $region33: #{actor_forward.1} parent=0 // pred_fallthru
    _
  // Predicated region
  $region34: #{actor_forward.1} parent=0 // pred_check
    _
  $region35: #{actor_forward.1} parent=0 // pred_check_branch
    %37 = sbr.rel (0) target = $region37
  $region36: #{actor_forward.1} parent=0 // pred_region
    _
  $region37: #{actor_forward.1} parent=0 // pred_fallthru
    _
  // Predicated region
  $region38: #{actor_forward.1} parent=0 // pred_check
    _
  $region39: #{actor_forward.1} parent=0 // pred_check_branch
    %39 = sbr.rel (0) target = $region41
  $region40: #{actor_forward.1} parent=0 // pred_region
    _
  $region41: #{actor_forward.1} parent=0 // pred_fallthru
    _
  // Predicated region
  $region42: #{actor_forward.1} parent=0 // pred_check
    _
  $region43: #{actor_forward.1} parent=0 // pred_check_branch
    %41 = sbr.rel (0) target = $region45
  $region44: #{actor_forward.1} parent=0 // pred_region
    _
  $region45: #{actor_forward.1} parent=0 // pred_fallthru
    _
  // Predicated region
  $region46: #{actor_forward.1} parent=0 // pred_check
    _
  $region47: #{actor_forward.1} parent=0 // pred_check_branch
    %43 = sbr.rel (0) target = $region49
  $region48: #{actor_forward.1} parent=0 // pred_region
    _
  $region49: #{actor_forward.1} parent=0 // pred_fallthru
    _
  // Predicated region
  $region50: #{actor_forward.1} parent=0 // pred_check
    _
  $region51: #{actor_forward.1} parent=0 // pred_check_branch
    %45 = sbr.rel (0) target = $region53
  $region52: #{actor_forward.1} parent=0 // pred_region
    _
  $region53: #{actor_forward.1} parent=0 // pred_fallthru
    _
  // Predicated region
  $region54: #{actor_forward.1} parent=0 // pred_check
    _
  $region55: #{actor_forward.1} parent=0 // pred_check_branch
    %47 = sbr.rel (0) target = $region57
  $region56: #{actor_forward.1} parent=0 // pred_region
    _
  $region57: #{actor_forward.1} parent=0 // pred_fallthru
    _
  // Predicated region
  $region58: #{actor_forward.1} parent=0 // pred_check
    _
  $region59: #{actor_forward.1} parent=0 // pred_check_branch
    %49 = sbr.rel (0) target = $region61
  $region60: #{actor_forward.1} parent=0 // pred_region
    _
  $region61: #{actor_forward.1} parent=0 // pred_fallthru
    _
  %v50 = vld [vmem:[%s0] sm:$0xff]
  %v51 = vld [vmem:[%s0 + $0x8] sm:$0xff]
  %v52 = vld [vmem:[%s0 + $0x10] sm:$0xff]
  %v53 = vld [vmem:[%s0 + $0x18] sm:$0xff]
  %v54 = vld [vmem:[%s0 + $0x20] sm:$0xff]
  %v55 = vld [vmem:[%s0 + $0x28] sm:$0xff]
  %v56 = vld [vmem:[%s0 + $0x30] sm:$0xff]
  %v57 = vld [vmem:[%s0 + $0x38] sm:$0xff]
  %v58 = vld [vmem:[%s0 + $0x40] sm:$0xff]
  %v59 = vld [vmem:[%s0 + $0x48] sm:$0xff]
  %v60 = vld [vmem:[%s0 + $0x50] sm:$0xff]
  %v61 = vld [vmem:[%s0 + $0x58] sm:$0xff]
  %v62 = vld [vmem:[%s0 + $0x60] sm:$0x3]
  %v63 = vld [vmem:[%s2] sm:$0xff]
  %v64 = vld [vmem:[%s2 + $0x8] sm:$0xff]
  %v65 = vld [vmem:[%s2 + $0x10] sm:$0xff]
  %v66 = vld [vmem:[%s2 + $0x18] sm:$0x7]
  %v67 = vld [vmem:[%s3] sm:$0x1]
  %v69 = vlaneseq
  %v70 = vshrl.u32 %v69, 7
  %v71 = vsub.s32 0, %v70
  %v72 = vrot.slane %v67, %v71
  %vm74 = vcmask 220160
  %v76 = vsel %vm74, %v50, 0
  %v79 = vsel %vm74, %v51, 0
  %v82 = vsel %vm74, %v52, 0
  %v85 = vsel %vm74, %v53, 0
  %v88 = vsel %vm74, %v54, 0
  %v91 = vsel %vm74, %v55, 0
  %v94 = vsel %vm74, %v56, 0
  %v97 = vsel %vm74, %v57, 0
  %v100 = vsel %vm74, %v58, 0
  %v103 = vsel %vm74, %v59, 0
  %v106 = vsel %vm74, %v60, 0
  %v109 = vsel %vm74, %v61, 0
  %v112 = vsel %vm74, %v62, 0
  %vm114 = vcmask 1042432
  %v116 = vsel %vm114, %v66, 0
  %118 = vmatprep.subr.mxu0 0.0
  %119 = vmatpush1.msra.mxu0 %v63
  %120 = vmatprep.subr.mxu0 0.0
  %121 = vmatpush1.msra.mxu0 %v64
  %122 = vmatprep.subr.mxu0 0.0
  %123 = vmatpush1.msra.mxu0 %v65
  %124 = vmatprep.subr.mxu0 0.0
  %125 = vmatpush1.msra.mxu0 %v116
  %126 = vmatprep.subr.mxu0 0.0
  %127 = vmatpush1.msra.mxu0 0.0
  %128 = vmatprep.subr.mxu0 0.0
  %129 = vmatpush1.msra.mxu0 0.0
  %130 = vmatprep.subr.mxu0 0.0
  %131 = vmatpush1.msra.mxu0 0.0
  %132 = vmatprep.subr.mxu0 0.0
  %133 = vmatpush1.msra.mxu0 0.0
  %134 = vmatprep.subr.mxu0 0.0
  %135 = vmatpush1.msra.mxu0 0.0
  %136 = vmatprep.subr.mxu0 0.0
  %137 = vmatpush1.msra.mxu0 0.0
  %138 = vmatprep.subr.mxu0 0.0
  %139 = vmatpush1.msra.mxu0 0.0
  %140 = vmatprep.subr.mxu0 0.0
  %141 = vmatpush1.msra.mxu0 0.0
  %142 = vmatprep.subr.mxu0 0.0
  %143 = vmatpush1.msra.mxu0 0.0
  %144 = vmatprep.subr.mxu0 0.0
  %145 = vmatpush1.msra.mxu0 0.0
  %146 = vmatprep.subr.mxu0 0.0
  %147 = vmatpush1.msra.mxu0 0.0
  %148 = vmatprep.subr.mxu0 0.0
  %149 = vmatpush1.msra.mxu0 0.0
  %150 = vmatprep.subr.mxu0 0.0
  %151 = vmatpush1.msra.mxu0 0.0
  %152 = vmatprep.subr.mxu0 0.0
  %153 = vmatpush1.msra.mxu0 0.0
  %154 = vmatprep.subr.mxu0 0.0
  %155 = vmatpush1.msra.mxu0 0.0
  %156 = vmatprep.subr.mxu0 0.0
  %157 = vmatpush1.msra.mxu0 0.0
  %158 = vmatprep.subr.mxu0 0.0
  %159 = vmatpush1.msra.mxu0 0.0
  %160 = vmatprep.subr.mxu0 0.0
  %161 = vmatpush1.msra.mxu0 0.0
  %162 = vmatprep.subr.mxu0 0.0
  %163 = vmatpush1.msra.mxu0 0.0
  %164 = vmatprep.subr.mxu0 0.0
  %165 = vmatpush1.msra.mxu0 0.0
  %166 = vmatprep.subr.mxu0 0.0
  %167 = vmatpush1.msra.mxu0 0.0
  %168 = vmatprep.subr.mxu0 0.0
  %169 = vmatpush1.msra.mxu0 0.0
  %170 = vmatprep.subr.mxu0 0.0
  %171 = vmatpush1.msra.mxu0 0.0
  %172 = vmatprep.subr.mxu0 0.0
  %173 = vmatpush1.msra.mxu0 0.0
  %174 = vmatprep.subr.mxu0 0.0
  %175 = vmatpush1.msra.mxu0 0.0
  %176 = vmatprep.subr.mxu0 0.0
  %177 = vmatpush1.msra.mxu0 0.0
  %178 = vmatprep.subr.mxu0 0.0
  %179 = vmatpush1.msra.mxu0 0.0
  %180 = vmatprep.subr.mxu0 0.0
  %181 = vmatpush1.msra.mxu0 0.0
  %182 = vmatprep.mubr.f32.mxu0 0.0
  %183 = vmatmul.mubr.f32.gmra.mrb[0].mxu0 %v76
  %v184 = vpop.f32.mrb[0].mxu0
  %v185 = vadd.f32 %v72, %v184
  %v186 = vpop.f32.mrb[0].mxu0
  %187 = vmatprep.mubr.f32.mxu0 0.0
  %188 = vmatmul.mubr.f32.gmra.mrb[0].mxu0 %v79
  %v189 = vpop.f32.mrb[0].mxu0
  %v190 = vadd.f32 %v72, %v189
  %v191 = vpop.f32.mrb[0].mxu0
  %192 = vmatprep.mubr.f32.mxu0 0.0
  %193 = vmatmul.mubr.f32.gmra.mrb[0].mxu0 %v82
  %v194 = vpop.f32.mrb[0].mxu0
  %v195 = vadd.f32 %v72, %v194
  %v196 = vpop.f32.mrb[0].mxu0
  %197 = vmatprep.mubr.f32.mxu0 0.0
  %198 = vmatmul.mubr.f32.gmra.mrb[0].mxu0 %v85
  %v199 = vpop.f32.mrb[0].mxu0
  %v200 = vadd.f32 %v72, %v199
  %v201 = vpop.f32.mrb[0].mxu0
  %202 = vmatprep.mubr.f32.mxu0 0.0
  %203 = vmatmul.mubr.f32.gmra.mrb[0].mxu0 %v88
  %v204 = vpop.f32.mrb[0].mxu0
  %v205 = vadd.f32 %v72, %v204
  %v206 = vpop.f32.mrb[0].mxu0
  %207 = vmatprep.mubr.f32.mxu0 0.0
  %208 = vmatmul.mubr.f32.gmra.mrb[0].mxu0 %v91
  %v209 = vpop.f32.mrb[0].mxu0
  %v210 = vadd.f32 %v72, %v209
  %v211 = vpop.f32.mrb[0].mxu0
  %212 = vmatprep.mubr.f32.mxu0 0.0
  %213 = vmatmul.mubr.f32.gmra.mrb[0].mxu0 %v94
  %v214 = vpop.f32.mrb[0].mxu0
  %v215 = vadd.f32 %v72, %v214
  %v216 = vpop.f32.mrb[0].mxu0
  %217 = vmatprep.mubr.f32.mxu0 0.0
  %218 = vmatmul.mubr.f32.gmra.mrb[0].mxu0 %v97
  %v219 = vpop.f32.mrb[0].mxu0
  %v220 = vadd.f32 %v72, %v219
  %v221 = vpop.f32.mrb[0].mxu0
  %222 = vmatprep.mubr.f32.mxu0 0.0
  %223 = vmatmul.mubr.f32.gmra.mrb[0].mxu0 %v100
  %v224 = vpop.f32.mrb[0].mxu0
  %v225 = vadd.f32 %v72, %v224
  %v226 = vpop.f32.mrb[0].mxu0
  %227 = vmatprep.mubr.f32.mxu0 0.0
  %228 = vmatmul.mubr.f32.gmra.mrb[0].mxu0 %v103
  %v229 = vpop.f32.mrb[0].mxu0
  %v230 = vadd.f32 %v72, %v229
  %v231 = vpop.f32.mrb[0].mxu0
  %232 = vmatprep.mubr.f32.mxu0 0.0
  %233 = vmatmul.mubr.f32.gmra.mrb[0].mxu0 %v106
  %v234 = vpop.f32.mrb[0].mxu0
  %v235 = vadd.f32 %v72, %v234
  %v236 = vpop.f32.mrb[0].mxu0
  %237 = vmatprep.mubr.f32.mxu0 0.0
  %238 = vmatmul.mubr.f32.gmra.mrb[0].mxu0 %v109
  %v239 = vpop.f32.mrb[0].mxu0
  %v240 = vadd.f32 %v72, %v239
  %v241 = vpop.f32.mrb[0].mxu0
  %242 = vmatprep.mubr.f32.mxu0 0.0
  %243 = vmatmul.mubr.f32.gmra.mrb[0].mxu0 %v112
  %v244 = vpop.f32.mrb[0].mxu0
  %v245 = vadd.f32 %v72, %v244
  %v246 = vpop.f32.mrb[0].mxu0
  %247 = vdwg.mxu0
  %v248 = vmax.f32 %v185, 0.0
  %v249 = vmax.f32 %v190, 0.0
  %v250 = vmax.f32 %v195, 0.0
  %v251 = vmax.f32 %v200, 0.0
  %v252 = vmax.f32 %v205, 0.0
  %v253 = vmax.f32 %v210, 0.0
  %v254 = vmax.f32 %v215, 0.0
  %v255 = vmax.f32 %v220, 0.0
  %v256 = vmax.f32 %v225, 0.0
  %v257 = vmax.f32 %v230, 0.0
  %v258 = vmax.f32 %v235, 0.0
  %v259 = vmax.f32 %v240, 0.0
  %v260 = vmax.f32 %v245, 0.0
  %v261 = vld [vmem:[%s5] sm:$0x1]
  %v263 = vlaneseq
  %v264 = vshrl.u32 %v263, 7
  %v265 = vsub.s32 0, %v264
  %v266 = vrot.slane %v261, %v265
  %v268 = vadd.f32 %v266, 0.0
  %v269 = vld [vmem:[%s1] sm:$0xff]
  %v270 = vld [vmem:[%s1 + $0x8] sm:$0xff]
  %v271 = vld [vmem:[%s1 + $0x10] sm:$0xff]
  %v272 = vld [vmem:[%s1 + $0x18] sm:$0xff]
  %v273 = vld [vmem:[%s1 + $0x20] sm:$0xff]
  %v274 = vld [vmem:[%s1 + $0x28] sm:$0xff]
  %v275 = vld [vmem:[%s1 + $0x30] sm:$0x3]
  %v276 = vld [vmem:[%s4] sm:$0xff]
  %vm277 = vcmask 64512
  %v279 = vsel %vm277, %v248, 0
  %v282 = vsel %vm277, %v249, 0
  %v285 = vsel %vm277, %v250, 0
  %v288 = vsel %vm277, %v251, 0
  %v291 = vsel %vm277, %v252, 0
  %v294 = vsel %vm277, %v253, 0
  %v297 = vsel %vm277, %v254, 0
  %v300 = vsel %vm277, %v255, 0
  %v303 = vsel %vm277, %v256, 0
  %v306 = vsel %vm277, %v257, 0
  %v309 = vsel %vm277, %v258, 0
  %v312 = vsel %vm277, %v259, 0
  %v315 = vsel %vm277, %v260, 0
  %317 = vmatprep.subr.mxu0 0.0
  %318 = vmatpush1.msra.mxu0 %v276
  %319 = vmatprep.subr.mxu0 0.0
  %320 = vmatpush1.msra.mxu0 0.0
  %321 = vmatprep.subr.mxu0 0.0
  %322 = vmatpush1.msra.mxu0 0.0
  %323 = vmatprep.subr.mxu0 0.0
  %324 = vmatpush1.msra.mxu0 0.0
  %325 = vmatprep.subr.mxu0 0.0
  %326 = vmatpush1.msra.mxu0 0.0
  %327 = vmatprep.subr.mxu0 0.0
  %328 = vmatpush1.msra.mxu0 0.0
  %329 = vmatprep.subr.mxu0 0.0
  %330 = vmatpush1.msra.mxu0 0.0
  %331 = vmatprep.subr.mxu0 0.0
  %332 = vmatpush1.msra.mxu0 0.0
  %333 = vmatprep.subr.mxu0 0.0
  %334 = vmatpush1.msra.mxu0 0.0
  %335 = vmatprep.subr.mxu0 0.0
  %336 = vmatpush1.msra.mxu0 0.0
  %337 = vmatprep.subr.mxu0 0.0
  %338 = vmatpush1.msra.mxu0 0.0
  %339 = vmatprep.subr.mxu0 0.0
  %340 = vmatpush1.msra.mxu0 0.0
  %341 = vmatprep.subr.mxu0 0.0
  %342 = vmatpush1.msra.mxu0 0.0
  %343 = vmatprep.subr.mxu0 0.0
  %344 = vmatpush1.msra.mxu0 0.0
  %345 = vmatprep.subr.mxu0 0.0
  %346 = vmatpush1.msra.mxu0 0.0
  %347 = vmatprep.subr.mxu0 0.0
  %348 = vmatpush1.msra.mxu0 0.0
  %349 = vmatprep.subr.mxu0 0.0
  %350 = vmatpush1.msra.mxu0 0.0
  %351 = vmatprep.subr.mxu0 0.0
  %352 = vmatpush1.msra.mxu0 0.0
  %353 = vmatprep.subr.mxu0 0.0
  %354 = vmatpush1.msra.mxu0 0.0
  %355 = vmatprep.subr.mxu0 0.0
  %356 = vmatpush1.msra.mxu0 0.0
  %357 = vmatprep.subr.mxu0 0.0
  %358 = vmatpush1.msra.mxu0 0.0
  %359 = vmatprep.subr.mxu0 0.0
  %360 = vmatpush1.msra.mxu0 0.0
  %361 = vmatprep.subr.mxu0 0.0
  %362 = vmatpush1.msra.mxu0 0.0
  %363 = vmatprep.subr.mxu0 0.0
  %364 = vmatpush1.msra.mxu0 0.0
  %365 = vmatprep.subr.mxu0 0.0
  %366 = vmatpush1.msra.mxu0 0.0
  %367 = vmatprep.subr.mxu0 0.0
  %368 = vmatpush1.msra.mxu0 0.0
  %369 = vmatprep.subr.mxu0 0.0
  %370 = vmatpush1.msra.mxu0 0.0
  %371 = vmatprep.subr.mxu0 0.0
  %372 = vmatpush1.msra.mxu0 0.0
  %373 = vmatprep.subr.mxu0 0.0
  %374 = vmatpush1.msra.mxu0 0.0
  %375 = vmatprep.subr.mxu0 0.0
  %376 = vmatpush1.msra.mxu0 0.0
  %377 = vmatprep.subr.mxu0 0.0
  %378 = vmatpush1.msra.mxu0 0.0
  %379 = vmatprep.subr.mxu0 0.0
  %380 = vmatpush1.msra.mxu0 0.0
  %381 = vmatprep.mubr.f32.mxu0 0.0
  %382 = vmatmul.mubr.f32.gmra.mrb[0].mxu0 %v279
  %v383 = vpop.f32.mrb[0].mxu0
  %v384 = vadd.f32 0.0, %v383
  %v385 = vpop.f32.mrb[0].mxu0
  %386 = vmatprep.mubr.f32.mxu0 0.0
  %387 = vmatmul.mubr.f32.gmra.mrb[0].mxu0 %v282
  %v388 = vpop.f32.mrb[0].mxu0
  %v389 = vadd.f32 0.0, %v388
  %v390 = vpop.f32.mrb[0].mxu0
  %391 = vmatprep.mubr.f32.mxu0 0.0
  %392 = vmatmul.mubr.f32.gmra.mrb[0].mxu0 %v285
  %v393 = vpop.f32.mrb[0].mxu0
  %v394 = vadd.f32 0.0, %v393
  %v395 = vpop.f32.mrb[0].mxu0
  %396 = vmatprep.mubr.f32.mxu0 0.0
  %397 = vmatmul.mubr.f32.gmra.mrb[0].mxu0 %v288
  %v398 = vpop.f32.mrb[0].mxu0
  %v399 = vadd.f32 0.0, %v398
  %v400 = vpop.f32.mrb[0].mxu0
  %401 = vmatprep.mubr.f32.mxu0 0.0
  %402 = vmatmul.mubr.f32.gmra.mrb[0].mxu0 %v291
  %v403 = vpop.f32.mrb[0].mxu0
  %v404 = vadd.f32 0.0, %v403
  %v405 = vpop.f32.mrb[0].mxu0
  %406 = vmatprep.mubr.f32.mxu0 0.0
  %407 = vmatmul.mubr.f32.gmra.mrb[0].mxu0 %v294
  %v408 = vpop.f32.mrb[0].mxu0
  %v409 = vadd.f32 0.0, %v408
  %v410 = vpop.f32.mrb[0].mxu0
  %411 = vmatprep.mubr.f32.mxu0 0.0
  %412 = vmatmul.mubr.f32.gmra.mrb[0].mxu0 %v297
  %v413 = vpop.f32.mrb[0].mxu0
  %v414 = vadd.f32 0.0, %v413
  %v415 = vpop.f32.mrb[0].mxu0
  %416 = vmatprep.mubr.f32.mxu0 0.0
  %417 = vmatmul.mubr.f32.gmra.mrb[0].mxu0 %v300
  %v418 = vpop.f32.mrb[0].mxu0
  %v419 = vadd.f32 0.0, %v418
  %v420 = vpop.f32.mrb[0].mxu0
  %421 = vmatprep.mubr.f32.mxu0 0.0
  %422 = vmatmul.mubr.f32.gmra.mrb[0].mxu0 %v303
  %v423 = vpop.f32.mrb[0].mxu0
  %v424 = vadd.f32 0.0, %v423
  %v425 = vpop.f32.mrb[0].mxu0
  %426 = vmatprep.mubr.f32.mxu0 0.0
  %427 = vmatmul.mubr.f32.gmra.mrb[0].mxu0 %v306
  %v428 = vpop.f32.mrb[0].mxu0
  %v429 = vadd.f32 0.0, %v428
  %v430 = vpop.f32.mrb[0].mxu0
  %431 = vmatprep.mubr.f32.mxu0 0.0
  %432 = vmatmul.mubr.f32.gmra.mrb[0].mxu0 %v309
  %v433 = vpop.f32.mrb[0].mxu0
  %v434 = vadd.f32 0.0, %v433
  %v435 = vpop.f32.mrb[0].mxu0
  %436 = vmatprep.mubr.f32.mxu0 0.0
  %437 = vmatmul.mubr.f32.gmra.mrb[0].mxu0 %v312
  %v438 = vpop.f32.mrb[0].mxu0
  %v439 = vadd.f32 0.0, %v438
  %v440 = vpop.f32.mrb[0].mxu0
  %441 = vmatprep.mubr.f32.mxu0 0.0
  %442 = vmatmul.mubr.f32.gmra.mrb[0].mxu0 %v315
  %v443 = vpop.f32.mrb[0].mxu0
  %v444 = vadd.f32 0.0, %v443
  %v445 = vpop.f32.mrb[0].mxu0
  %446 = vdwg.mxu0
  %vm447 = vcmask 801792
  %v449 = vsel %vm447, %v269, 0
  %v452 = vsel %vm447, %v270, 0
  %v455 = vsel %vm447, %v271, 0
  %v458 = vsel %vm447, %v272, 0
  %v461 = vsel %vm447, %v273, 0
  %v464 = vsel %vm447, %v274, 0
  %v467 = vsel %vm447, %v275, 0
  %vm469 = vcmask 1041408
  %v471 = vsel %vm469, %v444, 0
  %473 = vmatprep.subr.mxu0 0.0
  %474 = vmatpush1.msra.mxu0 %v384
  %475 = vmatprep.subr.mxu0 0.0
  %476 = vmatpush1.msra.mxu0 %v389
  %477 = vmatprep.subr.mxu0 0.0
  %478 = vmatpush1.msra.mxu0 %v394
  %479 = vmatprep.subr.mxu0 0.0
  %480 = vmatpush1.msra.mxu0 %v399
  %481 = vmatprep.subr.mxu0 0.0
  %482 = vmatpush1.msra.mxu0 %v404
  %483 = vmatprep.subr.mxu0 0.0
  %484 = vmatpush1.msra.mxu0 %v409
  %485 = vmatprep.subr.mxu0 0.0
  %486 = vmatpush1.msra.mxu0 %v414
  %487 = vmatprep.subr.mxu0 0.0
  %488 = vmatpush1.msra.mxu0 %v419
  %489 = vmatprep.subr.mxu0 0.0
  %490 = vmatpush1.msra.mxu0 %v424
  %491 = vmatprep.subr.mxu0 0.0
  %492 = vmatpush1.msra.mxu0 %v429
  %493 = vmatprep.subr.mxu0 0.0
  %494 = vmatpush1.msra.mxu0 %v434
  %495 = vmatprep.subr.mxu0 0.0
  %496 = vmatpush1.msra.mxu0 %v439
  %497 = vmatprep.subr.mxu0 0.0
  %498 = vmatpush1.msra.mxu0 %v471
  %499 = vmatprep.subr.mxu0 0.0
  %500 = vmatpush1.msra.mxu0 0.0
  %501 = vmatprep.subr.mxu0 0.0
  %502 = vmatpush1.msra.mxu0 0.0
  %503 = vmatprep.subr.mxu0 0.0
  %504 = vmatpush1.msra.mxu0 0.0
  %505 = vmatprep.subr.mxu0 0.0
  %506 = vmatpush1.msra.mxu0 0.0
  %507 = vmatprep.subr.mxu0 0.0
  %508 = vmatpush1.msra.mxu0 0.0
  %509 = vmatprep.subr.mxu0 0.0
  %510 = vmatpush1.msra.mxu0 0.0
  %511 = vmatprep.subr.mxu0 0.0
  %512 = vmatpush1.msra.mxu0 0.0
  %513 = vmatprep.subr.mxu0 0.0
  %514 = vmatpush1.msra.mxu0 0.0
  %515 = vmatprep.subr.mxu0 0.0
  %516 = vmatpush1.msra.mxu0 0.0
  %517 = vmatprep.subr.mxu0 0.0
  %518 = vmatpush1.msra.mxu0 0.0
  %519 = vmatprep.subr.mxu0 0.0
  %520 = vmatpush1.msra.mxu0 0.0
  %521 = vmatprep.subr.mxu0 0.0
  %522 = vmatpush1.msra.mxu0 0.0
  %523 = vmatprep.subr.mxu0 0.0
  %524 = vmatpush1.msra.mxu0 0.0
  %525 = vmatprep.subr.mxu0 0.0
  %526 = vmatpush1.msra.mxu0 0.0
  %527 = vmatprep.subr.mxu0 0.0
  %528 = vmatpush1.msra.mxu0 0.0
  %529 = vmatprep.subr.mxu0 0.0
  %530 = vmatpush1.msra.mxu0 0.0
  %531 = vmatprep.subr.mxu0 0.0
  %532 = vmatpush1.msra.mxu0 0.0
  %533 = vmatprep.subr.mxu0 0.0
  %534 = vmatpush1.msra.mxu0 0.0
  %535 = vmatprep.subr.mxu0 0.0
  %536 = vmatpush1.msra.mxu0 0.0
  %537 = vmatprep.mubr.f32.mxu0 0.0
  %538 = vmatmul.mubr.f32.gmra.mrb[0].mxu0 %v449
  %v539 = vpop.f32.mrb[0].mxu0
  %v540 = vadd.f32 0.0, %v539
  %v541 = vpop.f32.mrb[0].mxu0
  %542 = vmatprep.mubr.f32.mxu0 0.0
  %543 = vmatmul.mubr.f32.gmra.mrb[0].mxu0 %v452
  %v544 = vpop.f32.mrb[0].mxu0
  %v545 = vadd.f32 0.0, %v544
  %v546 = vpop.f32.mrb[0].mxu0
  %547 = vmatprep.mubr.f32.mxu0 0.0
  %548 = vmatmul.mubr.f32.gmra.mrb[0].mxu0 %v455
  %v549 = vpop.f32.mrb[0].mxu0
  %v550 = vadd.f32 0.0, %v549
  %v551 = vpop.f32.mrb[0].mxu0
  %552 = vmatprep.mubr.f32.mxu0 0.0
  %553 = vmatmul.mubr.f32.gmra.mrb[0].mxu0 %v458
  %v554 = vpop.f32.mrb[0].mxu0
  %v555 = vadd.f32 0.0, %v554
  %v556 = vpop.f32.mrb[0].mxu0
  %557 = vmatprep.mubr.f32.mxu0 0.0
  %558 = vmatmul.mubr.f32.gmra.mrb[0].mxu0 %v461
  %v559 = vpop.f32.mrb[0].mxu0
  %v560 = vadd.f32 0.0, %v559
  %v561 = vpop.f32.mrb[0].mxu0
  %562 = vmatprep.mubr.f32.mxu0 0.0
  %563 = vmatmul.mubr.f32.gmra.mrb[0].mxu0 %v464
  %v564 = vpop.f32.mrb[0].mxu0
  %v565 = vadd.f32 0.0, %v564
  %v566 = vpop.f32.mrb[0].mxu0
  %567 = vmatprep.mubr.f32.mxu0 0.0
  %568 = vmatmul.mubr.f32.gmra.mrb[0].mxu0 %v467
  %v569 = vpop.f32.mrb[0].mxu0
  %v570 = vadd.f32 0.0, %v569
  %v571 = vpop.f32.mrb[0].mxu0
  %572 = vdwg.mxu0
  %v573 = vadd.f32 %v268, %v540
  %v574 = vadd.f32 %v268, %v545
  %v575 = vadd.f32 %v268, %v550
  %v576 = vadd.f32 %v268, %v555
  %v577 = vadd.f32 %v268, %v560
  %v578 = vadd.f32 %v268, %v565
  %v579 = vadd.f32 %v268, %v570
  %s580 = scalar_lea.vmem %s1, 56
  %v581 = vld [vmem:[%s580] sm:$0xff]
  %v582 = vld [vmem:[%s580 + $0x8] sm:$0xff]
  %v583 = vld [vmem:[%s580 + $0x10] sm:$0xff]
  %v584 = vld [vmem:[%s580 + $0x18] sm:$0xff]
  %v585 = vld [vmem:[%s580 + $0x20] sm:$0xff]
  %v586 = vld [vmem:[%s580 + $0x28] sm:$0xff]
  %v587 = vld [vmem:[%s580 + $0x30] sm:$0x3]
  %s588 = scalar_lea.vmem %s4, 8
  %v589 = vld [vmem:[%s588] sm:$0xff]
  %590 = vmatprep.subr.mxu0 0.0
  %591 = vmatpush1.msra.mxu0 %v589
  %592 = vmatprep.subr.mxu0 0.0
  %593 = vmatpush1.msra.mxu0 0.0
  %594 = vmatprep.subr.mxu0 0.0
  %595 = vmatpush1.msra.mxu0 0.0
  %596 = vmatprep.subr.mxu0 0.0
  %597 = vmatpush1.msra.mxu0 0.0
  %598 = vmatprep.subr.mxu0 0.0
  %599 = vmatpush1.msra.mxu0 0.0
  %600 = vmatprep.subr.mxu0 0.0
  %601 = vmatpush1.msra.mxu0 0.0
  %602 = vmatprep.subr.mxu0 0.0
  %603 = vmatpush1.msra.mxu0 0.0
  %604 = vmatprep.subr.mxu0 0.0
  %605 = vmatpush1.msra.mxu0 0.0
  %606 = vmatprep.subr.mxu0 0.0
  %607 = vmatpush1.msra.mxu0 0.0
  %608 = vmatprep.subr.mxu0 0.0
  %609 = vmatpush1.msra.mxu0 0.0
  %610 = vmatprep.subr.mxu0 0.0
  %611 = vmatpush1.msra.mxu0 0.0
  %612 = vmatprep.subr.mxu0 0.0
  %613 = vmatpush1.msra.mxu0 0.0
  %614 = vmatprep.subr.mxu0 0.0
  %615 = vmatpush1.msra.mxu0 0.0
  %616 = vmatprep.subr.mxu0 0.0
  %617 = vmatpush1.msra.mxu0 0.0
  %618 = vmatprep.subr.mxu0 0.0
  %619 = vmatpush1.msra.mxu0 0.0
  %620 = vmatprep.subr.mxu0 0.0
  %621 = vmatpush1.msra.mxu0 0.0
  %622 = vmatprep.subr.mxu0 0.0
  %623 = vmatpush1.msra.mxu0 0.0
  %624 = vmatprep.subr.mxu0 0.0
  %625 = vmatpush1.msra.mxu0 0.0
  %626 = vmatprep.subr.mxu0 0.0
  %627 = vmatpush1.msra.mxu0 0.0
  %628 = vmatprep.subr.mxu0 0.0
  %629 = vmatpush1.msra.mxu0 0.0
  %630 = vmatprep.subr.mxu0 0.0
  %631 = vmatpush1.msra.mxu0 0.0
  %632 = vmatprep.subr.mxu0 0.0
  %633 = vmatpush1.msra.mxu0 0.0
  %634 = vmatprep.subr.mxu0 0.0
  %635 = vmatpush1.msra.mxu0 0.0
  %636 = vmatprep.subr.mxu0 0.0
  %637 = vmatpush1.msra.mxu0 0.0
  %638 = vmatprep.subr.mxu0 0.0
  %639 = vmatpush1.msra.mxu0 0.0
  %640 = vmatprep.subr.mxu0 0.0
  %641 = vmatpush1.msra.mxu0 0.0
  %642 = vmatprep.subr.mxu0 0.0
  %643 = vmatpush1.msra.mxu0 0.0
  %644 = vmatprep.subr.mxu0 0.0
  %645 = vmatpush1.msra.mxu0 0.0
  %646 = vmatprep.subr.mxu0 0.0
  %647 = vmatpush1.msra.mxu0 0.0
  %648 = vmatprep.subr.mxu0 0.0
  %649 = vmatpush1.msra.mxu0 0.0
  %650 = vmatprep.subr.mxu0 0.0
  %651 = vmatpush1.msra.mxu0 0.0
  %652 = vmatprep.subr.mxu0 0.0
  %653 = vmatpush1.msra.mxu0 0.0
  %654 = vmatprep.mubr.f32.mxu0 0.0
  %655 = vmatmul.mubr.f32.gmra.mrb[0].mxu0 %v279
  %v656 = vpop.f32.mrb[0].mxu0
  %v657 = vadd.f32 0.0, %v656
  %v658 = vpop.f32.mrb[0].mxu0
  %659 = vmatprep.mubr.f32.mxu0 0.0
  %660 = vmatmul.mubr.f32.gmra.mrb[0].mxu0 %v282
  %v661 = vpop.f32.mrb[0].mxu0
  %v662 = vadd.f32 0.0, %v661
  %v663 = vpop.f32.mrb[0].mxu0
  %664 = vmatprep.mubr.f32.mxu0 0.0
  %665 = vmatmul.mubr.f32.gmra.mrb[0].mxu0 %v285
  %v666 = vpop.f32.mrb[0].mxu0
  %v667 = vadd.f32 0.0, %v666
  %v668 = vpop.f32.mrb[0].mxu0
  %669 = vmatprep.mubr.f32.mxu0 0.0
  %670 = vmatmul.mubr.f32.gmra.mrb[0].mxu0 %v288
  %v671 = vpop.f32.mrb[0].mxu0
  %v672 = vadd.f32 0.0, %v671
  %v673 = vpop.f32.mrb[0].mxu0
  %674 = vmatprep.mubr.f32.mxu0 0.0
  %675 = vmatmul.mubr.f32.gmra.mrb[0].mxu0 %v291
  %v676 = vpop.f32.mrb[0].mxu0
  %v677 = vadd.f32 0.0, %v676
  %v678 = vpop.f32.mrb[0].mxu0
  %679 = vmatprep.mubr.f32.mxu0 0.0
  %680 = vmatmul.mubr.f32.gmra.mrb[0].mxu0 %v294
  %v681 = vpop.f32.mrb[0].mxu0
  %v682 = vadd.f32 0.0, %v681
  %v683 = vpop.f32.mrb[0].mxu0
  %684 = vmatprep.mubr.f32.mxu0 0.0
  %685 = vmatmul.mubr.f32.gmra.mrb[0].mxu0 %v297
  %v686 = vpop.f32.mrb[0].mxu0
  %v687 = vadd.f32 0.0, %v686
  %v688 = vpop.f32.mrb[0].mxu0
  %689 = vmatprep.mubr.f32.mxu0 0.0
  %690 = vmatmul.mubr.f32.gmra.mrb[0].mxu0 %v300
  %v691 = vpop.f32.mrb[0].mxu0
  %v692 = vadd.f32 0.0, %v691
  %v693 = vpop.f32.mrb[0].mxu0
  %694 = vmatprep.mubr.f32.mxu0 0.0
  %695 = vmatmul.mubr.f32.gmra.mrb[0].mxu0 %v303
  %v696 = vpop.f32.mrb[0].mxu0
  %v697 = vadd.f32 0.0, %v696
  %v698 = vpop.f32.mrb[0].mxu0
  %699 = vmatprep.mubr.f32.mxu0 0.0
  %700 = vmatmul.mubr.f32.gmra.mrb[0].mxu0 %v306
  %v701 = vpop.f32.mrb[0].mxu0
  %v702 = vadd.f32 0.0, %v701
  %v703 = vpop.f32.mrb[0].mxu0
  %704 = vmatprep.mubr.f32.mxu0 0.0
  %705 = vmatmul.mubr.f32.gmra.mrb[0].mxu0 %v309
  %v706 = vpop.f32.mrb[0].mxu0
  %v707 = vadd.f32 0.0, %v706
  %v708 = vpop.f32.mrb[0].mxu0
  %709 = vmatprep.mubr.f32.mxu0 0.0
  %710 = vmatmul.mubr.f32.gmra.mrb[0].mxu0 %v312
  %v711 = vpop.f32.mrb[0].mxu0
  %v712 = vadd.f32 0.0, %v711
  %v713 = vpop.f32.mrb[0].mxu0
  %714 = vmatprep.mubr.f32.mxu0 0.0
  %715 = vmatmul.mubr.f32.gmra.mrb[0].mxu0 %v315
  %v716 = vpop.f32.mrb[0].mxu0
  %v717 = vadd.f32 0.0, %v716
  %v718 = vpop.f32.mrb[0].mxu0
  %719 = vdwg.mxu0
  %v721 = vsel %vm447, %v581, 0
  %v724 = vsel %vm447, %v582, 0
  %v727 = vsel %vm447, %v583, 0
  %v730 = vsel %vm447, %v584, 0
  %v733 = vsel %vm447, %v585, 0
  %v736 = vsel %vm447, %v586, 0
  %v739 = vsel %vm447, %v587, 0
  %v742 = vsel %vm469, %v717, 0
  %744 = vmatprep.subr.mxu0 0.0
  %745 = vmatpush1.msra.mxu0 %v657
  %746 = vmatprep.subr.mxu0 0.0
  %747 = vmatpush1.msra.mxu0 %v662
  %748 = vmatprep.subr.mxu0 0.0
  %749 = vmatpush1.msra.mxu0 %v667
  %750 = vmatprep.subr.mxu0 0.0
  %751 = vmatpush1.msra.mxu0 %v672
  %752 = vmatprep.subr.mxu0 0.0
  %753 = vmatpush1.msra.mxu0 %v677
  %754 = vmatprep.subr.mxu0 0.0
  %755 = vmatpush1.msra.mxu0 %v682
  %756 = vmatprep.subr.mxu0 0.0
  %757 = vmatpush1.msra.mxu0 %v687
  %758 = vmatprep.subr.mxu0 0.0
  %759 = vmatpush1.msra.mxu0 %v692
  %760 = vmatprep.subr.mxu0 0.0
  %761 = vmatpush1.msra.mxu0 %v697
  %762 = vmatprep.subr.mxu0 0.0
  %763 = vmatpush1.msra.mxu0 %v702
  %764 = vmatprep.subr.mxu0 0.0
  %765 = vmatpush1.msra.mxu0 %v707
  %766 = vmatprep.subr.mxu0 0.0
  %767 = vmatpush1.msra.mxu0 %v712
  %768 = vmatprep.subr.mxu0 0.0
  %769 = vmatpush1.msra.mxu0 %v742
  %770 = vmatprep.subr.mxu0 0.0
  %771 = vmatpush1.msra.mxu0 0.0
  %772 = vmatprep.subr.mxu0 0.0
  %773 = vmatpush1.msra.mxu0 0.0
  %774 = vmatprep.subr.mxu0 0.0
  %775 = vmatpush1.msra.mxu0 0.0
  %776 = vmatprep.subr.mxu0 0.0
  %777 = vmatpush1.msra.mxu0 0.0
  %778 = vmatprep.subr.mxu0 0.0
  %779 = vmatpush1.msra.mxu0 0.0
  %780 = vmatprep.subr.mxu0 0.0
  %781 = vmatpush1.msra.mxu0 0.0
  %782 = vmatprep.subr.mxu0 0.0
  %783 = vmatpush1.msra.mxu0 0.0
  %784 = vmatprep.subr.mxu0 0.0
  %785 = vmatpush1.msra.mxu0 0.0
  %786 = vmatprep.subr.mxu0 0.0
  %787 = vmatpush1.msra.mxu0 0.0
  %788 = vmatprep.subr.mxu0 0.0
  %789 = vmatpush1.msra.mxu0 0.0
  %790 = vmatprep.subr.mxu0 0.0
  %791 = vmatpush1.msra.mxu0 0.0
  %792 = vmatprep.subr.mxu0 0.0
  %793 = vmatpush1.msra.mxu0 0.0
  %794 = vmatprep.subr.mxu0 0.0
  %795 = vmatpush1.msra.mxu0 0.0
  %796 = vmatprep.subr.mxu0 0.0
  %797 = vmatpush1.msra.mxu0 0.0
  %798 = vmatprep.subr.mxu0 0.0
  %799 = vmatpush1.msra.mxu0 0.0
  %800 = vmatprep.subr.mxu0 0.0
  %801 = vmatpush1.msra.mxu0 0.0
  %802 = vmatprep.subr.mxu0 0.0
  %803 = vmatpush1.msra.mxu0 0.0
  %804 = vmatprep.subr.mxu0 0.0
  %805 = vmatpush1.msra.mxu0 0.0
  %806 = vmatprep.subr.mxu0 0.0
  %807 = vmatpush1.msra.mxu0 0.0
  %808 = vmatprep.mubr.f32.mxu0 0.0
  %809 = vmatmul.mubr.f32.gmra.mrb[0].mxu0 %v721
  %v810 = vpop.f32.mrb[0].mxu0
  %v811 = vadd.f32 0.0, %v810
  %v812 = vpop.f32.mrb[0].mxu0
  %813 = vmatprep.mubr.f32.mxu0 0.0
  %814 = vmatmul.mubr.f32.gmra.mrb[0].mxu0 %v724
  %v815 = vpop.f32.mrb[0].mxu0
  %v816 = vadd.f32 0.0, %v815
  %v817 = vpop.f32.mrb[0].mxu0
  %818 = vmatprep.mubr.f32.mxu0 0.0
  %819 = vmatmul.mubr.f32.gmra.mrb[0].mxu0 %v727
  %v820 = vpop.f32.mrb[0].mxu0
  %v821 = vadd.f32 0.0, %v820
  %v822 = vpop.f32.mrb[0].mxu0
  %823 = vmatprep.mubr.f32.mxu0 0.0
  %824 = vmatmul.mubr.f32.gmra.mrb[0].mxu0 %v730
  %v825 = vpop.f32.mrb[0].mxu0
  %v826 = vadd.f32 0.0, %v825
  %v827 = vpop.f32.mrb[0].mxu0
  %828 = vmatprep.mubr.f32.mxu0 0.0
  %829 = vmatmul.mubr.f32.gmra.mrb[0].mxu0 %v733
  %v830 = vpop.f32.mrb[0].mxu0
  %v831 = vadd.f32 0.0, %v830
  %v832 = vpop.f32.mrb[0].mxu0
  %833 = vmatprep.mubr.f32.mxu0 0.0
  %834 = vmatmul.mubr.f32.gmra.mrb[0].mxu0 %v736
  %v835 = vpop.f32.mrb[0].mxu0
  %v836 = vadd.f32 0.0, %v835
  %v837 = vpop.f32.mrb[0].mxu0
  %838 = vmatprep.mubr.f32.mxu0 0.0
  %839 = vmatmul.mubr.f32.gmra.mrb[0].mxu0 %v739
  %v840 = vpop.f32.mrb[0].mxu0
  %v841 = vadd.f32 0.0, %v840
  %v842 = vpop.f32.mrb[0].mxu0
  %843 = vdwg.mxu0
  %v844 = vadd.f32 %v573, %v811
  %v845 = vadd.f32 %v574, %v816
  %v846 = vadd.f32 %v575, %v821
  %v847 = vadd.f32 %v576, %v826
  %v848 = vadd.f32 %v577, %v831
  %v849 = vadd.f32 %v578, %v836
  %v850 = vadd.f32 %v579, %v841
  %s851 = scalar_lea.vmem %s1, 112
  %v852 = vld [vmem:[%s851] sm:$0xff]
  %v853 = vld [vmem:[%s851 + $0x8] sm:$0xff]
  %v854 = vld [vmem:[%s851 + $0x10] sm:$0xff]
  %v855 = vld [vmem:[%s851 + $0x18] sm:$0xff]
  %v856 = vld [vmem:[%s851 + $0x20] sm:$0xff]
  %v857 = vld [vmem:[%s851 + $0x28] sm:$0xff]
  %v858 = vld [vmem:[%s851 + $0x30] sm:$0x3]
  %s859 = scalar_lea.vmem %s4, 16
  %v860 = vld [vmem:[%s859] sm:$0xff]
  %861 = vmatprep.subr.mxu0 0.0
  %862 = vmatpush1.msra.mxu0 %v860
  %863 = vmatprep.subr.mxu0 0.0
  %864 = vmatpush1.msra.mxu0 0.0
  %865 = vmatprep.subr.mxu0 0.0
  %866 = vmatpush1.msra.mxu0 0.0
  %867 = vmatprep.subr.mxu0 0.0
  %868 = vmatpush1.msra.mxu0 0.0
  %869 = vmatprep.subr.mxu0 0.0
  %870 = vmatpush1.msra.mxu0 0.0
  %871 = vmatprep.subr.mxu0 0.0
  %872 = vmatpush1.msra.mxu0 0.0
  %873 = vmatprep.subr.mxu0 0.0
  %874 = vmatpush1.msra.mxu0 0.0
  %875 = vmatprep.subr.mxu0 0.0
  %876 = vmatpush1.msra.mxu0 0.0
  %877 = vmatprep.subr.mxu0 0.0
  %878 = vmatpush1.msra.mxu0 0.0
  %879 = vmatprep.subr.mxu0 0.0
  %880 = vmatpush1.msra.mxu0 0.0
  %881 = vmatprep.subr.mxu0 0.0
  %882 = vmatpush1.msra.mxu0 0.0
  %883 = vmatprep.subr.mxu0 0.0
  %884 = vmatpush1.msra.mxu0 0.0
  %885 = vmatprep.subr.mxu0 0.0
  %886 = vmatpush1.msra.mxu0 0.0
  %887 = vmatprep.subr.mxu0 0.0
  %888 = vmatpush1.msra.mxu0 0.0
  %889 = vmatprep.subr.mxu0 0.0
  %890 = vmatpush1.msra.mxu0 0.0
  %891 = vmatprep.subr.mxu0 0.0
  %892 = vmatpush1.msra.mxu0 0.0
  %893 = vmatprep.subr.mxu0 0.0
  %894 = vmatpush1.msra.mxu0 0.0
  %895 = vmatprep.subr.mxu0 0.0
  %896 = vmatpush1.msra.mxu0 0.0
  %897 = vmatprep.subr.mxu0 0.0
  %898 = vmatpush1.msra.mxu0 0.0
  %899 = vmatprep.subr.mxu0 0.0
  %900 = vmatpush1.msra.mxu0 0.0
  %901 = vmatprep.subr.mxu0 0.0
  %902 = vmatpush1.msra.mxu0 0.0
  %903 = vmatprep.subr.mxu0 0.0
  %904 = vmatpush1.msra.mxu0 0.0
  %905 = vmatprep.subr.mxu0 0.0
  %906 = vmatpush1.msra.mxu0 0.0
  %907 = vmatprep.subr.mxu0 0.0
  %908 = vmatpush1.msra.mxu0 0.0
  %909 = vmatprep.subr.mxu0 0.0
  %910 = vmatpush1.msra.mxu0 0.0
  %911 = vmatprep.subr.mxu0 0.0
  %912 = vmatpush1.msra.mxu0 0.0
  %913 = vmatprep.subr.mxu0 0.0
  %914 = vmatpush1.msra.mxu0 0.0
  %915 = vmatprep.subr.mxu0 0.0
  %916 = vmatpush1.msra.mxu0 0.0
  %917 = vmatprep.subr.mxu0 0.0
  %918 = vmatpush1.msra.mxu0 0.0
  %919 = vmatprep.subr.mxu0 0.0
  %920 = vmatpush1.msra.mxu0 0.0
  %921 = vmatprep.subr.mxu0 0.0
  %922 = vmatpush1.msra.mxu0 0.0
  %923 = vmatprep.subr.mxu0 0.0
  %924 = vmatpush1.msra.mxu0 0.0
  %925 = vmatprep.mubr.f32.mxu0 0.0
  %926 = vmatmul.mubr.f32.gmra.mrb[0].mxu0 %v279
  %v927 = vpop.f32.mrb[0].mxu0
  %v928 = vadd.f32 0.0, %v927
  %v929 = vpop.f32.mrb[0].mxu0
  %930 = vmatprep.mubr.f32.mxu0 0.0
  %931 = vmatmul.mubr.f32.gmra.mrb[0].mxu0 %v282
  %v932 = vpop.f32.mrb[0].mxu0
  %v933 = vadd.f32 0.0, %v932
  %v934 = vpop.f32.mrb[0].mxu0
  %935 = vmatprep.mubr.f32.mxu0 0.0
  %936 = vmatmul.mubr.f32.gmra.mrb[0].mxu0 %v285
  %v937 = vpop.f32.mrb[0].mxu0
  %v938 = vadd.f32 0.0, %v937
  %v939 = vpop.f32.mrb[0].mxu0
  %940 = vmatprep.mubr.f32.mxu0 0.0
  %941 = vmatmul.mubr.f32.gmra.mrb[0].mxu0 %v288
  %v942 = vpop.f32.mrb[0].mxu0
  %v943 = vadd.f32 0.0, %v942
  %v944 = vpop.f32.mrb[0].mxu0
  %945 = vmatprep.mubr.f32.mxu0 0.0
  %946 = vmatmul.mubr.f32.gmra.mrb[0].mxu0 %v291
  %v947 = vpop.f32.mrb[0].mxu0
  %v948 = vadd.f32 0.0, %v947
  %v949 = vpop.f32.mrb[0].mxu0
  %950 = vmatprep.mubr.f32.mxu0 0.0
  %951 = vmatmul.mubr.f32.gmra.mrb[0].mxu0 %v294
  %v952 = vpop.f32.mrb[0].mxu0
  %v953 = vadd.f32 0.0, %v952
  %v954 = vpop.f32.mrb[0].mxu0
  %955 = vmatprep.mubr.f32.mxu0 0.0
  %956 = vmatmul.mubr.f32.gmra.mrb[0].mxu0 %v297
  %v957 = vpop.f32.mrb[0].mxu0
  %v958 = vadd.f32 0.0, %v957
  %v959 = vpop.f32.mrb[0].mxu0
  %960 = vmatprep.mubr.f32.mxu0 0.0
  %961 = vmatmul.mubr.f32.gmra.mrb[0].mxu0 %v300
  %v962 = vpop.f32.mrb[0].mxu0
  %v963 = vadd.f32 0.0, %v962
  %v964 = vpop.f32.mrb[0].mxu0
  %965 = vmatprep.mubr.f32.mxu0 0.0
  %966 = vmatmul.mubr.f32.gmra.mrb[0].mxu0 %v303
  %v967 = vpop.f32.mrb[0].mxu0
  %v968 = vadd.f32 0.0, %v967
  %v969 = vpop.f32.mrb[0].mxu0
  %970 = vmatprep.mubr.f32.mxu0 0.0
  %971 = vmatmul.mubr.f32.gmra.mrb[0].mxu0 %v306
  %v972 = vpop.f32.mrb[0].mxu0
  %v973 = vadd.f32 0.0, %v972
  %v974 = vpop.f32.mrb[0].mxu0
  %975 = vmatprep.mubr.f32.mxu0 0.0
  %976 = vmatmul.mubr.f32.gmra.mrb[0].mxu0 %v309
  %v977 = vpop.f32.mrb[0].mxu0
  %v978 = vadd.f32 0.0, %v977
  %v979 = vpop.f32.mrb[0].mxu0
  %980 = vmatprep.mubr.f32.mxu0 0.0
  %981 = vmatmul.mubr.f32.gmra.mrb[0].mxu0 %v312
  %v982 = vpop.f32.mrb[0].mxu0
  %v983 = vadd.f32 0.0, %v982
  %v984 = vpop.f32.mrb[0].mxu0
  %985 = vmatprep.mubr.f32.mxu0 0.0
  %986 = vmatmul.mubr.f32.gmra.mrb[0].mxu0 %v315
  %v987 = vpop.f32.mrb[0].mxu0
  %v988 = vadd.f32 0.0, %v987
  %v989 = vpop.f32.mrb[0].mxu0
  %990 = vdwg.mxu0
  %v992 = vsel %vm447, %v852, 0
  %v995 = vsel %vm447, %v853, 0
  %v998 = vsel %vm447, %v854, 0
  %v1001 = vsel %vm447, %v855, 0
  %v1004 = vsel %vm447, %v856, 0
  %v1007 = vsel %vm447, %v857, 0
  %v1010 = vsel %vm447, %v858, 0
  %v1013 = vsel %vm469, %v988, 0
  %1015 = vmatprep.subr.mxu0 0.0
  %1016 = vmatpush1.msra.mxu0 %v928
  %1017 = vmatprep.subr.mxu0 0.0
  %1018 = vmatpush1.msra.mxu0 %v933
  %1019 = vmatprep.subr.mxu0 0.0
  %1020 = vmatpush1.msra.mxu0 %v938
  %1021 = vmatprep.subr.mxu0 0.0
  %1022 = vmatpush1.msra.mxu0 %v943
  %1023 = vmatprep.subr.mxu0 0.0
  %1024 = vmatpush1.msra.mxu0 %v948
  %1025 = vmatprep.subr.mxu0 0.0
  %1026 = vmatpush1.msra.mxu0 %v953
  %1027 = vmatprep.subr.mxu0 0.0
  %1028 = vmatpush1.msra.mxu0 %v958
  %1029 = vmatprep.subr.mxu0 0.0
  %1030 = vmatpush1.msra.mxu0 %v963
  %1031 = vmatprep.subr.mxu0 0.0
  %1032 = vmatpush1.msra.mxu0 %v968
  %1033 = vmatprep.subr.mxu0 0.0
  %1034 = vmatpush1.msra.mxu0 %v973
  %1035 = vmatprep.subr.mxu0 0.0
  %1036 = vmatpush1.msra.mxu0 %v978
  %1037 = vmatprep.subr.mxu0 0.0
  %1038 = vmatpush1.msra.mxu0 %v983
  %1039 = vmatprep.subr.mxu0 0.0
  %1040 = vmatpush1.msra.mxu0 %v1013
  %1041 = vmatprep.subr.mxu0 0.0
  %1042 = vmatpush1.msra.mxu0 0.0
  %1043 = vmatprep.subr.mxu0 0.0
  %1044 = vmatpush1.msra.mxu0 0.0
  %1045 = vmatprep.subr.mxu0 0.0
  %1046 = vmatpush1.msra.mxu0 0.0
  %1047 = vmatprep.subr.mxu0 0.0
  %1048 = vmatpush1.msra.mxu0 0.0
  %1049 = vmatprep.subr.mxu0 0.0
  %1050 = vmatpush1.msra.mxu0 0.0
  %1051 = vmatprep.subr.mxu0 0.0
  %1052 = vmatpush1.msra.mxu0 0.0
  %1053 = vmatprep.subr.mxu0 0.0
  %1054 = vmatpush1.msra.mxu0 0.0
  %1055 = vmatprep.subr.mxu0 0.0
  %1056 = vmatpush1.msra.mxu0 0.0
  %1057 = vmatprep.subr.mxu0 0.0
  %1058 = vmatpush1.msra.mxu0 0.0
  %1059 = vmatprep.subr.mxu0 0.0
  %1060 = vmatpush1.msra.mxu0 0.0
  %1061 = vmatprep.subr.mxu0 0.0
  %1062 = vmatpush1.msra.mxu0 0.0
  %1063 = vmatprep.subr.mxu0 0.0
  %1064 = vmatpush1.msra.mxu0 0.0
  %1065 = vmatprep.subr.mxu0 0.0
  %1066 = vmatpush1.msra.mxu0 0.0
  %1067 = vmatprep.subr.mxu0 0.0
  %1068 = vmatpush1.msra.mxu0 0.0
  %1069 = vmatprep.subr.mxu0 0.0
  %1070 = vmatpush1.msra.mxu0 0.0
  %1071 = vmatprep.subr.mxu0 0.0
  %1072 = vmatpush1.msra.mxu0 0.0
  %1073 = vmatprep.subr.mxu0 0.0
  %1074 = vmatpush1.msra.mxu0 0.0
  %1075 = vmatprep.subr.mxu0 0.0
  %1076 = vmatpush1.msra.mxu0 0.0
  %1077 = vmatprep.subr.mxu0 0.0
  %1078 = vmatpush1.msra.mxu0 0.0
  %1079 = vmatprep.mubr.f32.mxu0 0.0
  %1080 = vmatmul.mubr.f32.gmra.mrb[0].mxu0 %v992
  %v1081 = vpop.f32.mrb[0].mxu0
  %v1082 = vadd.f32 0.0, %v1081
  %v1083 = vpop.f32.mrb[0].mxu0
  %1084 = vmatprep.mubr.f32.mxu0 0.0
  %1085 = vmatmul.mubr.f32.gmra.mrb[0].mxu0 %v995
  %v1086 = vpop.f32.mrb[0].mxu0
  %v1087 = vadd.f32 0.0, %v1086
  %v1088 = vpop.f32.mrb[0].mxu0
  %1089 = vmatprep.mubr.f32.mxu0 0.0
  %1090 = vmatmul.mubr.f32.gmra.mrb[0].mxu0 %v998
  %v1091 = vpop.f32.mrb[0].mxu0
  %v1092 = vadd.f32 0.0, %v1091
  %v1093 = vpop.f32.mrb[0].mxu0
  %1094 = vmatprep.mubr.f32.mxu0 0.0
  %1095 = vmatmul.mubr.f32.gmra.mrb[0].mxu0 %v1001
  %v1096 = vpop.f32.mrb[0].mxu0
  %v1097 = vadd.f32 0.0, %v1096
  %v1098 = vpop.f32.mrb[0].mxu0
  %1099 = vmatprep.mubr.f32.mxu0 0.0
  %1100 = vmatmul.mubr.f32.gmra.mrb[0].mxu0 %v1004
  %v1101 = vpop.f32.mrb[0].mxu0
  %v1102 = vadd.f32 0.0, %v1101
  %v1103 = vpop.f32.mrb[0].mxu0
  %1104 = vmatprep.mubr.f32.mxu0 0.0
  %1105 = vmatmul.mubr.f32.gmra.mrb[0].mxu0 %v1007
  %v1106 = vpop.f32.mrb[0].mxu0
  %v1107 = vadd.f32 0.0, %v1106
  %v1108 = vpop.f32.mrb[0].mxu0
  %1109 = vmatprep.mubr.f32.mxu0 0.0
  %1110 = vmatmul.mubr.f32.gmra.mrb[0].mxu0 %v1010
  %v1111 = vpop.f32.mrb[0].mxu0
  %v1112 = vadd.f32 0.0, %v1111
  %v1113 = vpop.f32.mrb[0].mxu0
  %1114 = vdwg.mxu0
  %v1115 = vadd.f32 %v844, %v1082
  %v1116 = vadd.f32 %v845, %v1087
  %v1117 = vadd.f32 %v846, %v1092
  %v1118 = vadd.f32 %v847, %v1097
  %v1119 = vadd.f32 %v848, %v1102
  %v1120 = vadd.f32 %v849, %v1107
  %v1121 = vadd.f32 %v850, %v1112
  %s1122 = scalar_lea.vmem %s1, 168
  %v1123 = vld [vmem:[%s1122] sm:$0xff]
  %v1124 = vld [vmem:[%s1122 + $0x8] sm:$0xff]
  %v1125 = vld [vmem:[%s1122 + $0x10] sm:$0xff]
  %v1126 = vld [vmem:[%s1122 + $0x18] sm:$0xff]
  %v1127 = vld [vmem:[%s1122 + $0x20] sm:$0xff]
  %v1128 = vld [vmem:[%s1122 + $0x28] sm:$0xff]
  %v1129 = vld [vmem:[%s1122 + $0x30] sm:$0x3]
  %s1130 = scalar_lea.vmem %s4, 24
  %v1131 = vld [vmem:[%s1130] sm:$0xff]
  %1132 = vmatprep.subr.mxu0 0.0
  %1133 = vmatpush1.msra.mxu0 %v1131
  %1134 = vmatprep.subr.mxu0 0.0
  %1135 = vmatpush1.msra.mxu0 0.0
  %1136 = vmatprep.subr.mxu0 0.0
  %1137 = vmatpush1.msra.mxu0 0.0
  %1138 = vmatprep.subr.mxu0 0.0
  %1139 = vmatpush1.msra.mxu0 0.0
  %1140 = vmatprep.subr.mxu0 0.0
  %1141 = vmatpush1.msra.mxu0 0.0
  %1142 = vmatprep.subr.mxu0 0.0
  %1143 = vmatpush1.msra.mxu0 0.0
  %1144 = vmatprep.subr.mxu0 0.0
  %1145 = vmatpush1.msra.mxu0 0.0
  %1146 = vmatprep.subr.mxu0 0.0
  %1147 = vmatpush1.msra.mxu0 0.0
  %1148 = vmatprep.subr.mxu0 0.0
  %1149 = vmatpush1.msra.mxu0 0.0
  %1150 = vmatprep.subr.mxu0 0.0
  %1151 = vmatpush1.msra.mxu0 0.0
  %1152 = vmatprep.subr.mxu0 0.0
  %1153 = vmatpush1.msra.mxu0 0.0
  %1154 = vmatprep.subr.mxu0 0.0
  %1155 = vmatpush1.msra.mxu0 0.0
  %1156 = vmatprep.subr.mxu0 0.0
  %1157 = vmatpush1.msra.mxu0 0.0
  %1158 = vmatprep.subr.mxu0 0.0
  %1159 = vmatpush1.msra.mxu0 0.0
  %1160 = vmatprep.subr.mxu0 0.0
  %1161 = vmatpush1.msra.mxu0 0.0
  %1162 = vmatprep.subr.mxu0 0.0
  %1163 = vmatpush1.msra.mxu0 0.0
  %1164 = vmatprep.subr.mxu0 0.0
  %1165 = vmatpush1.msra.mxu0 0.0
  %1166 = vmatprep.subr.mxu0 0.0
  %1167 = vmatpush1.msra.mxu0 0.0
  %1168 = vmatprep.subr.mxu0 0.0
  %1169 = vmatpush1.msra.mxu0 0.0
  %1170 = vmatprep.subr.mxu0 0.0
  %1171 = vmatpush1.msra.mxu0 0.0
  %1172 = vmatprep.subr.mxu0 0.0
  %1173 = vmatpush1.msra.mxu0 0.0
  %1174 = vmatprep.subr.mxu0 0.0
  %1175 = vmatpush1.msra.mxu0 0.0
  %1176 = vmatprep.subr.mxu0 0.0
  %1177 = vmatpush1.msra.mxu0 0.0
  %1178 = vmatprep.subr.mxu0 0.0
  %1179 = vmatpush1.msra.mxu0 0.0
  %1180 = vmatprep.subr.mxu0 0.0
  %1181 = vmatpush1.msra.mxu0 0.0
  %1182 = vmatprep.subr.mxu0 0.0
  %1183 = vmatpush1.msra.mxu0 0.0
  %1184 = vmatprep.subr.mxu0 0.0
  %1185 = vmatpush1.msra.mxu0 0.0
  %1186 = vmatprep.subr.mxu0 0.0
  %1187 = vmatpush1.msra.mxu0 0.0
  %1188 = vmatprep.subr.mxu0 0.0
  %1189 = vmatpush1.msra.mxu0 0.0
  %1190 = vmatprep.subr.mxu0 0.0
  %1191 = vmatpush1.msra.mxu0 0.0
  %1192 = vmatprep.subr.mxu0 0.0
  %1193 = vmatpush1.msra.mxu0 0.0
  %1194 = vmatprep.subr.mxu0 0.0
  %1195 = vmatpush1.msra.mxu0 0.0
  %1196 = vmatprep.mubr.f32.mxu0 0.0
  %1197 = vmatmul.mubr.f32.gmra.mrb[0].mxu0 %v279
  %v1198 = vpop.f32.mrb[0].mxu0
  %v1199 = vadd.f32 0.0, %v1198
  %v1200 = vpop.f32.mrb[0].mxu0
  %1201 = vmatprep.mubr.f32.mxu0 0.0
  %1202 = vmatmul.mubr.f32.gmra.mrb[0].mxu0 %v282
  %v1203 = vpop.f32.mrb[0].mxu0
  %v1204 = vadd.f32 0.0, %v1203
  %v1205 = vpop.f32.mrb[0].mxu0
  %1206 = vmatprep.mubr.f32.mxu0 0.0
  %1207 = vmatmul.mubr.f32.gmra.mrb[0].mxu0 %v285
  %v1208 = vpop.f32.mrb[0].mxu0
  %v1209 = vadd.f32 0.0, %v1208
  %v1210 = vpop.f32.mrb[0].mxu0
  %1211 = vmatprep.mubr.f32.mxu0 0.0
  %1212 = vmatmul.mubr.f32.gmra.mrb[0].mxu0 %v288
  %v1213 = vpop.f32.mrb[0].mxu0
  %v1214 = vadd.f32 0.0, %v1213
  %v1215 = vpop.f32.mrb[0].mxu0
  %1216 = vmatprep.mubr.f32.mxu0 0.0
  %1217 = vmatmul.mubr.f32.gmra.mrb[0].mxu0 %v291
  %v1218 = vpop.f32.mrb[0].mxu0
  %v1219 = vadd.f32 0.0, %v1218
  %v1220 = vpop.f32.mrb[0].mxu0
  %1221 = vmatprep.mubr.f32.mxu0 0.0
  %1222 = vmatmul.mubr.f32.gmra.mrb[0].mxu0 %v294
  %v1223 = vpop.f32.mrb[0].mxu0
  %v1224 = vadd.f32 0.0, %v1223
  %v1225 = vpop.f32.mrb[0].mxu0
  %1226 = vmatprep.mubr.f32.mxu0 0.0
  %1227 = vmatmul.mubr.f32.gmra.mrb[0].mxu0 %v297
  %v1228 = vpop.f32.mrb[0].mxu0
  %v1229 = vadd.f32 0.0, %v1228
  %v1230 = vpop.f32.mrb[0].mxu0
  %1231 = vmatprep.mubr.f32.mxu0 0.0
  %1232 = vmatmul.mubr.f32.gmra.mrb[0].mxu0 %v300
  %v1233 = vpop.f32.mrb[0].mxu0
  %v1234 = vadd.f32 0.0, %v1233
  %v1235 = vpop.f32.mrb[0].mxu0
  %1236 = vmatprep.mubr.f32.mxu0 0.0
  %1237 = vmatmul.mubr.f32.gmra.mrb[0].mxu0 %v303
  %v1238 = vpop.f32.mrb[0].mxu0
  %v1239 = vadd.f32 0.0, %v1238
  %v1240 = vpop.f32.mrb[0].mxu0
  %1241 = vmatprep.mubr.f32.mxu0 0.0
  %1242 = vmatmul.mubr.f32.gmra.mrb[0].mxu0 %v306
  %v1243 = vpop.f32.mrb[0].mxu0
  %v1244 = vadd.f32 0.0, %v1243
  %v1245 = vpop.f32.mrb[0].mxu0
  %1246 = vmatprep.mubr.f32.mxu0 0.0
  %1247 = vmatmul.mubr.f32.gmra.mrb[0].mxu0 %v309
  %v1248 = vpop.f32.mrb[0].mxu0
  %v1249 = vadd.f32 0.0, %v1248
  %v1250 = vpop.f32.mrb[0].mxu0
  %1251 = vmatprep.mubr.f32.mxu0 0.0
  %1252 = vmatmul.mubr.f32.gmra.mrb[0].mxu0 %v312
  %v1253 = vpop.f32.mrb[0].mxu0
  %v1254 = vadd.f32 0.0, %v1253
  %v1255 = vpop.f32.mrb[0].mxu0
  %1256 = vmatprep.mubr.f32.mxu0 0.0
  %1257 = vmatmul.mubr.f32.gmra.mrb[0].mxu0 %v315
  %v1258 = vpop.f32.mrb[0].mxu0
  %v1259 = vadd.f32 0.0, %v1258
  %v1260 = vpop.f32.mrb[0].mxu0
  %1261 = vdwg.mxu0
  %v1263 = vsel %vm447, %v1123, 0
  %v1266 = vsel %vm447, %v1124, 0
  %v1269 = vsel %vm447, %v1125, 0
  %v1272 = vsel %vm447, %v1126, 0
  %v1275 = vsel %vm447, %v1127, 0
  %v1278 = vsel %vm447, %v1128, 0
  %v1281 = vsel %vm447, %v1129, 0
  %v1284 = vsel %vm469, %v1259, 0
  %1286 = vmatprep.subr.mxu0 0.0
  %1287 = vmatpush1.msra.mxu0 %v1199
  %1288 = vmatprep.subr.mxu0 0.0
  %1289 = vmatpush1.msra.mxu0 %v1204
  %1290 = vmatprep.subr.mxu0 0.0
  %1291 = vmatpush1.msra.mxu0 %v1209
  %1292 = vmatprep.subr.mxu0 0.0
  %1293 = vmatpush1.msra.mxu0 %v1214
  %1294 = vmatprep.subr.mxu0 0.0
  %1295 = vmatpush1.msra.mxu0 %v1219
  %1296 = vmatprep.subr.mxu0 0.0
  %1297 = vmatpush1.msra.mxu0 %v1224
  %1298 = vmatprep.subr.mxu0 0.0
  %1299 = vmatpush1.msra.mxu0 %v1229
  %1300 = vmatprep.subr.mxu0 0.0
  %1301 = vmatpush1.msra.mxu0 %v1234
  %1302 = vmatprep.subr.mxu0 0.0
  %1303 = vmatpush1.msra.mxu0 %v1239
  %1304 = vmatprep.subr.mxu0 0.0
  %1305 = vmatpush1.msra.mxu0 %v1244
  %1306 = vmatprep.subr.mxu0 0.0
  %1307 = vmatpush1.msra.mxu0 %v1249
  %1308 = vmatprep.subr.mxu0 0.0
  %1309 = vmatpush1.msra.mxu0 %v1254
  %1310 = vmatprep.subr.mxu0 0.0
  %1311 = vmatpush1.msra.mxu0 %v1284
  %1312 = vmatprep.subr.mxu0 0.0
  %1313 = vmatpush1.msra.mxu0 0.0
  %1314 = vmatprep.subr.mxu0 0.0
  %1315 = vmatpush1.msra.mxu0 0.0
  %1316 = vmatprep.subr.mxu0 0.0
  %1317 = vmatpush1.msra.mxu0 0.0
  %1318 = vmatprep.subr.mxu0 0.0
  %1319 = vmatpush1.msra.mxu0 0.0
  %1320 = vmatprep.subr.mxu0 0.0
  %1321 = vmatpush1.msra.mxu0 0.0
  %1322 = vmatprep.subr.mxu0 0.0
  %1323 = vmatpush1.msra.mxu0 0.0
  %1324 = vmatprep.subr.mxu0 0.0
  %1325 = vmatpush1.msra.mxu0 0.0
  %1326 = vmatprep.subr.mxu0 0.0
  %1327 = vmatpush1.msra.mxu0 0.0
  %1328 = vmatprep.subr.mxu0 0.0
  %1329 = vmatpush1.msra.mxu0 0.0
  %1330 = vmatprep.subr.mxu0 0.0
  %1331 = vmatpush1.msra.mxu0 0.0
  %1332 = vmatprep.subr.mxu0 0.0
  %1333 = vmatpush1.msra.mxu0 0.0
  %1334 = vmatprep.subr.mxu0 0.0
  %1335 = vmatpush1.msra.mxu0 0.0
  %1336 = vmatprep.subr.mxu0 0.0
  %1337 = vmatpush1.msra.mxu0 0.0
  %1338 = vmatprep.subr.mxu0 0.0
  %1339 = vmatpush1.msra.mxu0 0.0
  %1340 = vmatprep.subr.mxu0 0.0
  %1341 = vmatpush1.msra.mxu0 0.0
  %1342 = vmatprep.subr.mxu0 0.0
  %1343 = vmatpush1.msra.mxu0 0.0
  %1344 = vmatprep.subr.mxu0 0.0
  %1345 = vmatpush1.msra.mxu0 0.0
  %1346 = vmatprep.subr.mxu0 0.0
  %1347 = vmatpush1.msra.mxu0 0.0
  %1348 = vmatprep.subr.mxu0 0.0
  %1349 = vmatpush1.msra.mxu0 0.0
  %1350 = vmatprep.mubr.f32.mxu0 0.0
  %1351 = vmatmul.mubr.f32.gmra.mrb[0].mxu0 %v1263
  %v1352 = vpop.f32.mrb[0].mxu0
  %v1353 = vadd.f32 0.0, %v1352
  %v1354 = vpop.f32.mrb[0].mxu0
  %1355 = vmatprep.mubr.f32.mxu0 0.0
  %1356 = vmatmul.mubr.f32.gmra.mrb[0].mxu0 %v1266
  %v1357 = vpop.f32.mrb[0].mxu0
  %v1358 = vadd.f32 0.0, %v1357
  %v1359 = vpop.f32.mrb[0].mxu0
  %1360 = vmatprep.mubr.f32.mxu0 0.0
  %1361 = vmatmul.mubr.f32.gmra.mrb[0].mxu0 %v1269
  %v1362 = vpop.f32.mrb[0].mxu0
  %v1363 = vadd.f32 0.0, %v1362
  %v1364 = vpop.f32.mrb[0].mxu0
  %1365 = vmatprep.mubr.f32.mxu0 0.0
  %1366 = vmatmul.mubr.f32.gmra.mrb[0].mxu0 %v1272
  %v1367 = vpop.f32.mrb[0].mxu0
  %v1368 = vadd.f32 0.0, %v1367
  %v1369 = vpop.f32.mrb[0].mxu0
  %1370 = vmatprep.mubr.f32.mxu0 0.0
  %1371 = vmatmul.mubr.f32.gmra.mrb[0].mxu0 %v1275
  %v1372 = vpop.f32.mrb[0].mxu0
  %v1373 = vadd.f32 0.0, %v1372
  %v1374 = vpop.f32.mrb[0].mxu0
  %1375 = vmatprep.mubr.f32.mxu0 0.0
  %1376 = vmatmul.mubr.f32.gmra.mrb[0].mxu0 %v1278
  %v1377 = vpop.f32.mrb[0].mxu0
  %v1378 = vadd.f32 0.0, %v1377
  %v1379 = vpop.f32.mrb[0].mxu0
  %1380 = vmatprep.mubr.f32.mxu0 0.0
  %1381 = vmatmul.mubr.f32.gmra.mrb[0].mxu0 %v1281
  %v1382 = vpop.f32.mrb[0].mxu0
  %v1383 = vadd.f32 0.0, %v1382
  %v1384 = vpop.f32.mrb[0].mxu0
  %1385 = vdwg.mxu0
  %v1386 = vadd.f32 %v1115, %v1353
  %v1387 = vadd.f32 %v1116, %v1358
  %v1388 = vadd.f32 %v1117, %v1363
  %v1389 = vadd.f32 %v1118, %v1368
  %v1390 = vadd.f32 %v1119, %v1373
  %v1391 = vadd.f32 %v1120, %v1378
  %v1392 = vadd.f32 %v1121, %v1383
  %s1393 = scalar_lea.vmem %s1, 224
  %v1394 = vld [vmem:[%s1393] sm:$0xff]
  %v1395 = vld [vmem:[%s1393 + $0x8] sm:$0xff]
  %v1396 = vld [vmem:[%s1393 + $0x10] sm:$0xff]
  %v1397 = vld [vmem:[%s1393 + $0x18] sm:$0xff]
  %v1398 = vld [vmem:[%s1393 + $0x20] sm:$0xff]
  %v1399 = vld [vmem:[%s1393 + $0x28] sm:$0xff]
  %v1400 = vld [vmem:[%s1393 + $0x30] sm:$0x3]
  %s1401 = scalar_lea.vmem %s4, 32
  %v1402 = vld [vmem:[%s1401] sm:$0xff]
  %1403 = vmatprep.subr.mxu0 0.0
  %1404 = vmatpush1.msra.mxu0 %v1402
  %1405 = vmatprep.subr.mxu0 0.0
  %1406 = vmatpush1.msra.mxu0 0.0
  %1407 = vmatprep.subr.mxu0 0.0
  %1408 = vmatpush1.msra.mxu0 0.0
  %1409 = vmatprep.subr.mxu0 0.0
  %1410 = vmatpush1.msra.mxu0 0.0
  %1411 = vmatprep.subr.mxu0 0.0
  %1412 = vmatpush1.msra.mxu0 0.0
  %1413 = vmatprep.subr.mxu0 0.0
  %1414 = vmatpush1.msra.mxu0 0.0
  %1415 = vmatprep.subr.mxu0 0.0
  %1416 = vmatpush1.msra.mxu0 0.0
  %1417 = vmatprep.subr.mxu0 0.0
  %1418 = vmatpush1.msra.mxu0 0.0
  %1419 = vmatprep.subr.mxu0 0.0
  %1420 = vmatpush1.msra.mxu0 0.0
  %1421 = vmatprep.subr.mxu0 0.0
  %1422 = vmatpush1.msra.mxu0 0.0
  %1423 = vmatprep.subr.mxu0 0.0
  %1424 = vmatpush1.msra.mxu0 0.0
  %1425 = vmatprep.subr.mxu0 0.0
  %1426 = vmatpush1.msra.mxu0 0.0
  %1427 = vmatprep.subr.mxu0 0.0
  %1428 = vmatpush1.msra.mxu0 0.0
  %1429 = vmatprep.subr.mxu0 0.0
  %1430 = vmatpush1.msra.mxu0 0.0
  %1431 = vmatprep.subr.mxu0 0.0
  %1432 = vmatpush1.msra.mxu0 0.0
  %1433 = vmatprep.subr.mxu0 0.0
  %1434 = vmatpush1.msra.mxu0 0.0
  %1435 = vmatprep.subr.mxu0 0.0
  %1436 = vmatpush1.msra.mxu0 0.0
  %1437 = vmatprep.subr.mxu0 0.0
  %1438 = vmatpush1.msra.mxu0 0.0
  %1439 = vmatprep.subr.mxu0 0.0
  %1440 = vmatpush1.msra.mxu0 0.0
  %1441 = vmatprep.subr.mxu0 0.0
  %1442 = vmatpush1.msra.mxu0 0.0
  %1443 = vmatprep.subr.mxu0 0.0
  %1444 = vmatpush1.msra.mxu0 0.0
  %1445 = vmatprep.subr.mxu0 0.0
  %1446 = vmatpush1.msra.mxu0 0.0
  %1447 = vmatprep.subr.mxu0 0.0
  %1448 = vmatpush1.msra.mxu0 0.0
  %1449 = vmatprep.subr.mxu0 0.0
  %1450 = vmatpush1.msra.mxu0 0.0
  %1451 = vmatprep.subr.mxu0 0.0
  %1452 = vmatpush1.msra.mxu0 0.0
  %1453 = vmatprep.subr.mxu0 0.0
  %1454 = vmatpush1.msra.mxu0 0.0
  %1455 = vmatprep.subr.mxu0 0.0
  %1456 = vmatpush1.msra.mxu0 0.0
  %1457 = vmatprep.subr.mxu0 0.0
  %1458 = vmatpush1.msra.mxu0 0.0
  %1459 = vmatprep.subr.mxu0 0.0
  %1460 = vmatpush1.msra.mxu0 0.0
  %1461 = vmatprep.subr.mxu0 0.0
  %1462 = vmatpush1.msra.mxu0 0.0
  %1463 = vmatprep.subr.mxu0 0.0
  %1464 = vmatpush1.msra.mxu0 0.0
  %1465 = vmatprep.subr.mxu0 0.0
  %1466 = vmatpush1.msra.mxu0 0.0
  %1467 = vmatprep.mubr.f32.mxu0 0.0
  %1468 = vmatmul.mubr.f32.gmra.mrb[0].mxu0 %v279
  %v1469 = vpop.f32.mrb[0].mxu0
  %v1470 = vadd.f32 0.0, %v1469
  %v1471 = vpop.f32.mrb[0].mxu0
  %1472 = vmatprep.mubr.f32.mxu0 0.0
  %1473 = vmatmul.mubr.f32.gmra.mrb[0].mxu0 %v282
  %v1474 = vpop.f32.mrb[0].mxu0
  %v1475 = vadd.f32 0.0, %v1474
  %v1476 = vpop.f32.mrb[0].mxu0
  %1477 = vmatprep.mubr.f32.mxu0 0.0
  %1478 = vmatmul.mubr.f32.gmra.mrb[0].mxu0 %v285
  %v1479 = vpop.f32.mrb[0].mxu0
  %v1480 = vadd.f32 0.0, %v1479
  %v1481 = vpop.f32.mrb[0].mxu0
  %1482 = vmatprep.mubr.f32.mxu0 0.0
  %1483 = vmatmul.mubr.f32.gmra.mrb[0].mxu0 %v288
  %v1484 = vpop.f32.mrb[0].mxu0
  %v1485 = vadd.f32 0.0, %v1484
  %v1486 = vpop.f32.mrb[0].mxu0
  %1487 = vmatprep.mubr.f32.mxu0 0.0
  %1488 = vmatmul.mubr.f32.gmra.mrb[0].mxu0 %v291
  %v1489 = vpop.f32.mrb[0].mxu0
  %v1490 = vadd.f32 0.0, %v1489
  %v1491 = vpop.f32.mrb[0].mxu0
  %1492 = vmatprep.mubr.f32.mxu0 0.0
  %1493 = vmatmul.mubr.f32.gmra.mrb[0].mxu0 %v294
  %v1494 = vpop.f32.mrb[0].mxu0
  %v1495 = vadd.f32 0.0, %v1494
  %v1496 = vpop.f32.mrb[0].mxu0
  %1497 = vmatprep.mubr.f32.mxu0 0.0
  %1498 = vmatmul.mubr.f32.gmra.mrb[0].mxu0 %v297
  %v1499 = vpop.f32.mrb[0].mxu0
  %v1500 = vadd.f32 0.0, %v1499
  %v1501 = vpop.f32.mrb[0].mxu0
  %1502 = vmatprep.mubr.f32.mxu0 0.0
  %1503 = vmatmul.mubr.f32.gmra.mrb[0].mxu0 %v300
  %v1504 = vpop.f32.mrb[0].mxu0
  %v1505 = vadd.f32 0.0, %v1504
  %v1506 = vpop.f32.mrb[0].mxu0
  %1507 = vmatprep.mubr.f32.mxu0 0.0
  %1508 = vmatmul.mubr.f32.gmra.mrb[0].mxu0 %v303
  %v1509 = vpop.f32.mrb[0].mxu0
  %v1510 = vadd.f32 0.0, %v1509
  %v1511 = vpop.f32.mrb[0].mxu0
  %1512 = vmatprep.mubr.f32.mxu0 0.0
  %1513 = vmatmul.mubr.f32.gmra.mrb[0].mxu0 %v306
  %v1514 = vpop.f32.mrb[0].mxu0
  %v1515 = vadd.f32 0.0, %v1514
  %v1516 = vpop.f32.mrb[0].mxu0
  %1517 = vmatprep.mubr.f32.mxu0 0.0
  %1518 = vmatmul.mubr.f32.gmra.mrb[0].mxu0 %v309
  %v1519 = vpop.f32.mrb[0].mxu0
  %v1520 = vadd.f32 0.0, %v1519
  %v1521 = vpop.f32.mrb[0].mxu0
  %1522 = vmatprep.mubr.f32.mxu0 0.0
  %1523 = vmatmul.mubr.f32.gmra.mrb[0].mxu0 %v312
  %v1524 = vpop.f32.mrb[0].mxu0
  %v1525 = vadd.f32 0.0, %v1524
  %v1526 = vpop.f32.mrb[0].mxu0
  %1527 = vmatprep.mubr.f32.mxu0 0.0
  %1528 = vmatmul.mubr.f32.gmra.mrb[0].mxu0 %v315
  %v1529 = vpop.f32.mrb[0].mxu0
  %v1530 = vadd.f32 0.0, %v1529
  %v1531 = vpop.f32.mrb[0].mxu0
  %1532 = vdwg.mxu0
  %v1534 = vsel %vm447, %v1394, 0
  %v1537 = vsel %vm447, %v1395, 0
  %v1540 = vsel %vm447, %v1396, 0
  %v1543 = vsel %vm447, %v1397, 0
  %v1546 = vsel %vm447, %v1398, 0
  %v1549 = vsel %vm447, %v1399, 0
  %v1552 = vsel %vm447, %v1400, 0
  %v1555 = vsel %vm469, %v1530, 0
  %1557 = vmatprep.subr.mxu0 0.0
  %1558 = vmatpush1.msra.mxu0 %v1470
  %1559 = vmatprep.subr.mxu0 0.0
  %1560 = vmatpush1.msra.mxu0 %v1475
  %1561 = vmatprep.subr.mxu0 0.0
  %1562 = vmatpush1.msra.mxu0 %v1480
  %1563 = vmatprep.subr.mxu0 0.0
  %1564 = vmatpush1.msra.mxu0 %v1485
  %1565 = vmatprep.subr.mxu0 0.0
  %1566 = vmatpush1.msra.mxu0 %v1490
  %1567 = vmatprep.subr.mxu0 0.0
  %1568 = vmatpush1.msra.mxu0 %v1495
  %1569 = vmatprep.subr.mxu0 0.0
  %1570 = vmatpush1.msra.mxu0 %v1500
  %1571 = vmatprep.subr.mxu0 0.0
  %1572 = vmatpush1.msra.mxu0 %v1505
  %1573 = vmatprep.subr.mxu0 0.0
  %1574 = vmatpush1.msra.mxu0 %v1510
  %1575 = vmatprep.subr.mxu0 0.0
  %1576 = vmatpush1.msra.mxu0 %v1515
  %1577 = vmatprep.subr.mxu0 0.0
  %1578 = vmatpush1.msra.mxu0 %v1520
  %1579 = vmatprep.subr.mxu0 0.0
  %1580 = vmatpush1.msra.mxu0 %v1525
  %1581 = vmatprep.subr.mxu0 0.0
  %1582 = vmatpush1.msra.mxu0 %v1555
  %1583 = vmatprep.subr.mxu0 0.0
  %1584 = vmatpush1.msra.mxu0 0.0
  %1585 = vmatprep.subr.mxu0 0.0
  %1586 = vmatpush1.msra.mxu0 0.0
  %1587 = vmatprep.subr.mxu0 0.0
  %1588 = vmatpush1.msra.mxu0 0.0
  %1589 = vmatprep.subr.mxu0 0.0
  %1590 = vmatpush1.msra.mxu0 0.0
  %1591 = vmatprep.subr.mxu0 0.0
  %1592 = vmatpush1.msra.mxu0 0.0
  %1593 = vmatprep.subr.mxu0 0.0
  %1594 = vmatpush1.msra.mxu0 0.0
  %1595 = vmatprep.subr.mxu0 0.0
  %1596 = vmatpush1.msra.mxu0 0.0
  %1597 = vmatprep.subr.mxu0 0.0
  %1598 = vmatpush1.msra.mxu0 0.0
  %1599 = vmatprep.subr.mxu0 0.0
  %1600 = vmatpush1.msra.mxu0 0.0
  %1601 = vmatprep.subr.mxu0 0.0
  %1602 = vmatpush1.msra.mxu0 0.0
  %1603 = vmatprep.subr.mxu0 0.0
  %1604 = vmatpush1.msra.mxu0 0.0
  %1605 = vmatprep.subr.mxu0 0.0
  %1606 = vmatpush1.msra.mxu0 0.0
  %1607 = vmatprep.subr.mxu0 0.0
  %1608 = vmatpush1.msra.mxu0 0.0
  %1609 = vmatprep.subr.mxu0 0.0
  %1610 = vmatpush1.msra.mxu0 0.0
  %1611 = vmatprep.subr.mxu0 0.0
  %1612 = vmatpush1.msra.mxu0 0.0
  %1613 = vmatprep.subr.mxu0 0.0
  %1614 = vmatpush1.msra.mxu0 0.0
  %1615 = vmatprep.subr.mxu0 0.0
  %1616 = vmatpush1.msra.mxu0 0.0
  %1617 = vmatprep.subr.mxu0 0.0
  %1618 = vmatpush1.msra.mxu0 0.0
  %1619 = vmatprep.subr.mxu0 0.0
  %1620 = vmatpush1.msra.mxu0 0.0
  %1621 = vmatprep.mubr.f32.mxu0 0.0
  %1622 = vmatmul.mubr.f32.gmra.mrb[0].mxu0 %v1534
  %v1623 = vpop.f32.mrb[0].mxu0
  %v1624 = vadd.f32 0.0, %v1623
  %v1625 = vpop.f32.mrb[0].mxu0
  %1626 = vmatprep.mubr.f32.mxu0 0.0
  %1627 = vmatmul.mubr.f32.gmra.mrb[0].mxu0 %v1537
  %v1628 = vpop.f32.mrb[0].mxu0
  %v1629 = vadd.f32 0.0, %v1628
  %v1630 = vpop.f32.mrb[0].mxu0
  %1631 = vmatprep.mubr.f32.mxu0 0.0
  %1632 = vmatmul.mubr.f32.gmra.mrb[0].mxu0 %v1540
  %v1633 = vpop.f32.mrb[0].mxu0
  %v1634 = vadd.f32 0.0, %v1633
  %v1635 = vpop.f32.mrb[0].mxu0
  %1636 = vmatprep.mubr.f32.mxu0 0.0
  %1637 = vmatmul.mubr.f32.gmra.mrb[0].mxu0 %v1543
  %v1638 = vpop.f32.mrb[0].mxu0
  %v1639 = vadd.f32 0.0, %v1638
  %v1640 = vpop.f32.mrb[0].mxu0
  %1641 = vmatprep.mubr.f32.mxu0 0.0
  %1642 = vmatmul.mubr.f32.gmra.mrb[0].mxu0 %v1546
  %v1643 = vpop.f32.mrb[0].mxu0
  %v1644 = vadd.f32 0.0, %v1643
  %v1645 = vpop.f32.mrb[0].mxu0
  %1646 = vmatprep.mubr.f32.mxu0 0.0
  %1647 = vmatmul.mubr.f32.gmra.mrb[0].mxu0 %v1549
  %v1648 = vpop.f32.mrb[0].mxu0
  %v1649 = vadd.f32 0.0, %v1648
  %v1650 = vpop.f32.mrb[0].mxu0
  %1651 = vmatprep.mubr.f32.mxu0 0.0
  %1652 = vmatmul.mubr.f32.gmra.mrb[0].mxu0 %v1552
  %v1653 = vpop.f32.mrb[0].mxu0
  %v1654 = vadd.f32 0.0, %v1653
  %v1655 = vpop.f32.mrb[0].mxu0
  %1656 = vdwg.mxu0
  %v1657 = vadd.f32 %v1386, %v1624
  %v1658 = vadd.f32 %v1387, %v1629
  %v1659 = vadd.f32 %v1388, %v1634
  %v1660 = vadd.f32 %v1389, %v1639
  %v1661 = vadd.f32 %v1390, %v1644
  %v1662 = vadd.f32 %v1391, %v1649
  %v1663 = vadd.f32 %v1392, %v1654
  %s1664 = scalar_lea.vmem %s1, 280
  %v1665 = vld [vmem:[%s1664] sm:$0xff]
  %v1666 = vld [vmem:[%s1664 + $0x8] sm:$0xff]
  %v1667 = vld [vmem:[%s1664 + $0x10] sm:$0xff]
  %v1668 = vld [vmem:[%s1664 + $0x18] sm:$0xff]
  %v1669 = vld [vmem:[%s1664 + $0x20] sm:$0xff]
  %v1670 = vld [vmem:[%s1664 + $0x28] sm:$0xff]
  %v1671 = vld [vmem:[%s1664 + $0x30] sm:$0x3]
  %s1672 = scalar_lea.vmem %s4, 40
  %v1673 = vld [vmem:[%s1672] sm:$0xff]
  %1674 = vmatprep.subr.mxu0 0.0
  %1675 = vmatpush1.msra.mxu0 %v1673
  %1676 = vmatprep.subr.mxu0 0.0
  %1677 = vmatpush1.msra.mxu0 0.0
  %1678 = vmatprep.subr.mxu0 0.0
  %1679 = vmatpush1.msra.mxu0 0.0
  %1680 = vmatprep.subr.mxu0 0.0
  %1681 = vmatpush1.msra.mxu0 0.0
  %1682 = vmatprep.subr.mxu0 0.0
  %1683 = vmatpush1.msra.mxu0 0.0
  %1684 = vmatprep.subr.mxu0 0.0
  %1685 = vmatpush1.msra.mxu0 0.0
  %1686 = vmatprep.subr.mxu0 0.0
  %1687 = vmatpush1.msra.mxu0 0.0
  %1688 = vmatprep.subr.mxu0 0.0
  %1689 = vmatpush1.msra.mxu0 0.0
  %1690 = vmatprep.subr.mxu0 0.0
  %1691 = vmatpush1.msra.mxu0 0.0
  %1692 = vmatprep.subr.mxu0 0.0
  %1693 = vmatpush1.msra.mxu0 0.0
  %1694 = vmatprep.subr.mxu0 0.0
  %1695 = vmatpush1.msra.mxu0 0.0
  %1696 = vmatprep.subr.mxu0 0.0
  %1697 = vmatpush1.msra.mxu0 0.0
  %1698 = vmatprep.subr.mxu0 0.0
  %1699 = vmatpush1.msra.mxu0 0.0
  %1700 = vmatprep.subr.mxu0 0.0
  %1701 = vmatpush1.msra.mxu0 0.0
  %1702 = vmatprep.subr.mxu0 0.0
  %1703 = vmatpush1.msra.mxu0 0.0
  %1704 = vmatprep.subr.mxu0 0.0
  %1705 = vmatpush1.msra.mxu0 0.0
  %1706 = vmatprep.subr.mxu0 0.0
  %1707 = vmatpush1.msra.mxu0 0.0
  %1708 = vmatprep.subr.mxu0 0.0
  %1709 = vmatpush1.msra.mxu0 0.0
  %1710 = vmatprep.subr.mxu0 0.0
  %1711 = vmatpush1.msra.mxu0 0.0
  %1712 = vmatprep.subr.mxu0 0.0
  %1713 = vmatpush1.msra.mxu0 0.0
  %1714 = vmatprep.subr.mxu0 0.0
  %1715 = vmatpush1.msra.mxu0 0.0
  %1716 = vmatprep.subr.mxu0 0.0
  %1717 = vmatpush1.msra.mxu0 0.0
  %1718 = vmatprep.subr.mxu0 0.0
  %1719 = vmatpush1.msra.mxu0 0.0
  %1720 = vmatprep.subr.mxu0 0.0
  %1721 = vmatpush1.msra.mxu0 0.0
  %1722 = vmatprep.subr.mxu0 0.0
  %1723 = vmatpush1.msra.mxu0 0.0
  %1724 = vmatprep.subr.mxu0 0.0
  %1725 = vmatpush1.msra.mxu0 0.0
  %1726 = vmatprep.subr.mxu0 0.0
  %1727 = vmatpush1.msra.mxu0 0.0
  %1728 = vmatprep.subr.mxu0 0.0
  %1729 = vmatpush1.msra.mxu0 0.0
  %1730 = vmatprep.subr.mxu0 0.0
  %1731 = vmatpush1.msra.mxu0 0.0
  %1732 = vmatprep.subr.mxu0 0.0
  %1733 = vmatpush1.msra.mxu0 0.0
  %1734 = vmatprep.subr.mxu0 0.0
  %1735 = vmatpush1.msra.mxu0 0.0
  %1736 = vmatprep.subr.mxu0 0.0
  %1737 = vmatpush1.msra.mxu0 0.0
  %1738 = vmatprep.mubr.f32.mxu0 0.0
  %1739 = vmatmul.mubr.f32.gmra.mrb[0].mxu0 %v279
  %v1740 = vpop.f32.mrb[0].mxu0
  %v1741 = vadd.f32 0.0, %v1740
  %v1742 = vpop.f32.mrb[0].mxu0
  %1743 = vmatprep.mubr.f32.mxu0 0.0
  %1744 = vmatmul.mubr.f32.gmra.mrb[0].mxu0 %v282
  %v1745 = vpop.f32.mrb[0].mxu0
  %v1746 = vadd.f32 0.0, %v1745
  %v1747 = vpop.f32.mrb[0].mxu0
  %1748 = vmatprep.mubr.f32.mxu0 0.0
  %1749 = vmatmul.mubr.f32.gmra.mrb[0].mxu0 %v285
  %v1750 = vpop.f32.mrb[0].mxu0
  %v1751 = vadd.f32 0.0, %v1750
  %v1752 = vpop.f32.mrb[0].mxu0
  %1753 = vmatprep.mubr.f32.mxu0 0.0
  %1754 = vmatmul.mubr.f32.gmra.mrb[0].mxu0 %v288
  %v1755 = vpop.f32.mrb[0].mxu0
  %v1756 = vadd.f32 0.0, %v1755
  %v1757 = vpop.f32.mrb[0].mxu0
  %1758 = vmatprep.mubr.f32.mxu0 0.0
  %1759 = vmatmul.mubr.f32.gmra.mrb[0].mxu0 %v291
  %v1760 = vpop.f32.mrb[0].mxu0
  %v1761 = vadd.f32 0.0, %v1760
  %v1762 = vpop.f32.mrb[0].mxu0
  %1763 = vmatprep.mubr.f32.mxu0 0.0
  %1764 = vmatmul.mubr.f32.gmra.mrb[0].mxu0 %v294
  %v1765 = vpop.f32.mrb[0].mxu0
  %v1766 = vadd.f32 0.0, %v1765
  %v1767 = vpop.f32.mrb[0].mxu0
  %1768 = vmatprep.mubr.f32.mxu0 0.0
  %1769 = vmatmul.mubr.f32.gmra.mrb[0].mxu0 %v297
  %v1770 = vpop.f32.mrb[0].mxu0
  %v1771 = vadd.f32 0.0, %v1770
  %v1772 = vpop.f32.mrb[0].mxu0
  %1773 = vmatprep.mubr.f32.mxu0 0.0
  %1774 = vmatmul.mubr.f32.gmra.mrb[0].mxu0 %v300
  %v1775 = vpop.f32.mrb[0].mxu0
  %v1776 = vadd.f32 0.0, %v1775
  %v1777 = vpop.f32.mrb[0].mxu0
  %1778 = vmatprep.mubr.f32.mxu0 0.0
  %1779 = vmatmul.mubr.f32.gmra.mrb[0].mxu0 %v303
  %v1780 = vpop.f32.mrb[0].mxu0
  %v1781 = vadd.f32 0.0, %v1780
  %v1782 = vpop.f32.mrb[0].mxu0
  %1783 = vmatprep.mubr.f32.mxu0 0.0
  %1784 = vmatmul.mubr.f32.gmra.mrb[0].mxu0 %v306
  %v1785 = vpop.f32.mrb[0].mxu0
  %v1786 = vadd.f32 0.0, %v1785
  %v1787 = vpop.f32.mrb[0].mxu0
  %1788 = vmatprep.mubr.f32.mxu0 0.0
  %1789 = vmatmul.mubr.f32.gmra.mrb[0].mxu0 %v309
  %v1790 = vpop.f32.mrb[0].mxu0
  %v1791 = vadd.f32 0.0, %v1790
  %v1792 = vpop.f32.mrb[0].mxu0
  %1793 = vmatprep.mubr.f32.mxu0 0.0
  %1794 = vmatmul.mubr.f32.gmra.mrb[0].mxu0 %v312
  %v1795 = vpop.f32.mrb[0].mxu0
  %v1796 = vadd.f32 0.0, %v1795
  %v1797 = vpop.f32.mrb[0].mxu0
  %1798 = vmatprep.mubr.f32.mxu0 0.0
  %1799 = vmatmul.mubr.f32.gmra.mrb[0].mxu0 %v315
  %v1800 = vpop.f32.mrb[0].mxu0
  %v1801 = vadd.f32 0.0, %v1800
  %v1802 = vpop.f32.mrb[0].mxu0
  %1803 = vdwg.mxu0
  %v1805 = vsel %vm447, %v1665, 0
  %v1808 = vsel %vm447, %v1666, 0
  %v1811 = vsel %vm447, %v1667, 0
  %v1814 = vsel %vm447, %v1668, 0
  %v1817 = vsel %vm447, %v1669, 0
  %v1820 = vsel %vm447, %v1670, 0
  %v1823 = vsel %vm447, %v1671, 0
  %v1826 = vsel %vm469, %v1801, 0
  %1828 = vmatprep.subr.mxu0 0.0
  %1829 = vmatpush1.msra.mxu0 %v1741
  %1830 = vmatprep.subr.mxu0 0.0
  %1831 = vmatpush1.msra.mxu0 %v1746
  %1832 = vmatprep.subr.mxu0 0.0
  %1833 = vmatpush1.msra.mxu0 %v1751
  %1834 = vmatprep.subr.mxu0 0.0
  %1835 = vmatpush1.msra.mxu0 %v1756
  %1836 = vmatprep.subr.mxu0 0.0
  %1837 = vmatpush1.msra.mxu0 %v1761
  %1838 = vmatprep.subr.mxu0 0.0
  %1839 = vmatpush1.msra.mxu0 %v1766
  %1840 = vmatprep.subr.mxu0 0.0
  %1841 = vmatpush1.msra.mxu0 %v1771
  %1842 = vmatprep.subr.mxu0 0.0
  %1843 = vmatpush1.msra.mxu0 %v1776
  %1844 = vmatprep.subr.mxu0 0.0
  %1845 = vmatpush1.msra.mxu0 %v1781
  %1846 = vmatprep.subr.mxu0 0.0
  %1847 = vmatpush1.msra.mxu0 %v1786
  %1848 = vmatprep.subr.mxu0 0.0
  %1849 = vmatpush1.msra.mxu0 %v1791
  %1850 = vmatprep.subr.mxu0 0.0
  %1851 = vmatpush1.msra.mxu0 %v1796
  %1852 = vmatprep.subr.mxu0 0.0
  %1853 = vmatpush1.msra.mxu0 %v1826
  %1854 = vmatprep.subr.mxu0 0.0
  %1855 = vmatpush1.msra.mxu0 0.0
  %1856 = vmatprep.subr.mxu0 0.0
  %1857 = vmatpush1.msra.mxu0 0.0
  %1858 = vmatprep.subr.mxu0 0.0
  %1859 = vmatpush1.msra.mxu0 0.0
  %1860 = vmatprep.subr.mxu0 0.0
  %1861 = vmatpush1.msra.mxu0 0.0
  %1862 = vmatprep.subr.mxu0 0.0
  %1863 = vmatpush1.msra.mxu0 0.0
  %1864 = vmatprep.subr.mxu0 0.0
  %1865 = vmatpush1.msra.mxu0 0.0
  %1866 = vmatprep.subr.mxu0 0.0
  %1867 = vmatpush1.msra.mxu0 0.0
  %1868 = vmatprep.subr.mxu0 0.0
  %1869 = vmatpush1.msra.mxu0 0.0
  %1870 = vmatprep.subr.mxu0 0.0
  %1871 = vmatpush1.msra.mxu0 0.0
  %1872 = vmatprep.subr.mxu0 0.0
  %1873 = vmatpush1.msra.mxu0 0.0
  %1874 = vmatprep.subr.mxu0 0.0
  %1875 = vmatpush1.msra.mxu0 0.0
  %1876 = vmatprep.subr.mxu0 0.0
  %1877 = vmatpush1.msra.mxu0 0.0
  %1878 = vmatprep.subr.mxu0 0.0
  %1879 = vmatpush1.msra.mxu0 0.0
  %1880 = vmatprep.subr.mxu0 0.0
  %1881 = vmatpush1.msra.mxu0 0.0
  %1882 = vmatprep.subr.mxu0 0.0
  %1883 = vmatpush1.msra.mxu0 0.0
  %1884 = vmatprep.subr.mxu0 0.0
  %1885 = vmatpush1.msra.mxu0 0.0
  %1886 = vmatprep.subr.mxu0 0.0
  %1887 = vmatpush1.msra.mxu0 0.0
  %1888 = vmatprep.subr.mxu0 0.0
  %1889 = vmatpush1.msra.mxu0 0.0
  %1890 = vmatprep.subr.mxu0 0.0
  %1891 = vmatpush1.msra.mxu0 0.0
  %1892 = vmatprep.mubr.f32.mxu0 0.0
  %1893 = vmatmul.mubr.f32.gmra.mrb[0].mxu0 %v1805
  %v1894 = vpop.f32.mrb[0].mxu0
  %v1895 = vadd.f32 0.0, %v1894
  %v1896 = vpop.f32.mrb[0].mxu0
  %1897 = vmatprep.mubr.f32.mxu0 0.0
  %1898 = vmatmul.mubr.f32.gmra.mrb[0].mxu0 %v1808
  %v1899 = vpop.f32.mrb[0].mxu0
  %v1900 = vadd.f32 0.0, %v1899
  %v1901 = vpop.f32.mrb[0].mxu0
  %1902 = vmatprep.mubr.f32.mxu0 0.0
  %1903 = vmatmul.mubr.f32.gmra.mrb[0].mxu0 %v1811
  %v1904 = vpop.f32.mrb[0].mxu0
  %v1905 = vadd.f32 0.0, %v1904
  %v1906 = vpop.f32.mrb[0].mxu0
  %1907 = vmatprep.mubr.f32.mxu0 0.0
  %1908 = vmatmul.mubr.f32.gmra.mrb[0].mxu0 %v1814
  %v1909 = vpop.f32.mrb[0].mxu0
  %v1910 = vadd.f32 0.0, %v1909
  %v1911 = vpop.f32.mrb[0].mxu0
  %1912 = vmatprep.mubr.f32.mxu0 0.0
  %1913 = vmatmul.mubr.f32.gmra.mrb[0].mxu0 %v1817
  %v1914 = vpop.f32.mrb[0].mxu0
  %v1915 = vadd.f32 0.0, %v1914
  %v1916 = vpop.f32.mrb[0].mxu0
  %1917 = vmatprep.mubr.f32.mxu0 0.0
  %1918 = vmatmul.mubr.f32.gmra.mrb[0].mxu0 %v1820
  %v1919 = vpop.f32.mrb[0].mxu0
  %v1920 = vadd.f32 0.0, %v1919
  %v1921 = vpop.f32.mrb[0].mxu0
  %1922 = vmatprep.mubr.f32.mxu0 0.0
  %1923 = vmatmul.mubr.f32.gmra.mrb[0].mxu0 %v1823
  %v1924 = vpop.f32.mrb[0].mxu0
  %v1925 = vadd.f32 0.0, %v1924
  %v1926 = vpop.f32.mrb[0].mxu0
  %1927 = vdwg.mxu0
  %v1928 = vadd.f32 %v1657, %v1895
  %v1929 = vadd.f32 %v1658, %v1900
  %v1930 = vadd.f32 %v1659, %v1905
  %v1931 = vadd.f32 %v1660, %v1910
  %v1932 = vadd.f32 %v1661, %v1915
  %v1933 = vadd.f32 %v1662, %v1920
  %v1934 = vadd.f32 %v1663, %v1925
  %s1935 = scalar_lea.vmem %s1, 336
  %v1936 = vld [vmem:[%s1935] sm:$0xff]
  %v1937 = vld [vmem:[%s1935 + $0x8] sm:$0xff]
  %v1938 = vld [vmem:[%s1935 + $0x10] sm:$0xff]
  %v1939 = vld [vmem:[%s1935 + $0x18] sm:$0xff]
  %v1940 = vld [vmem:[%s1935 + $0x20] sm:$0xff]
  %v1941 = vld [vmem:[%s1935 + $0x28] sm:$0xff]
  %v1942 = vld [vmem:[%s1935 + $0x30] sm:$0x3]
  %s1943 = scalar_lea.vmem %s4, 48
  %v1944 = vld [vmem:[%s1943] sm:$0xff]
  %1945 = vmatprep.subr.mxu0 0.0
  %1946 = vmatpush1.msra.mxu0 %v1944
  %1947 = vmatprep.subr.mxu0 0.0
  %1948 = vmatpush1.msra.mxu0 0.0
  %1949 = vmatprep.subr.mxu0 0.0
  %1950 = vmatpush1.msra.mxu0 0.0
  %1951 = vmatprep.subr.mxu0 0.0
  %1952 = vmatpush1.msra.mxu0 0.0
  %1953 = vmatprep.subr.mxu0 0.0
  %1954 = vmatpush1.msra.mxu0 0.0
  %1955 = vmatprep.subr.mxu0 0.0
  %1956 = vmatpush1.msra.mxu0 0.0
  %1957 = vmatprep.subr.mxu0 0.0
  %1958 = vmatpush1.msra.mxu0 0.0
  %1959 = vmatprep.subr.mxu0 0.0
  %1960 = vmatpush1.msra.mxu0 0.0
  %1961 = vmatprep.subr.mxu0 0.0
  %1962 = vmatpush1.msra.mxu0 0.0
  %1963 = vmatprep.subr.mxu0 0.0
  %1964 = vmatpush1.msra.mxu0 0.0
  %1965 = vmatprep.subr.mxu0 0.0
  %1966 = vmatpush1.msra.mxu0 0.0
  %1967 = vmatprep.subr.mxu0 0.0
  %1968 = vmatpush1.msra.mxu0 0.0
  %1969 = vmatprep.subr.mxu0 0.0
  %1970 = vmatpush1.msra.mxu0 0.0
  %1971 = vmatprep.subr.mxu0 0.0
  %1972 = vmatpush1.msra.mxu0 0.0
  %1973 = vmatprep.subr.mxu0 0.0
  %1974 = vmatpush1.msra.mxu0 0.0
  %1975 = vmatprep.subr.mxu0 0.0
  %1976 = vmatpush1.msra.mxu0 0.0
  %1977 = vmatprep.subr.mxu0 0.0
  %1978 = vmatpush1.msra.mxu0 0.0
  %1979 = vmatprep.subr.mxu0 0.0
  %1980 = vmatpush1.msra.mxu0 0.0
  %1981 = vmatprep.subr.mxu0 0.0
  %1982 = vmatpush1.msra.mxu0 0.0
  %1983 = vmatprep.subr.mxu0 0.0
  %1984 = vmatpush1.msra.mxu0 0.0
  %1985 = vmatprep.subr.mxu0 0.0
  %1986 = vmatpush1.msra.mxu0 0.0
  %1987 = vmatprep.subr.mxu0 0.0
  %1988 = vmatpush1.msra.mxu0 0.0
  %1989 = vmatprep.subr.mxu0 0.0
  %1990 = vmatpush1.msra.mxu0 0.0
  %1991 = vmatprep.subr.mxu0 0.0
  %1992 = vmatpush1.msra.mxu0 0.0
  %1993 = vmatprep.subr.mxu0 0.0
  %1994 = vmatpush1.msra.mxu0 0.0
  %1995 = vmatprep.subr.mxu0 0.0
  %1996 = vmatpush1.msra.mxu0 0.0
  %1997 = vmatprep.subr.mxu0 0.0
  %1998 = vmatpush1.msra.mxu0 0.0
  %1999 = vmatprep.subr.mxu0 0.0
  %2000 = vmatpush1.msra.mxu0 0.0
  %2001 = vmatprep.subr.mxu0 0.0
  %2002 = vmatpush1.msra.mxu0 0.0
  %2003 = vmatprep.subr.mxu0 0.0
  %2004 = vmatpush1.msra.mxu0 0.0
  %2005 = vmatprep.subr.mxu0 0.0
  %2006 = vmatpush1.msra.mxu0 0.0
  %2007 = vmatprep.subr.mxu0 0.0
  %2008 = vmatpush1.msra.mxu0 0.0
  %2009 = vmatprep.mubr.f32.mxu0 0.0
  %2010 = vmatmul.mubr.f32.gmra.mrb[0].mxu0 %v279
  %v2011 = vpop.f32.mrb[0].mxu0
  %v2012 = vadd.f32 0.0, %v2011
  %v2013 = vpop.f32.mrb[0].mxu0
  %2014 = vmatprep.mubr.f32.mxu0 0.0
  %2015 = vmatmul.mubr.f32.gmra.mrb[0].mxu0 %v282
  %v2016 = vpop.f32.mrb[0].mxu0
  %v2017 = vadd.f32 0.0, %v2016
  %v2018 = vpop.f32.mrb[0].mxu0
  %2019 = vmatprep.mubr.f32.mxu0 0.0
  %2020 = vmatmul.mubr.f32.gmra.mrb[0].mxu0 %v285
  %v2021 = vpop.f32.mrb[0].mxu0
  %v2022 = vadd.f32 0.0, %v2021
  %v2023 = vpop.f32.mrb[0].mxu0
  %2024 = vmatprep.mubr.f32.mxu0 0.0
  %2025 = vmatmul.mubr.f32.gmra.mrb[0].mxu0 %v288
  %v2026 = vpop.f32.mrb[0].mxu0
  %v2027 = vadd.f32 0.0, %v2026
  %v2028 = vpop.f32.mrb[0].mxu0
  %2029 = vmatprep.mubr.f32.mxu0 0.0
  %2030 = vmatmul.mubr.f32.gmra.mrb[0].mxu0 %v291
  %v2031 = vpop.f32.mrb[0].mxu0
  %v2032 = vadd.f32 0.0, %v2031
  %v2033 = vpop.f32.mrb[0].mxu0
  %2034 = vmatprep.mubr.f32.mxu0 0.0
  %2035 = vmatmul.mubr.f32.gmra.mrb[0].mxu0 %v294
  %v2036 = vpop.f32.mrb[0].mxu0
  %v2037 = vadd.f32 0.0, %v2036
  %v2038 = vpop.f32.mrb[0].mxu0
  %2039 = vmatprep.mubr.f32.mxu0 0.0
  %2040 = vmatmul.mubr.f32.gmra.mrb[0].mxu0 %v297
  %v2041 = vpop.f32.mrb[0].mxu0
  %v2042 = vadd.f32 0.0, %v2041
  %v2043 = vpop.f32.mrb[0].mxu0
  %2044 = vmatprep.mubr.f32.mxu0 0.0
  %2045 = vmatmul.mubr.f32.gmra.mrb[0].mxu0 %v300
  %v2046 = vpop.f32.mrb[0].mxu0
  %v2047 = vadd.f32 0.0, %v2046
  %v2048 = vpop.f32.mrb[0].mxu0
  %2049 = vmatprep.mubr.f32.mxu0 0.0
  %2050 = vmatmul.mubr.f32.gmra.mrb[0].mxu0 %v303
  %v2051 = vpop.f32.mrb[0].mxu0
  %v2052 = vadd.f32 0.0, %v2051
  %v2053 = vpop.f32.mrb[0].mxu0
  %2054 = vmatprep.mubr.f32.mxu0 0.0
  %2055 = vmatmul.mubr.f32.gmra.mrb[0].mxu0 %v306
  %v2056 = vpop.f32.mrb[0].mxu0
  %v2057 = vadd.f32 0.0, %v2056
  %v2058 = vpop.f32.mrb[0].mxu0
  %2059 = vmatprep.mubr.f32.mxu0 0.0
  %2060 = vmatmul.mubr.f32.gmra.mrb[0].mxu0 %v309
  %v2061 = vpop.f32.mrb[0].mxu0
  %v2062 = vadd.f32 0.0, %v2061
  %v2063 = vpop.f32.mrb[0].mxu0
  %2064 = vmatprep.mubr.f32.mxu0 0.0
  %2065 = vmatmul.mubr.f32.gmra.mrb[0].mxu0 %v312
  %v2066 = vpop.f32.mrb[0].mxu0
  %v2067 = vadd.f32 0.0, %v2066
  %v2068 = vpop.f32.mrb[0].mxu0
  %2069 = vmatprep.mubr.f32.mxu0 0.0
  %2070 = vmatmul.mubr.f32.gmra.mrb[0].mxu0 %v315
  %v2071 = vpop.f32.mrb[0].mxu0
  %v2072 = vadd.f32 0.0, %v2071
  %v2073 = vpop.f32.mrb[0].mxu0
  %2074 = vdwg.mxu0
  %v2076 = vsel %vm447, %v1936, 0
  %v2079 = vsel %vm447, %v1937, 0
  %v2082 = vsel %vm447, %v1938, 0
  %v2085 = vsel %vm447, %v1939, 0
  %v2088 = vsel %vm447, %v1940, 0
  %v2091 = vsel %vm447, %v1941, 0
  %v2094 = vsel %vm447, %v1942, 0
  %v2097 = vsel %vm469, %v2072, 0
  %2099 = vmatprep.subr.mxu0 0.0
  %2100 = vmatpush1.msra.mxu0 %v2012
  %2101 = vmatprep.subr.mxu0 0.0
  %2102 = vmatpush1.msra.mxu0 %v2017
  %2103 = vmatprep.subr.mxu0 0.0
  %2104 = vmatpush1.msra.mxu0 %v2022
  %2105 = vmatprep.subr.mxu0 0.0
  %2106 = vmatpush1.msra.mxu0 %v2027
  %2107 = vmatprep.subr.mxu0 0.0
  %2108 = vmatpush1.msra.mxu0 %v2032
  %2109 = vmatprep.subr.mxu0 0.0
  %2110 = vmatpush1.msra.mxu0 %v2037
  %2111 = vmatprep.subr.mxu0 0.0
  %2112 = vmatpush1.msra.mxu0 %v2042
  %2113 = vmatprep.subr.mxu0 0.0
  %2114 = vmatpush1.msra.mxu0 %v2047
  %2115 = vmatprep.subr.mxu0 0.0
  %2116 = vmatpush1.msra.mxu0 %v2052
  %2117 = vmatprep.subr.mxu0 0.0
  %2118 = vmatpush1.msra.mxu0 %v2057
  %2119 = vmatprep.subr.mxu0 0.0
  %2120 = vmatpush1.msra.mxu0 %v2062
  %2121 = vmatprep.subr.mxu0 0.0
  %2122 = vmatpush1.msra.mxu0 %v2067
  %2123 = vmatprep.subr.mxu0 0.0
  %2124 = vmatpush1.msra.mxu0 %v2097
  %2125 = vmatprep.subr.mxu0 0.0
  %2126 = vmatpush1.msra.mxu0 0.0
  %2127 = vmatprep.subr.mxu0 0.0
  %2128 = vmatpush1.msra.mxu0 0.0
  %2129 = vmatprep.subr.mxu0 0.0
  %2130 = vmatpush1.msra.mxu0 0.0
  %2131 = vmatprep.subr.mxu0 0.0
  %2132 = vmatpush1.msra.mxu0 0.0
  %2133 = vmatprep.subr.mxu0 0.0
  %2134 = vmatpush1.msra.mxu0 0.0
  %2135 = vmatprep.subr.mxu0 0.0
  %2136 = vmatpush1.msra.mxu0 0.0
  %2137 = vmatprep.subr.mxu0 0.0
  %2138 = vmatpush1.msra.mxu0 0.0
  %2139 = vmatprep.subr.mxu0 0.0
  %2140 = vmatpush1.msra.mxu0 0.0
  %2141 = vmatprep.subr.mxu0 0.0
  %2142 = vmatpush1.msra.mxu0 0.0
  %2143 = vmatprep.subr.mxu0 0.0
  %2144 = vmatpush1.msra.mxu0 0.0
  %2145 = vmatprep.subr.mxu0 0.0
  %2146 = vmatpush1.msra.mxu0 0.0
  %2147 = vmatprep.subr.mxu0 0.0
  %2148 = vmatpush1.msra.mxu0 0.0
  %2149 = vmatprep.subr.mxu0 0.0
  %2150 = vmatpush1.msra.mxu0 0.0
  %2151 = vmatprep.subr.mxu0 0.0
  %2152 = vmatpush1.msra.mxu0 0.0
  %2153 = vmatprep.subr.mxu0 0.0
  %2154 = vmatpush1.msra.mxu0 0.0
  %2155 = vmatprep.subr.mxu0 0.0
  %2156 = vmatpush1.msra.mxu0 0.0
  %2157 = vmatprep.subr.mxu0 0.0
  %2158 = vmatpush1.msra.mxu0 0.0
  %2159 = vmatprep.subr.mxu0 0.0
  %2160 = vmatpush1.msra.mxu0 0.0
  %2161 = vmatprep.subr.mxu0 0.0
  %2162 = vmatpush1.msra.mxu0 0.0
  %2163 = vmatprep.mubr.f32.mxu0 0.0
  %2164 = vmatmul.mubr.f32.gmra.mrb[0].mxu0 %v2076
  %v2165 = vpop.f32.mrb[0].mxu0
  %v2166 = vadd.f32 0.0, %v2165
  %v2167 = vpop.f32.mrb[0].mxu0
  %2168 = vmatprep.mubr.f32.mxu0 0.0
  %2169 = vmatmul.mubr.f32.gmra.mrb[0].mxu0 %v2079
  %v2170 = vpop.f32.mrb[0].mxu0
  %v2171 = vadd.f32 0.0, %v2170
  %v2172 = vpop.f32.mrb[0].mxu0
  %2173 = vmatprep.mubr.f32.mxu0 0.0
  %2174 = vmatmul.mubr.f32.gmra.mrb[0].mxu0 %v2082
  %v2175 = vpop.f32.mrb[0].mxu0
  %v2176 = vadd.f32 0.0, %v2175
  %v2177 = vpop.f32.mrb[0].mxu0
  %2178 = vmatprep.mubr.f32.mxu0 0.0
  %2179 = vmatmul.mubr.f32.gmra.mrb[0].mxu0 %v2085
  %v2180 = vpop.f32.mrb[0].mxu0
  %v2181 = vadd.f32 0.0, %v2180
  %v2182 = vpop.f32.mrb[0].mxu0
  %2183 = vmatprep.mubr.f32.mxu0 0.0
  %2184 = vmatmul.mubr.f32.gmra.mrb[0].mxu0 %v2088
  %v2185 = vpop.f32.mrb[0].mxu0
  %v2186 = vadd.f32 0.0, %v2185
  %v2187 = vpop.f32.mrb[0].mxu0
  %2188 = vmatprep.mubr.f32.mxu0 0.0
  %2189 = vmatmul.mubr.f32.gmra.mrb[0].mxu0 %v2091
  %v2190 = vpop.f32.mrb[0].mxu0
  %v2191 = vadd.f32 0.0, %v2190
  %v2192 = vpop.f32.mrb[0].mxu0
  %2193 = vmatprep.mubr.f32.mxu0 0.0
  %2194 = vmatmul.mubr.f32.gmra.mrb[0].mxu0 %v2094
  %v2195 = vpop.f32.mrb[0].mxu0
  %v2196 = vadd.f32 0.0, %v2195
  %v2197 = vpop.f32.mrb[0].mxu0
  %2198 = vdwg.mxu0
  %v2199 = vadd.f32 %v1928, %v2166
  %v2200 = vadd.f32 %v1929, %v2171
  %v2201 = vadd.f32 %v1930, %v2176
  %v2202 = vadd.f32 %v1931, %v2181
  %v2203 = vadd.f32 %v1932, %v2186
  %v2204 = vadd.f32 %v1933, %v2191
  %v2205 = vadd.f32 %v1934, %v2196
  %s2206 = scalar_lea.vmem %s1, 392
  %v2207 = vld [vmem:[%s2206] sm:$0xff]
  %v2208 = vld [vmem:[%s2206 + $0x8] sm:$0xff]
  %v2209 = vld [vmem:[%s2206 + $0x10] sm:$0xff]
  %v2210 = vld [vmem:[%s2206 + $0x18] sm:$0xff]
  %v2211 = vld [vmem:[%s2206 + $0x20] sm:$0xff]
  %v2212 = vld [vmem:[%s2206 + $0x28] sm:$0xff]
  %v2213 = vld [vmem:[%s2206 + $0x30] sm:$0x3]
  %s2214 = scalar_lea.vmem %s4, 56
  %v2215 = vld [vmem:[%s2214] sm:$0xff]
  %2216 = vmatprep.subr.mxu0 0.0
  %2217 = vmatpush1.msra.mxu0 %v2215
  %2218 = vmatprep.subr.mxu0 0.0
  %2219 = vmatpush1.msra.mxu0 0.0
  %2220 = vmatprep.subr.mxu0 0.0
  %2221 = vmatpush1.msra.mxu0 0.0
  %2222 = vmatprep.subr.mxu0 0.0
  %2223 = vmatpush1.msra.mxu0 0.0
  %2224 = vmatprep.subr.mxu0 0.0
  %2225 = vmatpush1.msra.mxu0 0.0
  %2226 = vmatprep.subr.mxu0 0.0
  %2227 = vmatpush1.msra.mxu0 0.0
  %2228 = vmatprep.subr.mxu0 0.0
  %2229 = vmatpush1.msra.mxu0 0.0
  %2230 = vmatprep.subr.mxu0 0.0
  %2231 = vmatpush1.msra.mxu0 0.0
  %2232 = vmatprep.subr.mxu0 0.0
  %2233 = vmatpush1.msra.mxu0 0.0
  %2234 = vmatprep.subr.mxu0 0.0
  %2235 = vmatpush1.msra.mxu0 0.0
  %2236 = vmatprep.subr.mxu0 0.0
  %2237 = vmatpush1.msra.mxu0 0.0
  %2238 = vmatprep.subr.mxu0 0.0
  %2239 = vmatpush1.msra.mxu0 0.0
  %2240 = vmatprep.subr.mxu0 0.0
  %2241 = vmatpush1.msra.mxu0 0.0
  %2242 = vmatprep.subr.mxu0 0.0
  %2243 = vmatpush1.msra.mxu0 0.0
  %2244 = vmatprep.subr.mxu0 0.0
  %2245 = vmatpush1.msra.mxu0 0.0
  %2246 = vmatprep.subr.mxu0 0.0
  %2247 = vmatpush1.msra.mxu0 0.0
  %2248 = vmatprep.subr.mxu0 0.0
  %2249 = vmatpush1.msra.mxu0 0.0
  %2250 = vmatprep.subr.mxu0 0.0
  %2251 = vmatpush1.msra.mxu0 0.0
  %2252 = vmatprep.subr.mxu0 0.0
  %2253 = vmatpush1.msra.mxu0 0.0
  %2254 = vmatprep.subr.mxu0 0.0
  %2255 = vmatpush1.msra.mxu0 0.0
  %2256 = vmatprep.subr.mxu0 0.0
  %2257 = vmatpush1.msra.mxu0 0.0
  %2258 = vmatprep.subr.mxu0 0.0
  %2259 = vmatpush1.msra.mxu0 0.0
  %2260 = vmatprep.subr.mxu0 0.0
  %2261 = vmatpush1.msra.mxu0 0.0
  %2262 = vmatprep.subr.mxu0 0.0
  %2263 = vmatpush1.msra.mxu0 0.0
  %2264 = vmatprep.subr.mxu0 0.0
  %2265 = vmatpush1.msra.mxu0 0.0
  %2266 = vmatprep.subr.mxu0 0.0
  %2267 = vmatpush1.msra.mxu0 0.0
  %2268 = vmatprep.subr.mxu0 0.0
  %2269 = vmatpush1.msra.mxu0 0.0
  %2270 = vmatprep.subr.mxu0 0.0
  %2271 = vmatpush1.msra.mxu0 0.0
  %2272 = vmatprep.subr.mxu0 0.0
  %2273 = vmatpush1.msra.mxu0 0.0
  %2274 = vmatprep.subr.mxu0 0.0
  %2275 = vmatpush1.msra.mxu0 0.0
  %2276 = vmatprep.subr.mxu0 0.0
  %2277 = vmatpush1.msra.mxu0 0.0
  %2278 = vmatprep.subr.mxu0 0.0
  %2279 = vmatpush1.msra.mxu0 0.0
  %2280 = vmatprep.mubr.f32.mxu0 0.0
  %2281 = vmatmul.mubr.f32.gmra.mrb[0].mxu0 %v279
  %v2282 = vpop.f32.mrb[0].mxu0
  %v2283 = vadd.f32 0.0, %v2282
  %v2284 = vpop.f32.mrb[0].mxu0
  %2285 = vmatprep.mubr.f32.mxu0 0.0
  %2286 = vmatmul.mubr.f32.gmra.mrb[0].mxu0 %v282
  %v2287 = vpop.f32.mrb[0].mxu0
  %v2288 = vadd.f32 0.0, %v2287
  %v2289 = vpop.f32.mrb[0].mxu0
  %2290 = vmatprep.mubr.f32.mxu0 0.0
  %2291 = vmatmul.mubr.f32.gmra.mrb[0].mxu0 %v285
  %v2292 = vpop.f32.mrb[0].mxu0
  %v2293 = vadd.f32 0.0, %v2292
  %v2294 = vpop.f32.mrb[0].mxu0
  %2295 = vmatprep.mubr.f32.mxu0 0.0
  %2296 = vmatmul.mubr.f32.gmra.mrb[0].mxu0 %v288
  %v2297 = vpop.f32.mrb[0].mxu0
  %v2298 = vadd.f32 0.0, %v2297
  %v2299 = vpop.f32.mrb[0].mxu0
  %2300 = vmatprep.mubr.f32.mxu0 0.0
  %2301 = vmatmul.mubr.f32.gmra.mrb[0].mxu0 %v291
  %v2302 = vpop.f32.mrb[0].mxu0
  %v2303 = vadd.f32 0.0, %v2302
  %v2304 = vpop.f32.mrb[0].mxu0
  %2305 = vmatprep.mubr.f32.mxu0 0.0
  %2306 = vmatmul.mubr.f32.gmra.mrb[0].mxu0 %v294
  %v2307 = vpop.f32.mrb[0].mxu0
  %v2308 = vadd.f32 0.0, %v2307
  %v2309 = vpop.f32.mrb[0].mxu0
  %2310 = vmatprep.mubr.f32.mxu0 0.0
  %2311 = vmatmul.mubr.f32.gmra.mrb[0].mxu0 %v297
  %v2312 = vpop.f32.mrb[0].mxu0
  %v2313 = vadd.f32 0.0, %v2312
  %v2314 = vpop.f32.mrb[0].mxu0
  %2315 = vmatprep.mubr.f32.mxu0 0.0
  %2316 = vmatmul.mubr.f32.gmra.mrb[0].mxu0 %v300
  %v2317 = vpop.f32.mrb[0].mxu0
  %v2318 = vadd.f32 0.0, %v2317
  %v2319 = vpop.f32.mrb[0].mxu0
  %2320 = vmatprep.mubr.f32.mxu0 0.0
  %2321 = vmatmul.mubr.f32.gmra.mrb[0].mxu0 %v303
  %v2322 = vpop.f32.mrb[0].mxu0
  %v2323 = vadd.f32 0.0, %v2322
  %v2324 = vpop.f32.mrb[0].mxu0
  %2325 = vmatprep.mubr.f32.mxu0 0.0
  %2326 = vmatmul.mubr.f32.gmra.mrb[0].mxu0 %v306
  %v2327 = vpop.f32.mrb[0].mxu0
  %v2328 = vadd.f32 0.0, %v2327
  %v2329 = vpop.f32.mrb[0].mxu0
  %2330 = vmatprep.mubr.f32.mxu0 0.0
  %2331 = vmatmul.mubr.f32.gmra.mrb[0].mxu0 %v309
  %v2332 = vpop.f32.mrb[0].mxu0
  %v2333 = vadd.f32 0.0, %v2332
  %v2334 = vpop.f32.mrb[0].mxu0
  %2335 = vmatprep.mubr.f32.mxu0 0.0
  %2336 = vmatmul.mubr.f32.gmra.mrb[0].mxu0 %v312
  %v2337 = vpop.f32.mrb[0].mxu0
  %v2338 = vadd.f32 0.0, %v2337
  %v2339 = vpop.f32.mrb[0].mxu0
  %2340 = vmatprep.mubr.f32.mxu0 0.0
  %2341 = vmatmul.mubr.f32.gmra.mrb[0].mxu0 %v315
  %v2342 = vpop.f32.mrb[0].mxu0
  %v2343 = vadd.f32 0.0, %v2342
  %v2344 = vpop.f32.mrb[0].mxu0
  %2345 = vdwg.mxu0
  %v2347 = vsel %vm447, %v2207, 0
  %v2350 = vsel %vm447, %v2208, 0
  %v2353 = vsel %vm447, %v2209, 0
  %v2356 = vsel %vm447, %v2210, 0
  %v2359 = vsel %vm447, %v2211, 0
  %v2362 = vsel %vm447, %v2212, 0
  %v2365 = vsel %vm447, %v2213, 0
  %v2368 = vsel %vm469, %v2343, 0
  %2370 = vmatprep.subr.mxu0 0.0
  %2371 = vmatpush1.msra.mxu0 %v2283
  %2372 = vmatprep.subr.mxu0 0.0
  %2373 = vmatpush1.msra.mxu0 %v2288
  %2374 = vmatprep.subr.mxu0 0.0
  %2375 = vmatpush1.msra.mxu0 %v2293
  %2376 = vmatprep.subr.mxu0 0.0
  %2377 = vmatpush1.msra.mxu0 %v2298
  %2378 = vmatprep.subr.mxu0 0.0
  %2379 = vmatpush1.msra.mxu0 %v2303
  %2380 = vmatprep.subr.mxu0 0.0
  %2381 = vmatpush1.msra.mxu0 %v2308
  %2382 = vmatprep.subr.mxu0 0.0
  %2383 = vmatpush1.msra.mxu0 %v2313
  %2384 = vmatprep.subr.mxu0 0.0
  %2385 = vmatpush1.msra.mxu0 %v2318
  %2386 = vmatprep.subr.mxu0 0.0
  %2387 = vmatpush1.msra.mxu0 %v2323
  %2388 = vmatprep.subr.mxu0 0.0
  %2389 = vmatpush1.msra.mxu0 %v2328
  %2390 = vmatprep.subr.mxu0 0.0
  %2391 = vmatpush1.msra.mxu0 %v2333
  %2392 = vmatprep.subr.mxu0 0.0
  %2393 = vmatpush1.msra.mxu0 %v2338
  %2394 = vmatprep.subr.mxu0 0.0
  %2395 = vmatpush1.msra.mxu0 %v2368
  %2396 = vmatprep.subr.mxu0 0.0
  %2397 = vmatpush1.msra.mxu0 0.0
  %2398 = vmatprep.subr.mxu0 0.0
  %2399 = vmatpush1.msra.mxu0 0.0
  %2400 = vmatprep.subr.mxu0 0.0
  %2401 = vmatpush1.msra.mxu0 0.0
  %2402 = vmatprep.subr.mxu0 0.0
  %2403 = vmatpush1.msra.mxu0 0.0
  %2404 = vmatprep.subr.mxu0 0.0
  %2405 = vmatpush1.msra.mxu0 0.0
  %2406 = vmatprep.subr.mxu0 0.0
  %2407 = vmatpush1.msra.mxu0 0.0
  %2408 = vmatprep.subr.mxu0 0.0
  %2409 = vmatpush1.msra.mxu0 0.0
  %2410 = vmatprep.subr.mxu0 0.0
  %2411 = vmatpush1.msra.mxu0 0.0
  %2412 = vmatprep.subr.mxu0 0.0
  %2413 = vmatpush1.msra.mxu0 0.0
  %2414 = vmatprep.subr.mxu0 0.0
  %2415 = vmatpush1.msra.mxu0 0.0
  %2416 = vmatprep.subr.mxu0 0.0
  %2417 = vmatpush1.msra.mxu0 0.0
  %2418 = vmatprep.subr.mxu0 0.0
  %2419 = vmatpush1.msra.mxu0 0.0
  %2420 = vmatprep.subr.mxu0 0.0
  %2421 = vmatpush1.msra.mxu0 0.0
  %2422 = vmatprep.subr.mxu0 0.0
  %2423 = vmatpush1.msra.mxu0 0.0
  %2424 = vmatprep.subr.mxu0 0.0
  %2425 = vmatpush1.msra.mxu0 0.0
  %2426 = vmatprep.subr.mxu0 0.0
  %2427 = vmatpush1.msra.mxu0 0.0
  %2428 = vmatprep.subr.mxu0 0.0
  %2429 = vmatpush1.msra.mxu0 0.0
  %2430 = vmatprep.subr.mxu0 0.0
  %2431 = vmatpush1.msra.mxu0 0.0
  %2432 = vmatprep.subr.mxu0 0.0
  %2433 = vmatpush1.msra.mxu0 0.0
  %2434 = vmatprep.mubr.f32.mxu0 0.0
  %2435 = vmatmul.mubr.f32.gmra.mrb[0].mxu0 %v2347
  %v2436 = vpop.f32.mrb[0].mxu0
  %v2437 = vadd.f32 0.0, %v2436
  %v2438 = vpop.f32.mrb[0].mxu0
  %2439 = vmatprep.mubr.f32.mxu0 0.0
  %2440 = vmatmul.mubr.f32.gmra.mrb[0].mxu0 %v2350
  %v2441 = vpop.f32.mrb[0].mxu0
  %v2442 = vadd.f32 0.0, %v2441
  %v2443 = vpop.f32.mrb[0].mxu0
  %2444 = vmatprep.mubr.f32.mxu0 0.0
  %2445 = vmatmul.mubr.f32.gmra.mrb[0].mxu0 %v2353
  %v2446 = vpop.f32.mrb[0].mxu0
  %v2447 = vadd.f32 0.0, %v2446
  %v2448 = vpop.f32.mrb[0].mxu0
  %2449 = vmatprep.mubr.f32.mxu0 0.0
  %2450 = vmatmul.mubr.f32.gmra.mrb[0].mxu0 %v2356
  %v2451 = vpop.f32.mrb[0].mxu0
  %v2452 = vadd.f32 0.0, %v2451
  %v2453 = vpop.f32.mrb[0].mxu0
  %2454 = vmatprep.mubr.f32.mxu0 0.0
  %2455 = vmatmul.mubr.f32.gmra.mrb[0].mxu0 %v2359
  %v2456 = vpop.f32.mrb[0].mxu0
  %v2457 = vadd.f32 0.0, %v2456
  %v2458 = vpop.f32.mrb[0].mxu0
  %2459 = vmatprep.mubr.f32.mxu0 0.0
  %2460 = vmatmul.mubr.f32.gmra.mrb[0].mxu0 %v2362
  %v2461 = vpop.f32.mrb[0].mxu0
  %v2462 = vadd.f32 0.0, %v2461
  %v2463 = vpop.f32.mrb[0].mxu0
  %2464 = vmatprep.mubr.f32.mxu0 0.0
  %2465 = vmatmul.mubr.f32.gmra.mrb[0].mxu0 %v2365
  %v2466 = vpop.f32.mrb[0].mxu0
  %v2467 = vadd.f32 0.0, %v2466
  %v2468 = vpop.f32.mrb[0].mxu0
  %2469 = vdwg.mxu0
  %v2470 = vadd.f32 %v2199, %v2437
  %v2471 = vadd.f32 %v2200, %v2442
  %v2472 = vadd.f32 %v2201, %v2447
  %v2473 = vadd.f32 %v2202, %v2452
  %v2474 = vadd.f32 %v2203, %v2457
  %v2475 = vadd.f32 %v2204, %v2462
  %v2476 = vadd.f32 %v2205, %v2467
  %s2477 = scalar_lea.vmem %s1, 448
  %v2478 = vld [vmem:[%s2477] sm:$0xff]
  %v2479 = vld [vmem:[%s2477 + $0x8] sm:$0xff]
  %v2480 = vld [vmem:[%s2477 + $0x10] sm:$0xff]
  %v2481 = vld [vmem:[%s2477 + $0x18] sm:$0xff]
  %v2482 = vld [vmem:[%s2477 + $0x20] sm:$0xff]
  %v2483 = vld [vmem:[%s2477 + $0x28] sm:$0xff]
  %v2484 = vld [vmem:[%s2477 + $0x30] sm:$0x3]
  %s2485 = scalar_lea.vmem %s4, 64
  %v2486 = vld [vmem:[%s2485] sm:$0xff]
  %2487 = vmatprep.subr.mxu0 0.0
  %2488 = vmatpush1.msra.mxu0 %v2486
  %2489 = vmatprep.subr.mxu0 0.0
  %2490 = vmatpush1.msra.mxu0 0.0
  %2491 = vmatprep.subr.mxu0 0.0
  %2492 = vmatpush1.msra.mxu0 0.0
  %2493 = vmatprep.subr.mxu0 0.0
  %2494 = vmatpush1.msra.mxu0 0.0
  %2495 = vmatprep.subr.mxu0 0.0
  %2496 = vmatpush1.msra.mxu0 0.0
  %2497 = vmatprep.subr.mxu0 0.0
  %2498 = vmatpush1.msra.mxu0 0.0
  %2499 = vmatprep.subr.mxu0 0.0
  %2500 = vmatpush1.msra.mxu0 0.0
  %2501 = vmatprep.subr.mxu0 0.0
  %2502 = vmatpush1.msra.mxu0 0.0
  %2503 = vmatprep.subr.mxu0 0.0
  %2504 = vmatpush1.msra.mxu0 0.0
  %2505 = vmatprep.subr.mxu0 0.0
  %2506 = vmatpush1.msra.mxu0 0.0
  %2507 = vmatprep.subr.mxu0 0.0
  %2508 = vmatpush1.msra.mxu0 0.0
  %2509 = vmatprep.subr.mxu0 0.0
  %2510 = vmatpush1.msra.mxu0 0.0
  %2511 = vmatprep.subr.mxu0 0.0
  %2512 = vmatpush1.msra.mxu0 0.0
  %2513 = vmatprep.subr.mxu0 0.0
  %2514 = vmatpush1.msra.mxu0 0.0
  %2515 = vmatprep.subr.mxu0 0.0
  %2516 = vmatpush1.msra.mxu0 0.0
  %2517 = vmatprep.subr.mxu0 0.0
  %2518 = vmatpush1.msra.mxu0 0.0
  %2519 = vmatprep.subr.mxu0 0.0
  %2520 = vmatpush1.msra.mxu0 0.0
  %2521 = vmatprep.subr.mxu0 0.0
  %2522 = vmatpush1.msra.mxu0 0.0
  %2523 = vmatprep.subr.mxu0 0.0
  %2524 = vmatpush1.msra.mxu0 0.0
  %2525 = vmatprep.subr.mxu0 0.0
  %2526 = vmatpush1.msra.mxu0 0.0
  %2527 = vmatprep.subr.mxu0 0.0
  %2528 = vmatpush1.msra.mxu0 0.0
  %2529 = vmatprep.subr.mxu0 0.0
  %2530 = vmatpush1.msra.mxu0 0.0
  %2531 = vmatprep.subr.mxu0 0.0
  %2532 = vmatpush1.msra.mxu0 0.0
  %2533 = vmatprep.subr.mxu0 0.0
  %2534 = vmatpush1.msra.mxu0 0.0
  %2535 = vmatprep.subr.mxu0 0.0
  %2536 = vmatpush1.msra.mxu0 0.0
  %2537 = vmatprep.subr.mxu0 0.0
  %2538 = vmatpush1.msra.mxu0 0.0
  %2539 = vmatprep.subr.mxu0 0.0
  %2540 = vmatpush1.msra.mxu0 0.0
  %2541 = vmatprep.subr.mxu0 0.0
  %2542 = vmatpush1.msra.mxu0 0.0
  %2543 = vmatprep.subr.mxu0 0.0
  %2544 = vmatpush1.msra.mxu0 0.0
  %2545 = vmatprep.subr.mxu0 0.0
  %2546 = vmatpush1.msra.mxu0 0.0
  %2547 = vmatprep.subr.mxu0 0.0
  %2548 = vmatpush1.msra.mxu0 0.0
  %2549 = vmatprep.subr.mxu0 0.0
  %2550 = vmatpush1.msra.mxu0 0.0
  %2551 = vmatprep.mubr.f32.mxu0 0.0
  %2552 = vmatmul.mubr.f32.gmra.mrb[0].mxu0 %v279
  %v2553 = vpop.f32.mrb[0].mxu0
  %v2554 = vadd.f32 0.0, %v2553
  %v2555 = vpop.f32.mrb[0].mxu0
  %2556 = vmatprep.mubr.f32.mxu0 0.0
  %2557 = vmatmul.mubr.f32.gmra.mrb[0].mxu0 %v282
  %v2558 = vpop.f32.mrb[0].mxu0
  %v2559 = vadd.f32 0.0, %v2558
  %v2560 = vpop.f32.mrb[0].mxu0
  %2561 = vmatprep.mubr.f32.mxu0 0.0
  %2562 = vmatmul.mubr.f32.gmra.mrb[0].mxu0 %v285
  %v2563 = vpop.f32.mrb[0].mxu0
  %v2564 = vadd.f32 0.0, %v2563
  %v2565 = vpop.f32.mrb[0].mxu0
  %2566 = vmatprep.mubr.f32.mxu0 0.0
  %2567 = vmatmul.mubr.f32.gmra.mrb[0].mxu0 %v288
  %v2568 = vpop.f32.mrb[0].mxu0
  %v2569 = vadd.f32 0.0, %v2568
  %v2570 = vpop.f32.mrb[0].mxu0
  %2571 = vmatprep.mubr.f32.mxu0 0.0
  %2572 = vmatmul.mubr.f32.gmra.mrb[0].mxu0 %v291
  %v2573 = vpop.f32.mrb[0].mxu0
  %v2574 = vadd.f32 0.0, %v2573
  %v2575 = vpop.f32.mrb[0].mxu0
  %2576 = vmatprep.mubr.f32.mxu0 0.0
  %2577 = vmatmul.mubr.f32.gmra.mrb[0].mxu0 %v294
  %v2578 = vpop.f32.mrb[0].mxu0
  %v2579 = vadd.f32 0.0, %v2578
  %v2580 = vpop.f32.mrb[0].mxu0
  %2581 = vmatprep.mubr.f32.mxu0 0.0
  %2582 = vmatmul.mubr.f32.gmra.mrb[0].mxu0 %v297
  %v2583 = vpop.f32.mrb[0].mxu0
  %v2584 = vadd.f32 0.0, %v2583
  %v2585 = vpop.f32.mrb[0].mxu0
  %2586 = vmatprep.mubr.f32.mxu0 0.0
  %2587 = vmatmul.mubr.f32.gmra.mrb[0].mxu0 %v300
  %v2588 = vpop.f32.mrb[0].mxu0
  %v2589 = vadd.f32 0.0, %v2588
  %v2590 = vpop.f32.mrb[0].mxu0
  %2591 = vmatprep.mubr.f32.mxu0 0.0
  %2592 = vmatmul.mubr.f32.gmra.mrb[0].mxu0 %v303
  %v2593 = vpop.f32.mrb[0].mxu0
  %v2594 = vadd.f32 0.0, %v2593
  %v2595 = vpop.f32.mrb[0].mxu0
  %2596 = vmatprep.mubr.f32.mxu0 0.0
  %2597 = vmatmul.mubr.f32.gmra.mrb[0].mxu0 %v306
  %v2598 = vpop.f32.mrb[0].mxu0
  %v2599 = vadd.f32 0.0, %v2598
  %v2600 = vpop.f32.mrb[0].mxu0
  %2601 = vmatprep.mubr.f32.mxu0 0.0
  %2602 = vmatmul.mubr.f32.gmra.mrb[0].mxu0 %v309
  %v2603 = vpop.f32.mrb[0].mxu0
  %v2604 = vadd.f32 0.0, %v2603
  %v2605 = vpop.f32.mrb[0].mxu0
  %2606 = vmatprep.mubr.f32.mxu0 0.0
  %2607 = vmatmul.mubr.f32.gmra.mrb[0].mxu0 %v312
  %v2608 = vpop.f32.mrb[0].mxu0
  %v2609 = vadd.f32 0.0, %v2608
  %v2610 = vpop.f32.mrb[0].mxu0
  %2611 = vmatprep.mubr.f32.mxu0 0.0
  %2612 = vmatmul.mubr.f32.gmra.mrb[0].mxu0 %v315
  %v2613 = vpop.f32.mrb[0].mxu0
  %v2614 = vadd.f32 0.0, %v2613
  %v2615 = vpop.f32.mrb[0].mxu0
  %2616 = vdwg.mxu0
  %v2618 = vsel %vm447, %v2478, 0
  %v2621 = vsel %vm447, %v2479, 0
  %v2624 = vsel %vm447, %v2480, 0
  %v2627 = vsel %vm447, %v2481, 0
  %v2630 = vsel %vm447, %v2482, 0
  %v2633 = vsel %vm447, %v2483, 0
  %v2636 = vsel %vm447, %v2484, 0
  %v2639 = vsel %vm469, %v2614, 0
  %2641 = vmatprep.subr.mxu0 0.0
  %2642 = vmatpush1.msra.mxu0 %v2554
  %2643 = vmatprep.subr.mxu0 0.0
  %2644 = vmatpush1.msra.mxu0 %v2559
  %2645 = vmatprep.subr.mxu0 0.0
  %2646 = vmatpush1.msra.mxu0 %v2564
  %2647 = vmatprep.subr.mxu0 0.0
  %2648 = vmatpush1.msra.mxu0 %v2569
  %2649 = vmatprep.subr.mxu0 0.0
  %2650 = vmatpush1.msra.mxu0 %v2574
  %2651 = vmatprep.subr.mxu0 0.0
  %2652 = vmatpush1.msra.mxu0 %v2579
  %2653 = vmatprep.subr.mxu0 0.0
  %2654 = vmatpush1.msra.mxu0 %v2584
  %2655 = vmatprep.subr.mxu0 0.0
  %2656 = vmatpush1.msra.mxu0 %v2589
  %2657 = vmatprep.subr.mxu0 0.0
  %2658 = vmatpush1.msra.mxu0 %v2594
  %2659 = vmatprep.subr.mxu0 0.0
  %2660 = vmatpush1.msra.mxu0 %v2599
  %2661 = vmatprep.subr.mxu0 0.0
  %2662 = vmatpush1.msra.mxu0 %v2604
  %2663 = vmatprep.subr.mxu0 0.0
  %2664 = vmatpush1.msra.mxu0 %v2609
  %2665 = vmatprep.subr.mxu0 0.0
  %2666 = vmatpush1.msra.mxu0 %v2639
  %2667 = vmatprep.subr.mxu0 0.0
  %2668 = vmatpush1.msra.mxu0 0.0
  %2669 = vmatprep.subr.mxu0 0.0
  %2670 = vmatpush1.msra.mxu0 0.0
  %2671 = vmatprep.subr.mxu0 0.0
  %2672 = vmatpush1.msra.mxu0 0.0
  %2673 = vmatprep.subr.mxu0 0.0
  %2674 = vmatpush1.msra.mxu0 0.0
  %2675 = vmatprep.subr.mxu0 0.0
  %2676 = vmatpush1.msra.mxu0 0.0
  %2677 = vmatprep.subr.mxu0 0.0
  %2678 = vmatpush1.msra.mxu0 0.0
  %2679 = vmatprep.subr.mxu0 0.0
  %2680 = vmatpush1.msra.mxu0 0.0
  %2681 = vmatprep.subr.mxu0 0.0
  %2682 = vmatpush1.msra.mxu0 0.0
  %2683 = vmatprep.subr.mxu0 0.0
  %2684 = vmatpush1.msra.mxu0 0.0
  %2685 = vmatprep.subr.mxu0 0.0
  %2686 = vmatpush1.msra.mxu0 0.0
  %2687 = vmatprep.subr.mxu0 0.0
  %2688 = vmatpush1.msra.mxu0 0.0
  %2689 = vmatprep.subr.mxu0 0.0
  %2690 = vmatpush1.msra.mxu0 0.0
  %2691 = vmatprep.subr.mxu0 0.0
  %2692 = vmatpush1.msra.mxu0 0.0
  %2693 = vmatprep.subr.mxu0 0.0
  %2694 = vmatpush1.msra.mxu0 0.0
  %2695 = vmatprep.subr.mxu0 0.0
  %2696 = vmatpush1.msra.mxu0 0.0
  %2697 = vmatprep.subr.mxu0 0.0
  %2698 = vmatpush1.msra.mxu0 0.0
  %2699 = vmatprep.subr.mxu0 0.0
  %2700 = vmatpush1.msra.mxu0 0.0
  %2701 = vmatprep.subr.mxu0 0.0
  %2702 = vmatpush1.msra.mxu0 0.0
  %2703 = vmatprep.subr.mxu0 0.0
  %2704 = vmatpush1.msra.mxu0 0.0
  %2705 = vmatprep.mubr.f32.mxu0 0.0
  %2706 = vmatmul.mubr.f32.gmra.mrb[0].mxu0 %v2618
  %v2707 = vpop.f32.mrb[0].mxu0
  %v2708 = vadd.f32 0.0, %v2707
  %v2709 = vpop.f32.mrb[0].mxu0
  %2710 = vmatprep.mubr.f32.mxu0 0.0
  %2711 = vmatmul.mubr.f32.gmra.mrb[0].mxu0 %v2621
  %v2712 = vpop.f32.mrb[0].mxu0
  %v2713 = vadd.f32 0.0, %v2712
  %v2714 = vpop.f32.mrb[0].mxu0
  %2715 = vmatprep.mubr.f32.mxu0 0.0
  %2716 = vmatmul.mubr.f32.gmra.mrb[0].mxu0 %v2624
  %v2717 = vpop.f32.mrb[0].mxu0
  %v2718 = vadd.f32 0.0, %v2717
  %v2719 = vpop.f32.mrb[0].mxu0
  %2720 = vmatprep.mubr.f32.mxu0 0.0
  %2721 = vmatmul.mubr.f32.gmra.mrb[0].mxu0 %v2627
  %v2722 = vpop.f32.mrb[0].mxu0
  %v2723 = vadd.f32 0.0, %v2722
  %v2724 = vpop.f32.mrb[0].mxu0
  %2725 = vmatprep.mubr.f32.mxu0 0.0
  %2726 = vmatmul.mubr.f32.gmra.mrb[0].mxu0 %v2630
  %v2727 = vpop.f32.mrb[0].mxu0
  %v2728 = vadd.f32 0.0, %v2727
  %v2729 = vpop.f32.mrb[0].mxu0
  %2730 = vmatprep.mubr.f32.mxu0 0.0
  %2731 = vmatmul.mubr.f32.gmra.mrb[0].mxu0 %v2633
  %v2732 = vpop.f32.mrb[0].mxu0
  %v2733 = vadd.f32 0.0, %v2732
  %v2734 = vpop.f32.mrb[0].mxu0
  %2735 = vmatprep.mubr.f32.mxu0 0.0
  %2736 = vmatmul.mubr.f32.gmra.mrb[0].mxu0 %v2636
  %v2737 = vpop.f32.mrb[0].mxu0
  %v2738 = vadd.f32 0.0, %v2737
  %v2739 = vpop.f32.mrb[0].mxu0
  %2740 = vdwg.mxu0
  %v2741 = vadd.f32 %v2470, %v2708
  %v2742 = vadd.f32 %v2471, %v2713
  %v2743 = vadd.f32 %v2472, %v2718
  %v2744 = vadd.f32 %v2473, %v2723
  %v2745 = vadd.f32 %v2474, %v2728
  %v2746 = vadd.f32 %v2475, %v2733
  %v2747 = vadd.f32 %v2476, %v2738
  %v2748 = vmax.f32 %v2741, 0.0
  %v2749 = vmax.f32 %v2742, 0.0
  %v2750 = vmax.f32 %v2743, 0.0
  %v2751 = vmax.f32 %v2744, 0.0
  %v2752 = vmax.f32 %v2745, 0.0
  %v2753 = vmax.f32 %v2746, 0.0
  %v2754 = vmax.f32 %v2747, 0.0
  %2755 = vst.msk [vmem:[#allocation2] sm:$0xff] %vm277, %v2748
  %2756 = vst.msk [vmem:[#allocation2 + $0x8] sm:$0xff] %vm277, %v2749
  %2757 = vst.msk [vmem:[#allocation2 + $0x10] sm:$0xff] %vm277, %v2750
  %2758 = vst.msk [vmem:[#allocation2 + $0x18] sm:$0xff] %vm277, %v2751
  %2759 = vst.msk [vmem:[#allocation2 + $0x20] sm:$0xff] %vm277, %v2752
  %2760 = vst.msk [vmem:[#allocation2 + $0x28] sm:$0xff] %vm277, %v2753
  %vm2761 = vcmask 58368
  %2762 = vst.msk [vmem:[#allocation2 + $0x30] sm:$0x3] %vm2761, %v2754
  %v2763 = vld [vmem:[%s7] sm:$0x1]
  %v2765 = vlaneseq
  %v2766 = vshrl.u32 %v2765, 7
  %v2767 = vsub.s32 0, %v2766
  %v2768 = vrot.slane %v2763, %v2767
  %v2770 = vadd.f32 %v2768, 0.0
  %v2771 = vld [vmem:[#allocation2] sm:$0x3]
  %v2772 = vld [vmem:[%s6] sm:$0xff]
  %v2774 = vsel %vm277, %v2771, 0
  %2776 = vmatprep.subr.mxu0 0.0
  %2777 = vmatpush1.msra.mxu0 %v2772
  %2778 = vmatprep.subr.mxu0 0.0
  %2779 = vmatpush1.msra.mxu0 0.0
  %2780 = vmatprep.subr.mxu0 0.0
  %2781 = vmatpush1.msra.mxu0 0.0
  %2782 = vmatprep.subr.mxu0 0.0
  %2783 = vmatpush1.msra.mxu0 0.0
  %2784 = vmatprep.subr.mxu0 0.0
  %2785 = vmatpush1.msra.mxu0 0.0
  %2786 = vmatprep.subr.mxu0 0.0
  %2787 = vmatpush1.msra.mxu0 0.0
  %2788 = vmatprep.subr.mxu0 0.0
  %2789 = vmatpush1.msra.mxu0 0.0
  %2790 = vmatprep.subr.mxu0 0.0
  %2791 = vmatpush1.msra.mxu0 0.0
  %2792 = vmatprep.subr.mxu0 0.0
  %2793 = vmatpush1.msra.mxu0 0.0
  %2794 = vmatprep.subr.mxu0 0.0
  %2795 = vmatpush1.msra.mxu0 0.0
  %2796 = vmatprep.subr.mxu0 0.0
  %2797 = vmatpush1.msra.mxu0 0.0
  %2798 = vmatprep.subr.mxu0 0.0
  %2799 = vmatpush1.msra.mxu0 0.0
  %2800 = vmatprep.subr.mxu0 0.0
  %2801 = vmatpush1.msra.mxu0 0.0
  %2802 = vmatprep.subr.mxu0 0.0
  %2803 = vmatpush1.msra.mxu0 0.0
  %2804 = vmatprep.subr.mxu0 0.0
  %2805 = vmatpush1.msra.mxu0 0.0
  %2806 = vmatprep.subr.mxu0 0.0
  %2807 = vmatpush1.msra.mxu0 0.0
  %2808 = vmatprep.subr.mxu0 0.0
  %2809 = vmatpush1.msra.mxu0 0.0
  %2810 = vmatprep.subr.mxu0 0.0
  %2811 = vmatpush1.msra.mxu0 0.0
  %2812 = vmatprep.subr.mxu0 0.0
  %2813 = vmatpush1.msra.mxu0 0.0
  %2814 = vmatprep.subr.mxu0 0.0
  %2815 = vmatpush1.msra.mxu0 0.0
  %2816 = vmatprep.subr.mxu0 0.0
  %2817 = vmatpush1.msra.mxu0 0.0
  %2818 = vmatprep.subr.mxu0 0.0
  %2819 = vmatpush1.msra.mxu0 0.0
  %2820 = vmatprep.subr.mxu0 0.0
  %2821 = vmatpush1.msra.mxu0 0.0
  %2822 = vmatprep.subr.mxu0 0.0
  %2823 = vmatpush1.msra.mxu0 0.0
  %2824 = vmatprep.subr.mxu0 0.0
  %2825 = vmatpush1.msra.mxu0 0.0
  %2826 = vmatprep.subr.mxu0 0.0
  %2827 = vmatpush1.msra.mxu0 0.0
  %2828 = vmatprep.subr.mxu0 0.0
  %2829 = vmatpush1.msra.mxu0 0.0
  %2830 = vmatprep.subr.mxu0 0.0
  %2831 = vmatpush1.msra.mxu0 0.0
  %2832 = vmatprep.subr.mxu0 0.0
  %2833 = vmatpush1.msra.mxu0 0.0
  %2834 = vmatprep.subr.mxu0 0.0
  %2835 = vmatpush1.msra.mxu0 0.0
  %2836 = vmatprep.subr.mxu0 0.0
  %2837 = vmatpush1.msra.mxu0 0.0
  %2838 = vmatprep.subr.mxu0 0.0
  %2839 = vmatpush1.msra.mxu0 0.0
  %2840 = vmatprep.mubr.f32.mxu0 0.0
  %2841 = vmatmul.mubr.f32.gmra.mrb[0].mxu0 %v2774
  %v2842 = vpop.f32.mrb[0].mxu0
  %v2843 = vadd.f32 0.0, %v2842
  %v2844 = vpop.f32.mrb[0].mxu0
  %2845 = vdwg.mxu0
  %v2846 = vadd.f32 %v2770, %v2843
  %v2847 = vld [vmem:[#allocation2 + $0x2] sm:$0x3]
  %s2848 = scalar_lea.vmem %s6, 8
  %v2849 = vld [vmem:[%s2848] sm:$0xff]
  %v2851 = vsel %vm277, %v2847, 0
  %2853 = vmatprep.subr.mxu0 0.0
  %2854 = vmatpush1.msra.mxu0 %v2849
  %2855 = vmatprep.subr.mxu0 0.0
  %2856 = vmatpush1.msra.mxu0 0.0
  %2857 = vmatprep.subr.mxu0 0.0
  %2858 = vmatpush1.msra.mxu0 0.0
  %2859 = vmatprep.subr.mxu0 0.0
  %2860 = vmatpush1.msra.mxu0 0.0
  %2861 = vmatprep.subr.mxu0 0.0
  %2862 = vmatpush1.msra.mxu0 0.0
  %2863 = vmatprep.subr.mxu0 0.0
  %2864 = vmatpush1.msra.mxu0 0.0
  %2865 = vmatprep.subr.mxu0 0.0
  %2866 = vmatpush1.msra.mxu0 0.0
  %2867 = vmatprep.subr.mxu0 0.0
  %2868 = vmatpush1.msra.mxu0 0.0
  %2869 = vmatprep.subr.mxu0 0.0
  %2870 = vmatpush1.msra.mxu0 0.0
  %2871 = vmatprep.subr.mxu0 0.0
  %2872 = vmatpush1.msra.mxu0 0.0
  %2873 = vmatprep.subr.mxu0 0.0
  %2874 = vmatpush1.msra.mxu0 0.0
  %2875 = vmatprep.subr.mxu0 0.0
  %2876 = vmatpush1.msra.mxu0 0.0
  %2877 = vmatprep.subr.mxu0 0.0
  %2878 = vmatpush1.msra.mxu0 0.0
  %2879 = vmatprep.subr.mxu0 0.0
  %2880 = vmatpush1.msra.mxu0 0.0
  %2881 = vmatprep.subr.mxu0 0.0
  %2882 = vmatpush1.msra.mxu0 0.0
  %2883 = vmatprep.subr.mxu0 0.0
  %2884 = vmatpush1.msra.mxu0 0.0
  %2885 = vmatprep.subr.mxu0 0.0
  %2886 = vmatpush1.msra.mxu0 0.0
  %2887 = vmatprep.subr.mxu0 0.0
  %2888 = vmatpush1.msra.mxu0 0.0
  %2889 = vmatprep.subr.mxu0 0.0
  %2890 = vmatpush1.msra.mxu0 0.0
  %2891 = vmatprep.subr.mxu0 0.0
  %2892 = vmatpush1.msra.mxu0 0.0
  %2893 = vmatprep.subr.mxu0 0.0
  %2894 = vmatpush1.msra.mxu0 0.0
  %2895 = vmatprep.subr.mxu0 0.0
  %2896 = vmatpush1.msra.mxu0 0.0
  %2897 = vmatprep.subr.mxu0 0.0
  %2898 = vmatpush1.msra.mxu0 0.0
  %2899 = vmatprep.subr.mxu0 0.0
  %2900 = vmatpush1.msra.mxu0 0.0
  %2901 = vmatprep.subr.mxu0 0.0
  %2902 = vmatpush1.msra.mxu0 0.0
  %2903 = vmatprep.subr.mxu0 0.0
  %2904 = vmatpush1.msra.mxu0 0.0
  %2905 = vmatprep.subr.mxu0 0.0
  %2906 = vmatpush1.msra.mxu0 0.0
  %2907 = vmatprep.subr.mxu0 0.0
  %2908 = vmatpush1.msra.mxu0 0.0
  %2909 = vmatprep.subr.mxu0 0.0
  %2910 = vmatpush1.msra.mxu0 0.0
  %2911 = vmatprep.subr.mxu0 0.0
  %2912 = vmatpush1.msra.mxu0 0.0
  %2913 = vmatprep.subr.mxu0 0.0
  %2914 = vmatpush1.msra.mxu0 0.0
  %2915 = vmatprep.subr.mxu0 0.0
  %2916 = vmatpush1.msra.mxu0 0.0
  %2917 = vmatprep.mubr.f32.mxu0 0.0
  %2918 = vmatmul.mubr.f32.gmra.mrb[0].mxu0 %v2851
  %v2919 = vpop.f32.mrb[0].mxu0
  %v2920 = vadd.f32 0.0, %v2919
  %v2921 = vpop.f32.mrb[0].mxu0
  %2922 = vdwg.mxu0
  %v2923 = vadd.f32 %v2846, %v2920
  %v2924 = vld [vmem:[#allocation2 + $0x4] sm:$0x3]
  %s2925 = scalar_lea.vmem %s6, 16
  %v2926 = vld [vmem:[%s2925] sm:$0xff]
  %v2928 = vsel %vm277, %v2924, 0
  %2930 = vmatprep.subr.mxu0 0.0
  %2931 = vmatpush1.msra.mxu0 %v2926
  %2932 = vmatprep.subr.mxu0 0.0
  %2933 = vmatpush1.msra.mxu0 0.0
  %2934 = vmatprep.subr.mxu0 0.0
  %2935 = vmatpush1.msra.mxu0 0.0
  %2936 = vmatprep.subr.mxu0 0.0
  %2937 = vmatpush1.msra.mxu0 0.0
  %2938 = vmatprep.subr.mxu0 0.0
  %2939 = vmatpush1.msra.mxu0 0.0
  %2940 = vmatprep.subr.mxu0 0.0
  %2941 = vmatpush1.msra.mxu0 0.0
  %2942 = vmatprep.subr.mxu0 0.0
  %2943 = vmatpush1.msra.mxu0 0.0
  %2944 = vmatprep.subr.mxu0 0.0
  %2945 = vmatpush1.msra.mxu0 0.0
  %2946 = vmatprep.subr.mxu0 0.0
  %2947 = vmatpush1.msra.mxu0 0.0
  %2948 = vmatprep.subr.mxu0 0.0
  %2949 = vmatpush1.msra.mxu0 0.0
  %2950 = vmatprep.subr.mxu0 0.0
  %2951 = vmatpush1.msra.mxu0 0.0
  %2952 = vmatprep.subr.mxu0 0.0
  %2953 = vmatpush1.msra.mxu0 0.0
  %2954 = vmatprep.subr.mxu0 0.0
  %2955 = vmatpush1.msra.mxu0 0.0
  %2956 = vmatprep.subr.mxu0 0.0
  %2957 = vmatpush1.msra.mxu0 0.0
  %2958 = vmatprep.subr.mxu0 0.0
  %2959 = vmatpush1.msra.mxu0 0.0
  %2960 = vmatprep.subr.mxu0 0.0
  %2961 = vmatpush1.msra.mxu0 0.0
  %2962 = vmatprep.subr.mxu0 0.0
  %2963 = vmatpush1.msra.mxu0 0.0
  %2964 = vmatprep.subr.mxu0 0.0
  %2965 = vmatpush1.msra.mxu0 0.0
  %2966 = vmatprep.subr.mxu0 0.0
  %2967 = vmatpush1.msra.mxu0 0.0
  %2968 = vmatprep.subr.mxu0 0.0
  %2969 = vmatpush1.msra.mxu0 0.0
  %2970 = vmatprep.subr.mxu0 0.0
  %2971 = vmatpush1.msra.mxu0 0.0
  %2972 = vmatprep.subr.mxu0 0.0
  %2973 = vmatpush1.msra.mxu0 0.0
  %2974 = vmatprep.subr.mxu0 0.0
  %2975 = vmatpush1.msra.mxu0 0.0
  %2976 = vmatprep.subr.mxu0 0.0
  %2977 = vmatpush1.msra.mxu0 0.0
  %2978 = vmatprep.subr.mxu0 0.0
  %2979 = vmatpush1.msra.mxu0 0.0
  %2980 = vmatprep.subr.mxu0 0.0
  %2981 = vmatpush1.msra.mxu0 0.0
  %2982 = vmatprep.subr.mxu0 0.0
  %2983 = vmatpush1.msra.mxu0 0.0
  %2984 = vmatprep.subr.mxu0 0.0
  %2985 = vmatpush1.msra.mxu0 0.0
  %2986 = vmatprep.subr.mxu0 0.0
  %2987 = vmatpush1.msra.mxu0 0.0
  %2988 = vmatprep.subr.mxu0 0.0
  %2989 = vmatpush1.msra.mxu0 0.0
  %2990 = vmatprep.subr.mxu0 0.0
  %2991 = vmatpush1.msra.mxu0 0.0
  %2992 = vmatprep.subr.mxu0 0.0
  %2993 = vmatpush1.msra.mxu0 0.0
  %2994 = vmatprep.mubr.f32.mxu0 0.0
  %2995 = vmatmul.mubr.f32.gmra.mrb[0].mxu0 %v2928
  %v2996 = vpop.f32.mrb[0].mxu0
  %v2997 = vadd.f32 0.0, %v2996
  %v2998 = vpop.f32.mrb[0].mxu0
  %2999 = vdwg.mxu0
  %v3000 = vadd.f32 %v2923, %v2997
  %v3001 = vld [vmem:[#allocation2 + $0x6] sm:$0x3]
  %s3002 = scalar_lea.vmem %s6, 24
  %v3003 = vld [vmem:[%s3002] sm:$0xff]
  %v3005 = vsel %vm277, %v3001, 0
  %3007 = vmatprep.subr.mxu0 0.0
  %3008 = vmatpush1.msra.mxu0 %v3003
  %3009 = vmatprep.subr.mxu0 0.0
  %3010 = vmatpush1.msra.mxu0 0.0
  %3011 = vmatprep.subr.mxu0 0.0
  %3012 = vmatpush1.msra.mxu0 0.0
  %3013 = vmatprep.subr.mxu0 0.0
  %3014 = vmatpush1.msra.mxu0 0.0
  %3015 = vmatprep.subr.mxu0 0.0
  %3016 = vmatpush1.msra.mxu0 0.0
  %3017 = vmatprep.subr.mxu0 0.0
  %3018 = vmatpush1.msra.mxu0 0.0
  %3019 = vmatprep.subr.mxu0 0.0
  %3020 = vmatpush1.msra.mxu0 0.0
  %3021 = vmatprep.subr.mxu0 0.0
  %3022 = vmatpush1.msra.mxu0 0.0
  %3023 = vmatprep.subr.mxu0 0.0
  %3024 = vmatpush1.msra.mxu0 0.0
  %3025 = vmatprep.subr.mxu0 0.0
  %3026 = vmatpush1.msra.mxu0 0.0
  %3027 = vmatprep.subr.mxu0 0.0
  %3028 = vmatpush1.msra.mxu0 0.0
  %3029 = vmatprep.subr.mxu0 0.0
  %3030 = vmatpush1.msra.mxu0 0.0
  %3031 = vmatprep.subr.mxu0 0.0
  %3032 = vmatpush1.msra.mxu0 0.0
  %3033 = vmatprep.subr.mxu0 0.0
  %3034 = vmatpush1.msra.mxu0 0.0
  %3035 = vmatprep.subr.mxu0 0.0
  %3036 = vmatpush1.msra.mxu0 0.0
  %3037 = vmatprep.subr.mxu0 0.0
  %3038 = vmatpush1.msra.mxu0 0.0
  %3039 = vmatprep.subr.mxu0 0.0
  %3040 = vmatpush1.msra.mxu0 0.0
  %3041 = vmatprep.subr.mxu0 0.0
  %3042 = vmatpush1.msra.mxu0 0.0
  %3043 = vmatprep.subr.mxu0 0.0
  %3044 = vmatpush1.msra.mxu0 0.0
  %3045 = vmatprep.subr.mxu0 0.0
  %3046 = vmatpush1.msra.mxu0 0.0
  %3047 = vmatprep.subr.mxu0 0.0
  %3048 = vmatpush1.msra.mxu0 0.0
  %3049 = vmatprep.subr.mxu0 0.0
  %3050 = vmatpush1.msra.mxu0 0.0
  %3051 = vmatprep.subr.mxu0 0.0
  %3052 = vmatpush1.msra.mxu0 0.0
  %3053 = vmatprep.subr.mxu0 0.0
  %3054 = vmatpush1.msra.mxu0 0.0
  %3055 = vmatprep.subr.mxu0 0.0
  %3056 = vmatpush1.msra.mxu0 0.0
  %3057 = vmatprep.subr.mxu0 0.0
  %3058 = vmatpush1.msra.mxu0 0.0
  %3059 = vmatprep.subr.mxu0 0.0
  %3060 = vmatpush1.msra.mxu0 0.0
  %3061 = vmatprep.subr.mxu0 0.0
  %3062 = vmatpush1.msra.mxu0 0.0
  %3063 = vmatprep.subr.mxu0 0.0
  %3064 = vmatpush1.msra.mxu0 0.0
  %3065 = vmatprep.subr.mxu0 0.0
  %3066 = vmatpush1.msra.mxu0 0.0
  %3067 = vmatprep.subr.mxu0 0.0
  %3068 = vmatpush1.msra.mxu0 0.0
  %3069 = vmatprep.subr.mxu0 0.0
  %3070 = vmatpush1.msra.mxu0 0.0
  %3071 = vmatprep.mubr.f32.mxu0 0.0
  %3072 = vmatmul.mubr.f32.gmra.mrb[0].mxu0 %v3005
  %v3073 = vpop.f32.mrb[0].mxu0
  %v3074 = vadd.f32 0.0, %v3073
  %v3075 = vpop.f32.mrb[0].mxu0
  %3076 = vdwg.mxu0
  %v3077 = vadd.f32 %v3000, %v3074
  %v3078 = vld [vmem:[#allocation2 + $0x8] sm:$0x3]
  %s3079 = scalar_lea.vmem %s6, 32
  %v3080 = vld [vmem:[%s3079] sm:$0xff]
  %v3082 = vsel %vm277, %v3078, 0
  %3084 = vmatprep.subr.mxu0 0.0
  %3085 = vmatpush1.msra.mxu0 %v3080
  %3086 = vmatprep.subr.mxu0 0.0
  %3087 = vmatpush1.msra.mxu0 0.0
  %3088 = vmatprep.subr.mxu0 0.0
  %3089 = vmatpush1.msra.mxu0 0.0
  %3090 = vmatprep.subr.mxu0 0.0
  %3091 = vmatpush1.msra.mxu0 0.0
  %3092 = vmatprep.subr.mxu0 0.0
  %3093 = vmatpush1.msra.mxu0 0.0
  %3094 = vmatprep.subr.mxu0 0.0
  %3095 = vmatpush1.msra.mxu0 0.0
  %3096 = vmatprep.subr.mxu0 0.0
  %3097 = vmatpush1.msra.mxu0 0.0
  %3098 = vmatprep.subr.mxu0 0.0
  %3099 = vmatpush1.msra.mxu0 0.0
  %3100 = vmatprep.subr.mxu0 0.0
  %3101 = vmatpush1.msra.mxu0 0.0
  %3102 = vmatprep.subr.mxu0 0.0
  %3103 = vmatpush1.msra.mxu0 0.0
  %3104 = vmatprep.subr.mxu0 0.0
  %3105 = vmatpush1.msra.mxu0 0.0
  %3106 = vmatprep.subr.mxu0 0.0
  %3107 = vmatpush1.msra.mxu0 0.0
  %3108 = vmatprep.subr.mxu0 0.0
  %3109 = vmatpush1.msra.mxu0 0.0
  %3110 = vmatprep.subr.mxu0 0.0
  %3111 = vmatpush1.msra.mxu0 0.0
  %3112 = vmatprep.subr.mxu0 0.0
  %3113 = vmatpush1.msra.mxu0 0.0
  %3114 = vmatprep.subr.mxu0 0.0
  %3115 = vmatpush1.msra.mxu0 0.0
  %3116 = vmatprep.subr.mxu0 0.0
  %3117 = vmatpush1.msra.mxu0 0.0
  %3118 = vmatprep.subr.mxu0 0.0
  %3119 = vmatpush1.msra.mxu0 0.0
  %3120 = vmatprep.subr.mxu0 0.0
  %3121 = vmatpush1.msra.mxu0 0.0
  %3122 = vmatprep.subr.mxu0 0.0
  %3123 = vmatpush1.msra.mxu0 0.0
  %3124 = vmatprep.subr.mxu0 0.0
  %3125 = vmatpush1.msra.mxu0 0.0
  %3126 = vmatprep.subr.mxu0 0.0
  %3127 = vmatpush1.msra.mxu0 0.0
  %3128 = vmatprep.subr.mxu0 0.0
  %3129 = vmatpush1.msra.mxu0 0.0
  %3130 = vmatprep.subr.mxu0 0.0
  %3131 = vmatpush1.msra.mxu0 0.0
  %3132 = vmatprep.subr.mxu0 0.0
  %3133 = vmatpush1.msra.mxu0 0.0
  %3134 = vmatprep.subr.mxu0 0.0
  %3135 = vmatpush1.msra.mxu0 0.0
  %3136 = vmatprep.subr.mxu0 0.0
  %3137 = vmatpush1.msra.mxu0 0.0
  %3138 = vmatprep.subr.mxu0 0.0
  %3139 = vmatpush1.msra.mxu0 0.0
  %3140 = vmatprep.subr.mxu0 0.0
  %3141 = vmatpush1.msra.mxu0 0.0
  %3142 = vmatprep.subr.mxu0 0.0
  %3143 = vmatpush1.msra.mxu0 0.0
  %3144 = vmatprep.subr.mxu0 0.0
  %3145 = vmatpush1.msra.mxu0 0.0
  %3146 = vmatprep.subr.mxu0 0.0
  %3147 = vmatpush1.msra.mxu0 0.0
  %3148 = vmatprep.mubr.f32.mxu0 0.0
  %3149 = vmatmul.mubr.f32.gmra.mrb[0].mxu0 %v3082
  %v3150 = vpop.f32.mrb[0].mxu0
  %v3151 = vadd.f32 0.0, %v3150
  %v3152 = vpop.f32.mrb[0].mxu0
  %3153 = vdwg.mxu0
  %v3154 = vadd.f32 %v3077, %v3151
  %v3155 = vld [vmem:[#allocation2 + $0xa] sm:$0x3]
  %s3156 = scalar_lea.vmem %s6, 40
  %v3157 = vld [vmem:[%s3156] sm:$0xff]
  %v3159 = vsel %vm277, %v3155, 0
  %3161 = vmatprep.subr.mxu0 0.0
  %3162 = vmatpush1.msra.mxu0 %v3157
  %3163 = vmatprep.subr.mxu0 0.0
  %3164 = vmatpush1.msra.mxu0 0.0
  %3165 = vmatprep.subr.mxu0 0.0
  %3166 = vmatpush1.msra.mxu0 0.0
  %3167 = vmatprep.subr.mxu0 0.0
  %3168 = vmatpush1.msra.mxu0 0.0
  %3169 = vmatprep.subr.mxu0 0.0
  %3170 = vmatpush1.msra.mxu0 0.0
  %3171 = vmatprep.subr.mxu0 0.0
  %3172 = vmatpush1.msra.mxu0 0.0
  %3173 = vmatprep.subr.mxu0 0.0
  %3174 = vmatpush1.msra.mxu0 0.0
  %3175 = vmatprep.subr.mxu0 0.0
  %3176 = vmatpush1.msra.mxu0 0.0
  %3177 = vmatprep.subr.mxu0 0.0
  %3178 = vmatpush1.msra.mxu0 0.0
  %3179 = vmatprep.subr.mxu0 0.0
  %3180 = vmatpush1.msra.mxu0 0.0
  %3181 = vmatprep.subr.mxu0 0.0
  %3182 = vmatpush1.msra.mxu0 0.0
  %3183 = vmatprep.subr.mxu0 0.0
  %3184 = vmatpush1.msra.mxu0 0.0
  %3185 = vmatprep.subr.mxu0 0.0
  %3186 = vmatpush1.msra.mxu0 0.0
  %3187 = vmatprep.subr.mxu0 0.0
  %3188 = vmatpush1.msra.mxu0 0.0
  %3189 = vmatprep.subr.mxu0 0.0
  %3190 = vmatpush1.msra.mxu0 0.0
  %3191 = vmatprep.subr.mxu0 0.0
  %3192 = vmatpush1.msra.mxu0 0.0
  %3193 = vmatprep.subr.mxu0 0.0
  %3194 = vmatpush1.msra.mxu0 0.0
  %3195 = vmatprep.subr.mxu0 0.0
  %3196 = vmatpush1.msra.mxu0 0.0
  %3197 = vmatprep.subr.mxu0 0.0
  %3198 = vmatpush1.msra.mxu0 0.0
  %3199 = vmatprep.subr.mxu0 0.0
  %3200 = vmatpush1.msra.mxu0 0.0
  %3201 = vmatprep.subr.mxu0 0.0
  %3202 = vmatpush1.msra.mxu0 0.0
  %3203 = vmatprep.subr.mxu0 0.0
  %3204 = vmatpush1.msra.mxu0 0.0
  %3205 = vmatprep.subr.mxu0 0.0
  %3206 = vmatpush1.msra.mxu0 0.0
  %3207 = vmatprep.subr.mxu0 0.0
  %3208 = vmatpush1.msra.mxu0 0.0
  %3209 = vmatprep.subr.mxu0 0.0
  %3210 = vmatpush1.msra.mxu0 0.0
  %3211 = vmatprep.subr.mxu0 0.0
  %3212 = vmatpush1.msra.mxu0 0.0
  %3213 = vmatprep.subr.mxu0 0.0
  %3214 = vmatpush1.msra.mxu0 0.0
  %3215 = vmatprep.subr.mxu0 0.0
  %3216 = vmatpush1.msra.mxu0 0.0
  %3217 = vmatprep.subr.mxu0 0.0
  %3218 = vmatpush1.msra.mxu0 0.0
  %3219 = vmatprep.subr.mxu0 0.0
  %3220 = vmatpush1.msra.mxu0 0.0
  %3221 = vmatprep.subr.mxu0 0.0
  %3222 = vmatpush1.msra.mxu0 0.0
  %3223 = vmatprep.subr.mxu0 0.0
  %3224 = vmatpush1.msra.mxu0 0.0
  %3225 = vmatprep.mubr.f32.mxu0 0.0
  %3226 = vmatmul.mubr.f32.gmra.mrb[0].mxu0 %v3159
  %v3227 = vpop.f32.mrb[0].mxu0
  %v3228 = vadd.f32 0.0, %v3227
  %v3229 = vpop.f32.mrb[0].mxu0
  %3230 = vdwg.mxu0
  %v3231 = vadd.f32 %v3154, %v3228
  %v3232 = vld [vmem:[#allocation2 + $0xc] sm:$0x3]
  %s3233 = scalar_lea.vmem %s6, 48
  %v3234 = vld [vmem:[%s3233] sm:$0xff]
  %v3236 = vsel %vm277, %v3232, 0
  %3238 = vmatprep.subr.mxu0 0.0
  %3239 = vmatpush1.msra.mxu0 %v3234
  %3240 = vmatprep.subr.mxu0 0.0
  %3241 = vmatpush1.msra.mxu0 0.0
  %3242 = vmatprep.subr.mxu0 0.0
  %3243 = vmatpush1.msra.mxu0 0.0
  %3244 = vmatprep.subr.mxu0 0.0
  %3245 = vmatpush1.msra.mxu0 0.0
  %3246 = vmatprep.subr.mxu0 0.0
  %3247 = vmatpush1.msra.mxu0 0.0
  %3248 = vmatprep.subr.mxu0 0.0
  %3249 = vmatpush1.msra.mxu0 0.0
  %3250 = vmatprep.subr.mxu0 0.0
  %3251 = vmatpush1.msra.mxu0 0.0
  %3252 = vmatprep.subr.mxu0 0.0
  %3253 = vmatpush1.msra.mxu0 0.0
  %3254 = vmatprep.subr.mxu0 0.0
  %3255 = vmatpush1.msra.mxu0 0.0
  %3256 = vmatprep.subr.mxu0 0.0
  %3257 = vmatpush1.msra.mxu0 0.0
  %3258 = vmatprep.subr.mxu0 0.0
  %3259 = vmatpush1.msra.mxu0 0.0
  %3260 = vmatprep.subr.mxu0 0.0
  %3261 = vmatpush1.msra.mxu0 0.0
  %3262 = vmatprep.subr.mxu0 0.0
  %3263 = vmatpush1.msra.mxu0 0.0
  %3264 = vmatprep.subr.mxu0 0.0
  %3265 = vmatpush1.msra.mxu0 0.0
  %3266 = vmatprep.subr.mxu0 0.0
  %3267 = vmatpush1.msra.mxu0 0.0
  %3268 = vmatprep.subr.mxu0 0.0
  %3269 = vmatpush1.msra.mxu0 0.0
  %3270 = vmatprep.subr.mxu0 0.0
  %3271 = vmatpush1.msra.mxu0 0.0
  %3272 = vmatprep.subr.mxu0 0.0
  %3273 = vmatpush1.msra.mxu0 0.0
  %3274 = vmatprep.subr.mxu0 0.0
  %3275 = vmatpush1.msra.mxu0 0.0
  %3276 = vmatprep.subr.mxu0 0.0
  %3277 = vmatpush1.msra.mxu0 0.0
  %3278 = vmatprep.subr.mxu0 0.0
  %3279 = vmatpush1.msra.mxu0 0.0
  %3280 = vmatprep.subr.mxu0 0.0
  %3281 = vmatpush1.msra.mxu0 0.0
  %3282 = vmatprep.subr.mxu0 0.0
  %3283 = vmatpush1.msra.mxu0 0.0
  %3284 = vmatprep.subr.mxu0 0.0
  %3285 = vmatpush1.msra.mxu0 0.0
  %3286 = vmatprep.subr.mxu0 0.0
  %3287 = vmatpush1.msra.mxu0 0.0
  %3288 = vmatprep.subr.mxu0 0.0
  %3289 = vmatpush1.msra.mxu0 0.0
  %3290 = vmatprep.subr.mxu0 0.0
  %3291 = vmatpush1.msra.mxu0 0.0
  %3292 = vmatprep.subr.mxu0 0.0
  %3293 = vmatpush1.msra.mxu0 0.0
  %3294 = vmatprep.subr.mxu0 0.0
  %3295 = vmatpush1.msra.mxu0 0.0
  %3296 = vmatprep.subr.mxu0 0.0
  %3297 = vmatpush1.msra.mxu0 0.0
  %3298 = vmatprep.subr.mxu0 0.0
  %3299 = vmatpush1.msra.mxu0 0.0
  %3300 = vmatprep.subr.mxu0 0.0
  %3301 = vmatpush1.msra.mxu0 0.0
  %3302 = vmatprep.mubr.f32.mxu0 0.0
  %3303 = vmatmul.mubr.f32.gmra.mrb[0].mxu0 %v3236
  %v3304 = vpop.f32.mrb[0].mxu0
  %v3305 = vadd.f32 0.0, %v3304
  %v3306 = vpop.f32.mrb[0].mxu0
  %3307 = vdwg.mxu0
  %v3308 = vadd.f32 %v3231, %v3305
  %v3309 = vld [vmem:[#allocation2 + $0xe] sm:$0x3]
  %s3310 = scalar_lea.vmem %s6, 56
  %v3311 = vld [vmem:[%s3310] sm:$0xff]
  %v3313 = vsel %vm277, %v3309, 0
  %3315 = vmatprep.subr.mxu0 0.0
  %3316 = vmatpush1.msra.mxu0 %v3311
  %3317 = vmatprep.subr.mxu0 0.0
  %3318 = vmatpush1.msra.mxu0 0.0
  %3319 = vmatprep.subr.mxu0 0.0
  %3320 = vmatpush1.msra.mxu0 0.0
  %3321 = vmatprep.subr.mxu0 0.0
  %3322 = vmatpush1.msra.mxu0 0.0
  %3323 = vmatprep.subr.mxu0 0.0
  %3324 = vmatpush1.msra.mxu0 0.0
  %3325 = vmatprep.subr.mxu0 0.0
  %3326 = vmatpush1.msra.mxu0 0.0
  %3327 = vmatprep.subr.mxu0 0.0
  %3328 = vmatpush1.msra.mxu0 0.0
  %3329 = vmatprep.subr.mxu0 0.0
  %3330 = vmatpush1.msra.mxu0 0.0
  %3331 = vmatprep.subr.mxu0 0.0
  %3332 = vmatpush1.msra.mxu0 0.0
  %3333 = vmatprep.subr.mxu0 0.0
  %3334 = vmatpush1.msra.mxu0 0.0
  %3335 = vmatprep.subr.mxu0 0.0
  %3336 = vmatpush1.msra.mxu0 0.0
  %3337 = vmatprep.subr.mxu0 0.0
  %3338 = vmatpush1.msra.mxu0 0.0
  %3339 = vmatprep.subr.mxu0 0.0
  %3340 = vmatpush1.msra.mxu0 0.0
  %3341 = vmatprep.subr.mxu0 0.0
  %3342 = vmatpush1.msra.mxu0 0.0
  %3343 = vmatprep.subr.mxu0 0.0
  %3344 = vmatpush1.msra.mxu0 0.0
  %3345 = vmatprep.subr.mxu0 0.0
  %3346 = vmatpush1.msra.mxu0 0.0
  %3347 = vmatprep.subr.mxu0 0.0
  %3348 = vmatpush1.msra.mxu0 0.0
  %3349 = vmatprep.subr.mxu0 0.0
  %3350 = vmatpush1.msra.mxu0 0.0
  %3351 = vmatprep.subr.mxu0 0.0
  %3352 = vmatpush1.msra.mxu0 0.0
  %3353 = vmatprep.subr.mxu0 0.0
  %3354 = vmatpush1.msra.mxu0 0.0
  %3355 = vmatprep.subr.mxu0 0.0
  %3356 = vmatpush1.msra.mxu0 0.0
  %3357 = vmatprep.subr.mxu0 0.0
  %3358 = vmatpush1.msra.mxu0 0.0
  %3359 = vmatprep.subr.mxu0 0.0
  %3360 = vmatpush1.msra.mxu0 0.0
  %3361 = vmatprep.subr.mxu0 0.0
  %3362 = vmatpush1.msra.mxu0 0.0
  %3363 = vmatprep.subr.mxu0 0.0
  %3364 = vmatpush1.msra.mxu0 0.0
  %3365 = vmatprep.subr.mxu0 0.0
  %3366 = vmatpush1.msra.mxu0 0.0
  %3367 = vmatprep.subr.mxu0 0.0
  %3368 = vmatpush1.msra.mxu0 0.0
  %3369 = vmatprep.subr.mxu0 0.0
  %3370 = vmatpush1.msra.mxu0 0.0
  %3371 = vmatprep.subr.mxu0 0.0
  %3372 = vmatpush1.msra.mxu0 0.0
  %3373 = vmatprep.subr.mxu0 0.0
  %3374 = vmatpush1.msra.mxu0 0.0
  %3375 = vmatprep.subr.mxu0 0.0
  %3376 = vmatpush1.msra.mxu0 0.0
  %3377 = vmatprep.subr.mxu0 0.0
  %3378 = vmatpush1.msra.mxu0 0.0
  %3379 = vmatprep.mubr.f32.mxu0 0.0
  %3380 = vmatmul.mubr.f32.gmra.mrb[0].mxu0 %v3313
  %v3381 = vpop.f32.mrb[0].mxu0
  %v3382 = vadd.f32 0.0, %v3381
  %v3383 = vpop.f32.mrb[0].mxu0
  %3384 = vdwg.mxu0
  %v3385 = vadd.f32 %v3308, %v3382
  %v3386 = vld [vmem:[#allocation2 + $0x10] sm:$0x3]
  %s3387 = scalar_lea.vmem %s6, 64
  %v3388 = vld [vmem:[%s3387] sm:$0xff]
  %v3390 = vsel %vm277, %v3386, 0
  %3392 = vmatprep.subr.mxu0 0.0
  %3393 = vmatpush1.msra.mxu0 %v3388
  %3394 = vmatprep.subr.mxu0 0.0
  %3395 = vmatpush1.msra.mxu0 0.0
  %3396 = vmatprep.subr.mxu0 0.0
  %3397 = vmatpush1.msra.mxu0 0.0
  %3398 = vmatprep.subr.mxu0 0.0
  %3399 = vmatpush1.msra.mxu0 0.0
  %3400 = vmatprep.subr.mxu0 0.0
  %3401 = vmatpush1.msra.mxu0 0.0
  %3402 = vmatprep.subr.mxu0 0.0
  %3403 = vmatpush1.msra.mxu0 0.0
  %3404 = vmatprep.subr.mxu0 0.0
  %3405 = vmatpush1.msra.mxu0 0.0
  %3406 = vmatprep.subr.mxu0 0.0
  %3407 = vmatpush1.msra.mxu0 0.0
  %3408 = vmatprep.subr.mxu0 0.0
  %3409 = vmatpush1.msra.mxu0 0.0
  %3410 = vmatprep.subr.mxu0 0.0
  %3411 = vmatpush1.msra.mxu0 0.0
  %3412 = vmatprep.subr.mxu0 0.0
  %3413 = vmatpush1.msra.mxu0 0.0
  %3414 = vmatprep.subr.mxu0 0.0
  %3415 = vmatpush1.msra.mxu0 0.0
  %3416 = vmatprep.subr.mxu0 0.0
  %3417 = vmatpush1.msra.mxu0 0.0
  %3418 = vmatprep.subr.mxu0 0.0
  %3419 = vmatpush1.msra.mxu0 0.0
  %3420 = vmatprep.subr.mxu0 0.0
  %3421 = vmatpush1.msra.mxu0 0.0
  %3422 = vmatprep.subr.mxu0 0.0
  %3423 = vmatpush1.msra.mxu0 0.0
  %3424 = vmatprep.subr.mxu0 0.0
  %3425 = vmatpush1.msra.mxu0 0.0
  %3426 = vmatprep.subr.mxu0 0.0
  %3427 = vmatpush1.msra.mxu0 0.0
  %3428 = vmatprep.subr.mxu0 0.0
  %3429 = vmatpush1.msra.mxu0 0.0
  %3430 = vmatprep.subr.mxu0 0.0
  %3431 = vmatpush1.msra.mxu0 0.0
  %3432 = vmatprep.subr.mxu0 0.0
  %3433 = vmatpush1.msra.mxu0 0.0
  %3434 = vmatprep.subr.mxu0 0.0
  %3435 = vmatpush1.msra.mxu0 0.0
  %3436 = vmatprep.subr.mxu0 0.0
  %3437 = vmatpush1.msra.mxu0 0.0
  %3438 = vmatprep.subr.mxu0 0.0
  %3439 = vmatpush1.msra.mxu0 0.0
  %3440 = vmatprep.subr.mxu0 0.0
  %3441 = vmatpush1.msra.mxu0 0.0
  %3442 = vmatprep.subr.mxu0 0.0
  %3443 = vmatpush1.msra.mxu0 0.0
  %3444 = vmatprep.subr.mxu0 0.0
  %3445 = vmatpush1.msra.mxu0 0.0
  %3446 = vmatprep.subr.mxu0 0.0
  %3447 = vmatpush1.msra.mxu0 0.0
  %3448 = vmatprep.subr.mxu0 0.0
  %3449 = vmatpush1.msra.mxu0 0.0
  %3450 = vmatprep.subr.mxu0 0.0
  %3451 = vmatpush1.msra.mxu0 0.0
  %3452 = vmatprep.subr.mxu0 0.0
  %3453 = vmatpush1.msra.mxu0 0.0
  %3454 = vmatprep.subr.mxu0 0.0
  %3455 = vmatpush1.msra.mxu0 0.0
  %3456 = vmatprep.mubr.f32.mxu0 0.0
  %3457 = vmatmul.mubr.f32.gmra.mrb[0].mxu0 %v3390
  %v3458 = vpop.f32.mrb[0].mxu0
  %v3459 = vadd.f32 0.0, %v3458
  %v3460 = vpop.f32.mrb[0].mxu0
  %3461 = vdwg.mxu0
  %v3462 = vadd.f32 %v3385, %v3459
  %v3463 = vld [vmem:[#allocation2 + $0x12] sm:$0x3]
  %s3464 = scalar_lea.vmem %s6, 72
  %v3465 = vld [vmem:[%s3464] sm:$0xff]
  %v3467 = vsel %vm277, %v3463, 0
  %3469 = vmatprep.subr.mxu0 0.0
  %3470 = vmatpush1.msra.mxu0 %v3465
  %3471 = vmatprep.subr.mxu0 0.0
  %3472 = vmatpush1.msra.mxu0 0.0
  %3473 = vmatprep.subr.mxu0 0.0
  %3474 = vmatpush1.msra.mxu0 0.0
  %3475 = vmatprep.subr.mxu0 0.0
  %3476 = vmatpush1.msra.mxu0 0.0
  %3477 = vmatprep.subr.mxu0 0.0
  %3478 = vmatpush1.msra.mxu0 0.0
  %3479 = vmatprep.subr.mxu0 0.0
  %3480 = vmatpush1.msra.mxu0 0.0
  %3481 = vmatprep.subr.mxu0 0.0
  %3482 = vmatpush1.msra.mxu0 0.0
  %3483 = vmatprep.subr.mxu0 0.0
  %3484 = vmatpush1.msra.mxu0 0.0
  %3485 = vmatprep.subr.mxu0 0.0
  %3486 = vmatpush1.msra.mxu0 0.0
  %3487 = vmatprep.subr.mxu0 0.0
  %3488 = vmatpush1.msra.mxu0 0.0
  %3489 = vmatprep.subr.mxu0 0.0
  %3490 = vmatpush1.msra.mxu0 0.0
  %3491 = vmatprep.subr.mxu0 0.0
  %3492 = vmatpush1.msra.mxu0 0.0
  %3493 = vmatprep.subr.mxu0 0.0
  %3494 = vmatpush1.msra.mxu0 0.0
  %3495 = vmatprep.subr.mxu0 0.0
  %3496 = vmatpush1.msra.mxu0 0.0
  %3497 = vmatprep.subr.mxu0 0.0
  %3498 = vmatpush1.msra.mxu0 0.0
  %3499 = vmatprep.subr.mxu0 0.0
  %3500 = vmatpush1.msra.mxu0 0.0
  %3501 = vmatprep.subr.mxu0 0.0
  %3502 = vmatpush1.msra.mxu0 0.0
  %3503 = vmatprep.subr.mxu0 0.0
  %3504 = vmatpush1.msra.mxu0 0.0
  %3505 = vmatprep.subr.mxu0 0.0
  %3506 = vmatpush1.msra.mxu0 0.0
  %3507 = vmatprep.subr.mxu0 0.0
  %3508 = vmatpush1.msra.mxu0 0.0
  %3509 = vmatprep.subr.mxu0 0.0
  %3510 = vmatpush1.msra.mxu0 0.0
  %3511 = vmatprep.subr.mxu0 0.0
  %3512 = vmatpush1.msra.mxu0 0.0
  %3513 = vmatprep.subr.mxu0 0.0
  %3514 = vmatpush1.msra.mxu0 0.0
  %3515 = vmatprep.subr.mxu0 0.0
  %3516 = vmatpush1.msra.mxu0 0.0
  %3517 = vmatprep.subr.mxu0 0.0
  %3518 = vmatpush1.msra.mxu0 0.0
  %3519 = vmatprep.subr.mxu0 0.0
  %3520 = vmatpush1.msra.mxu0 0.0
  %3521 = vmatprep.subr.mxu0 0.0
  %3522 = vmatpush1.msra.mxu0 0.0
  %3523 = vmatprep.subr.mxu0 0.0
  %3524 = vmatpush1.msra.mxu0 0.0
  %3525 = vmatprep.subr.mxu0 0.0
  %3526 = vmatpush1.msra.mxu0 0.0
  %3527 = vmatprep.subr.mxu0 0.0
  %3528 = vmatpush1.msra.mxu0 0.0
  %3529 = vmatprep.subr.mxu0 0.0
  %3530 = vmatpush1.msra.mxu0 0.0
  %3531 = vmatprep.subr.mxu0 0.0
  %3532 = vmatpush1.msra.mxu0 0.0
  %3533 = vmatprep.mubr.f32.mxu0 0.0
  %3534 = vmatmul.mubr.f32.gmra.mrb[0].mxu0 %v3467
  %v3535 = vpop.f32.mrb[0].mxu0
  %v3536 = vadd.f32 0.0, %v3535
  %v3537 = vpop.f32.mrb[0].mxu0
  %3538 = vdwg.mxu0
  %v3539 = vadd.f32 %v3462, %v3536
  %v3540 = vld [vmem:[#allocation2 + $0x14] sm:$0x3]
  %s3541 = scalar_lea.vmem %s6, 80
  %v3542 = vld [vmem:[%s3541] sm:$0xff]
  %v3544 = vsel %vm277, %v3540, 0
  %3546 = vmatprep.subr.mxu0 0.0
  %3547 = vmatpush1.msra.mxu0 %v3542
  %3548 = vmatprep.subr.mxu0 0.0
  %3549 = vmatpush1.msra.mxu0 0.0
  %3550 = vmatprep.subr.mxu0 0.0
  %3551 = vmatpush1.msra.mxu0 0.0
  %3552 = vmatprep.subr.mxu0 0.0
  %3553 = vmatpush1.msra.mxu0 0.0
  %3554 = vmatprep.subr.mxu0 0.0
  %3555 = vmatpush1.msra.mxu0 0.0
  %3556 = vmatprep.subr.mxu0 0.0
  %3557 = vmatpush1.msra.mxu0 0.0
  %3558 = vmatprep.subr.mxu0 0.0
  %3559 = vmatpush1.msra.mxu0 0.0
  %3560 = vmatprep.subr.mxu0 0.0
  %3561 = vmatpush1.msra.mxu0 0.0
  %3562 = vmatprep.subr.mxu0 0.0
  %3563 = vmatpush1.msra.mxu0 0.0
  %3564 = vmatprep.subr.mxu0 0.0
  %3565 = vmatpush1.msra.mxu0 0.0
  %3566 = vmatprep.subr.mxu0 0.0
  %3567 = vmatpush1.msra.mxu0 0.0
  %3568 = vmatprep.subr.mxu0 0.0
  %3569 = vmatpush1.msra.mxu0 0.0
  %3570 = vmatprep.subr.mxu0 0.0
  %3571 = vmatpush1.msra.mxu0 0.0
  %3572 = vmatprep.subr.mxu0 0.0
  %3573 = vmatpush1.msra.mxu0 0.0
  %3574 = vmatprep.subr.mxu0 0.0
  %3575 = vmatpush1.msra.mxu0 0.0
  %3576 = vmatprep.subr.mxu0 0.0
  %3577 = vmatpush1.msra.mxu0 0.0
  %3578 = vmatprep.subr.mxu0 0.0
  %3579 = vmatpush1.msra.mxu0 0.0
  %3580 = vmatprep.subr.mxu0 0.0
  %3581 = vmatpush1.msra.mxu0 0.0
  %3582 = vmatprep.subr.mxu0 0.0
  %3583 = vmatpush1.msra.mxu0 0.0
  %3584 = vmatprep.subr.mxu0 0.0
  %3585 = vmatpush1.msra.mxu0 0.0
  %3586 = vmatprep.subr.mxu0 0.0
  %3587 = vmatpush1.msra.mxu0 0.0
  %3588 = vmatprep.subr.mxu0 0.0
  %3589 = vmatpush1.msra.mxu0 0.0
  %3590 = vmatprep.subr.mxu0 0.0
  %3591 = vmatpush1.msra.mxu0 0.0
  %3592 = vmatprep.subr.mxu0 0.0
  %3593 = vmatpush1.msra.mxu0 0.0
  %3594 = vmatprep.subr.mxu0 0.0
  %3595 = vmatpush1.msra.mxu0 0.0
  %3596 = vmatprep.subr.mxu0 0.0
  %3597 = vmatpush1.msra.mxu0 0.0
  %3598 = vmatprep.subr.mxu0 0.0
  %3599 = vmatpush1.msra.mxu0 0.0
  %3600 = vmatprep.subr.mxu0 0.0
  %3601 = vmatpush1.msra.mxu0 0.0
  %3602 = vmatprep.subr.mxu0 0.0
  %3603 = vmatpush1.msra.mxu0 0.0
  %3604 = vmatprep.subr.mxu0 0.0
  %3605 = vmatpush1.msra.mxu0 0.0
  %3606 = vmatprep.subr.mxu0 0.0
  %3607 = vmatpush1.msra.mxu0 0.0
  %3608 = vmatprep.subr.mxu0 0.0
  %3609 = vmatpush1.msra.mxu0 0.0
  %3610 = vmatprep.mubr.f32.mxu0 0.0
  %3611 = vmatmul.mubr.f32.gmra.mrb[0].mxu0 %v3544
  %v3612 = vpop.f32.mrb[0].mxu0
  %v3613 = vadd.f32 0.0, %v3612
  %v3614 = vpop.f32.mrb[0].mxu0
  %3615 = vdwg.mxu0
  %v3616 = vadd.f32 %v3539, %v3613
  %v3617 = vld [vmem:[#allocation2 + $0x16] sm:$0x3]
  %s3618 = scalar_lea.vmem %s6, 88
  %v3619 = vld [vmem:[%s3618] sm:$0xff]
  %v3621 = vsel %vm277, %v3617, 0
  %3623 = vmatprep.subr.mxu0 0.0
  %3624 = vmatpush1.msra.mxu0 %v3619
  %3625 = vmatprep.subr.mxu0 0.0
  %3626 = vmatpush1.msra.mxu0 0.0
  %3627 = vmatprep.subr.mxu0 0.0
  %3628 = vmatpush1.msra.mxu0 0.0
  %3629 = vmatprep.subr.mxu0 0.0
  %3630 = vmatpush1.msra.mxu0 0.0
  %3631 = vmatprep.subr.mxu0 0.0
  %3632 = vmatpush1.msra.mxu0 0.0
  %3633 = vmatprep.subr.mxu0 0.0
  %3634 = vmatpush1.msra.mxu0 0.0
  %3635 = vmatprep.subr.mxu0 0.0
  %3636 = vmatpush1.msra.mxu0 0.0
  %3637 = vmatprep.subr.mxu0 0.0
  %3638 = vmatpush1.msra.mxu0 0.0
  %3639 = vmatprep.subr.mxu0 0.0
  %3640 = vmatpush1.msra.mxu0 0.0
  %3641 = vmatprep.subr.mxu0 0.0
  %3642 = vmatpush1.msra.mxu0 0.0
  %3643 = vmatprep.subr.mxu0 0.0
  %3644 = vmatpush1.msra.mxu0 0.0
  %3645 = vmatprep.subr.mxu0 0.0
  %3646 = vmatpush1.msra.mxu0 0.0
  %3647 = vmatprep.subr.mxu0 0.0
  %3648 = vmatpush1.msra.mxu0 0.0
  %3649 = vmatprep.subr.mxu0 0.0
  %3650 = vmatpush1.msra.mxu0 0.0
  %3651 = vmatprep.subr.mxu0 0.0
  %3652 = vmatpush1.msra.mxu0 0.0
  %3653 = vmatprep.subr.mxu0 0.0
  %3654 = vmatpush1.msra.mxu0 0.0
  %3655 = vmatprep.subr.mxu0 0.0
  %3656 = vmatpush1.msra.mxu0 0.0
  %3657 = vmatprep.subr.mxu0 0.0
  %3658 = vmatpush1.msra.mxu0 0.0
  %3659 = vmatprep.subr.mxu0 0.0
  %3660 = vmatpush1.msra.mxu0 0.0
  %3661 = vmatprep.subr.mxu0 0.0
  %3662 = vmatpush1.msra.mxu0 0.0
  %3663 = vmatprep.subr.mxu0 0.0
  %3664 = vmatpush1.msra.mxu0 0.0
  %3665 = vmatprep.subr.mxu0 0.0
  %3666 = vmatpush1.msra.mxu0 0.0
  %3667 = vmatprep.subr.mxu0 0.0
  %3668 = vmatpush1.msra.mxu0 0.0
  %3669 = vmatprep.subr.mxu0 0.0
  %3670 = vmatpush1.msra.mxu0 0.0
  %3671 = vmatprep.subr.mxu0 0.0
  %3672 = vmatpush1.msra.mxu0 0.0
  %3673 = vmatprep.subr.mxu0 0.0
  %3674 = vmatpush1.msra.mxu0 0.0
  %3675 = vmatprep.subr.mxu0 0.0
  %3676 = vmatpush1.msra.mxu0 0.0
  %3677 = vmatprep.subr.mxu0 0.0
  %3678 = vmatpush1.msra.mxu0 0.0
  %3679 = vmatprep.subr.mxu0 0.0
  %3680 = vmatpush1.msra.mxu0 0.0
  %3681 = vmatprep.subr.mxu0 0.0
  %3682 = vmatpush1.msra.mxu0 0.0
  %3683 = vmatprep.subr.mxu0 0.0
  %3684 = vmatpush1.msra.mxu0 0.0
  %3685 = vmatprep.subr.mxu0 0.0
  %3686 = vmatpush1.msra.mxu0 0.0
  %3687 = vmatprep.mubr.f32.mxu0 0.0
  %3688 = vmatmul.mubr.f32.gmra.mrb[0].mxu0 %v3621
  %v3689 = vpop.f32.mrb[0].mxu0
  %v3690 = vadd.f32 0.0, %v3689
  %v3691 = vpop.f32.mrb[0].mxu0
  %3692 = vdwg.mxu0
  %v3693 = vadd.f32 %v3616, %v3690
  %v3694 = vld [vmem:[#allocation2 + $0x18] sm:$0x3]
  %s3695 = scalar_lea.vmem %s6, 96
  %v3696 = vld [vmem:[%s3695] sm:$0xff]
  %v3698 = vsel %vm277, %v3694, 0
  %3700 = vmatprep.subr.mxu0 0.0
  %3701 = vmatpush1.msra.mxu0 %v3696
  %3702 = vmatprep.subr.mxu0 0.0
  %3703 = vmatpush1.msra.mxu0 0.0
  %3704 = vmatprep.subr.mxu0 0.0
  %3705 = vmatpush1.msra.mxu0 0.0
  %3706 = vmatprep.subr.mxu0 0.0
  %3707 = vmatpush1.msra.mxu0 0.0
  %3708 = vmatprep.subr.mxu0 0.0
  %3709 = vmatpush1.msra.mxu0 0.0
  %3710 = vmatprep.subr.mxu0 0.0
  %3711 = vmatpush1.msra.mxu0 0.0
  %3712 = vmatprep.subr.mxu0 0.0
  %3713 = vmatpush1.msra.mxu0 0.0
  %3714 = vmatprep.subr.mxu0 0.0
  %3715 = vmatpush1.msra.mxu0 0.0
  %3716 = vmatprep.subr.mxu0 0.0
  %3717 = vmatpush1.msra.mxu0 0.0
  %3718 = vmatprep.subr.mxu0 0.0
  %3719 = vmatpush1.msra.mxu0 0.0
  %3720 = vmatprep.subr.mxu0 0.0
  %3721 = vmatpush1.msra.mxu0 0.0
  %3722 = vmatprep.subr.mxu0 0.0
  %3723 = vmatpush1.msra.mxu0 0.0
  %3724 = vmatprep.subr.mxu0 0.0
  %3725 = vmatpush1.msra.mxu0 0.0
  %3726 = vmatprep.subr.mxu0 0.0
  %3727 = vmatpush1.msra.mxu0 0.0
  %3728 = vmatprep.subr.mxu0 0.0
  %3729 = vmatpush1.msra.mxu0 0.0
  %3730 = vmatprep.subr.mxu0 0.0
  %3731 = vmatpush1.msra.mxu0 0.0
  %3732 = vmatprep.subr.mxu0 0.0
  %3733 = vmatpush1.msra.mxu0 0.0
  %3734 = vmatprep.subr.mxu0 0.0
  %3735 = vmatpush1.msra.mxu0 0.0
  %3736 = vmatprep.subr.mxu0 0.0
  %3737 = vmatpush1.msra.mxu0 0.0
  %3738 = vmatprep.subr.mxu0 0.0
  %3739 = vmatpush1.msra.mxu0 0.0
  %3740 = vmatprep.subr.mxu0 0.0
  %3741 = vmatpush1.msra.mxu0 0.0
  %3742 = vmatprep.subr.mxu0 0.0
  %3743 = vmatpush1.msra.mxu0 0.0
  %3744 = vmatprep.subr.mxu0 0.0
  %3745 = vmatpush1.msra.mxu0 0.0
  %3746 = vmatprep.subr.mxu0 0.0
  %3747 = vmatpush1.msra.mxu0 0.0
  %3748 = vmatprep.subr.mxu0 0.0
  %3749 = vmatpush1.msra.mxu0 0.0
  %3750 = vmatprep.subr.mxu0 0.0
  %3751 = vmatpush1.msra.mxu0 0.0
  %3752 = vmatprep.subr.mxu0 0.0
  %3753 = vmatpush1.msra.mxu0 0.0
  %3754 = vmatprep.subr.mxu0 0.0
  %3755 = vmatpush1.msra.mxu0 0.0
  %3756 = vmatprep.subr.mxu0 0.0
  %3757 = vmatpush1.msra.mxu0 0.0
  %3758 = vmatprep.subr.mxu0 0.0
  %3759 = vmatpush1.msra.mxu0 0.0
  %3760 = vmatprep.subr.mxu0 0.0
  %3761 = vmatpush1.msra.mxu0 0.0
  %3762 = vmatprep.subr.mxu0 0.0
  %3763 = vmatpush1.msra.mxu0 0.0
  %3764 = vmatprep.mubr.f32.mxu0 0.0
  %3765 = vmatmul.mubr.f32.gmra.mrb[0].mxu0 %v3698
  %v3766 = vpop.f32.mrb[0].mxu0
  %v3767 = vadd.f32 0.0, %v3766
  %v3768 = vpop.f32.mrb[0].mxu0
  %3769 = vdwg.mxu0
  %v3770 = vadd.f32 %v3693, %v3767
  %v3771 = vld [vmem:[#allocation2 + $0x1a] sm:$0x3]
  %s3772 = scalar_lea.vmem %s6, 104
  %v3773 = vld [vmem:[%s3772] sm:$0xff]
  %v3775 = vsel %vm277, %v3771, 0
  %3777 = vmatprep.subr.mxu0 0.0
  %3778 = vmatpush1.msra.mxu0 %v3773
  %3779 = vmatprep.subr.mxu0 0.0
  %3780 = vmatpush1.msra.mxu0 0.0
  %3781 = vmatprep.subr.mxu0 0.0
  %3782 = vmatpush1.msra.mxu0 0.0
  %3783 = vmatprep.subr.mxu0 0.0
  %3784 = vmatpush1.msra.mxu0 0.0
  %3785 = vmatprep.subr.mxu0 0.0
  %3786 = vmatpush1.msra.mxu0 0.0
  %3787 = vmatprep.subr.mxu0 0.0
  %3788 = vmatpush1.msra.mxu0 0.0
  %3789 = vmatprep.subr.mxu0 0.0
  %3790 = vmatpush1.msra.mxu0 0.0
  %3791 = vmatprep.subr.mxu0 0.0
  %3792 = vmatpush1.msra.mxu0 0.0
  %3793 = vmatprep.subr.mxu0 0.0
  %3794 = vmatpush1.msra.mxu0 0.0
  %3795 = vmatprep.subr.mxu0 0.0
  %3796 = vmatpush1.msra.mxu0 0.0
  %3797 = vmatprep.subr.mxu0 0.0
  %3798 = vmatpush1.msra.mxu0 0.0
  %3799 = vmatprep.subr.mxu0 0.0
  %3800 = vmatpush1.msra.mxu0 0.0
  %3801 = vmatprep.subr.mxu0 0.0
  %3802 = vmatpush1.msra.mxu0 0.0
  %3803 = vmatprep.subr.mxu0 0.0
  %3804 = vmatpush1.msra.mxu0 0.0
  %3805 = vmatprep.subr.mxu0 0.0
  %3806 = vmatpush1.msra.mxu0 0.0
  %3807 = vmatprep.subr.mxu0 0.0
  %3808 = vmatpush1.msra.mxu0 0.0
  %3809 = vmatprep.subr.mxu0 0.0
  %3810 = vmatpush1.msra.mxu0 0.0
  %3811 = vmatprep.subr.mxu0 0.0
  %3812 = vmatpush1.msra.mxu0 0.0
  %3813 = vmatprep.subr.mxu0 0.0
  %3814 = vmatpush1.msra.mxu0 0.0
  %3815 = vmatprep.subr.mxu0 0.0
  %3816 = vmatpush1.msra.mxu0 0.0
  %3817 = vmatprep.subr.mxu0 0.0
  %3818 = vmatpush1.msra.mxu0 0.0
  %3819 = vmatprep.subr.mxu0 0.0
  %3820 = vmatpush1.msra.mxu0 0.0
  %3821 = vmatprep.subr.mxu0 0.0
  %3822 = vmatpush1.msra.mxu0 0.0
  %3823 = vmatprep.subr.mxu0 0.0
  %3824 = vmatpush1.msra.mxu0 0.0
  %3825 = vmatprep.subr.mxu0 0.0
  %3826 = vmatpush1.msra.mxu0 0.0
  %3827 = vmatprep.subr.mxu0 0.0
  %3828 = vmatpush1.msra.mxu0 0.0
  %3829 = vmatprep.subr.mxu0 0.0
  %3830 = vmatpush1.msra.mxu0 0.0
  %3831 = vmatprep.subr.mxu0 0.0
  %3832 = vmatpush1.msra.mxu0 0.0
  %3833 = vmatprep.subr.mxu0 0.0
  %3834 = vmatpush1.msra.mxu0 0.0
  %3835 = vmatprep.subr.mxu0 0.0
  %3836 = vmatpush1.msra.mxu0 0.0
  %3837 = vmatprep.subr.mxu0 0.0
  %3838 = vmatpush1.msra.mxu0 0.0
  %3839 = vmatprep.subr.mxu0 0.0
  %3840 = vmatpush1.msra.mxu0 0.0
  %3841 = vmatprep.mubr.f32.mxu0 0.0
  %3842 = vmatmul.mubr.f32.gmra.mrb[0].mxu0 %v3775
  %v3843 = vpop.f32.mrb[0].mxu0
  %v3844 = vadd.f32 0.0, %v3843
  %v3845 = vpop.f32.mrb[0].mxu0
  %3846 = vdwg.mxu0
  %v3847 = vadd.f32 %v3770, %v3844
  %v3848 = vld [vmem:[#allocation2 + $0x1c] sm:$0x3]
  %s3849 = scalar_lea.vmem %s6, 112
  %v3850 = vld [vmem:[%s3849] sm:$0xff]
  %v3852 = vsel %vm277, %v3848, 0
  %3854 = vmatprep.subr.mxu0 0.0
  %3855 = vmatpush1.msra.mxu0 %v3850
  %3856 = vmatprep.subr.mxu0 0.0
  %3857 = vmatpush1.msra.mxu0 0.0
  %3858 = vmatprep.subr.mxu0 0.0
  %3859 = vmatpush1.msra.mxu0 0.0
  %3860 = vmatprep.subr.mxu0 0.0
  %3861 = vmatpush1.msra.mxu0 0.0
  %3862 = vmatprep.subr.mxu0 0.0
  %3863 = vmatpush1.msra.mxu0 0.0
  %3864 = vmatprep.subr.mxu0 0.0
  %3865 = vmatpush1.msra.mxu0 0.0
  %3866 = vmatprep.subr.mxu0 0.0
  %3867 = vmatpush1.msra.mxu0 0.0
  %3868 = vmatprep.subr.mxu0 0.0
  %3869 = vmatpush1.msra.mxu0 0.0
  %3870 = vmatprep.subr.mxu0 0.0
  %3871 = vmatpush1.msra.mxu0 0.0
  %3872 = vmatprep.subr.mxu0 0.0
  %3873 = vmatpush1.msra.mxu0 0.0
  %3874 = vmatprep.subr.mxu0 0.0
  %3875 = vmatpush1.msra.mxu0 0.0
  %3876 = vmatprep.subr.mxu0 0.0
  %3877 = vmatpush1.msra.mxu0 0.0
  %3878 = vmatprep.subr.mxu0 0.0
  %3879 = vmatpush1.msra.mxu0 0.0
  %3880 = vmatprep.subr.mxu0 0.0
  %3881 = vmatpush1.msra.mxu0 0.0
  %3882 = vmatprep.subr.mxu0 0.0
  %3883 = vmatpush1.msra.mxu0 0.0
  %3884 = vmatprep.subr.mxu0 0.0
  %3885 = vmatpush1.msra.mxu0 0.0
  %3886 = vmatprep.subr.mxu0 0.0
  %3887 = vmatpush1.msra.mxu0 0.0
  %3888 = vmatprep.subr.mxu0 0.0
  %3889 = vmatpush1.msra.mxu0 0.0
  %3890 = vmatprep.subr.mxu0 0.0
  %3891 = vmatpush1.msra.mxu0 0.0
  %3892 = vmatprep.subr.mxu0 0.0
  %3893 = vmatpush1.msra.mxu0 0.0
  %3894 = vmatprep.subr.mxu0 0.0
  %3895 = vmatpush1.msra.mxu0 0.0
  %3896 = vmatprep.subr.mxu0 0.0
  %3897 = vmatpush1.msra.mxu0 0.0
  %3898 = vmatprep.subr.mxu0 0.0
  %3899 = vmatpush1.msra.mxu0 0.0
  %3900 = vmatprep.subr.mxu0 0.0
  %3901 = vmatpush1.msra.mxu0 0.0
  %3902 = vmatprep.subr.mxu0 0.0
  %3903 = vmatpush1.msra.mxu0 0.0
  %3904 = vmatprep.subr.mxu0 0.0
  %3905 = vmatpush1.msra.mxu0 0.0
  %3906 = vmatprep.subr.mxu0 0.0
  %3907 = vmatpush1.msra.mxu0 0.0
  %3908 = vmatprep.subr.mxu0 0.0
  %3909 = vmatpush1.msra.mxu0 0.0
  %3910 = vmatprep.subr.mxu0 0.0
  %3911 = vmatpush1.msra.mxu0 0.0
  %3912 = vmatprep.subr.mxu0 0.0
  %3913 = vmatpush1.msra.mxu0 0.0
  %3914 = vmatprep.subr.mxu0 0.0
  %3915 = vmatpush1.msra.mxu0 0.0
  %3916 = vmatprep.subr.mxu0 0.0
  %3917 = vmatpush1.msra.mxu0 0.0
  %3918 = vmatprep.mubr.f32.mxu0 0.0
  %3919 = vmatmul.mubr.f32.gmra.mrb[0].mxu0 %v3852
  %v3920 = vpop.f32.mrb[0].mxu0
  %v3921 = vadd.f32 0.0, %v3920
  %v3922 = vpop.f32.mrb[0].mxu0
  %3923 = vdwg.mxu0
  %v3924 = vadd.f32 %v3847, %v3921
  %v3925 = vld [vmem:[#allocation2 + $0x1e] sm:$0x3]
  %s3926 = scalar_lea.vmem %s6, 120
  %v3927 = vld [vmem:[%s3926] sm:$0xff]
  %v3929 = vsel %vm277, %v3925, 0
  %3931 = vmatprep.subr.mxu0 0.0
  %3932 = vmatpush1.msra.mxu0 %v3927
  %3933 = vmatprep.subr.mxu0 0.0
  %3934 = vmatpush1.msra.mxu0 0.0
  %3935 = vmatprep.subr.mxu0 0.0
  %3936 = vmatpush1.msra.mxu0 0.0
  %3937 = vmatprep.subr.mxu0 0.0
  %3938 = vmatpush1.msra.mxu0 0.0
  %3939 = vmatprep.subr.mxu0 0.0
  %3940 = vmatpush1.msra.mxu0 0.0
  %3941 = vmatprep.subr.mxu0 0.0
  %3942 = vmatpush1.msra.mxu0 0.0
  %3943 = vmatprep.subr.mxu0 0.0
  %3944 = vmatpush1.msra.mxu0 0.0
  %3945 = vmatprep.subr.mxu0 0.0
  %3946 = vmatpush1.msra.mxu0 0.0
  %3947 = vmatprep.subr.mxu0 0.0
  %3948 = vmatpush1.msra.mxu0 0.0
  %3949 = vmatprep.subr.mxu0 0.0
  %3950 = vmatpush1.msra.mxu0 0.0
  %3951 = vmatprep.subr.mxu0 0.0
  %3952 = vmatpush1.msra.mxu0 0.0
  %3953 = vmatprep.subr.mxu0 0.0
  %3954 = vmatpush1.msra.mxu0 0.0
  %3955 = vmatprep.subr.mxu0 0.0
  %3956 = vmatpush1.msra.mxu0 0.0
  %3957 = vmatprep.subr.mxu0 0.0
  %3958 = vmatpush1.msra.mxu0 0.0
  %3959 = vmatprep.subr.mxu0 0.0
  %3960 = vmatpush1.msra.mxu0 0.0
  %3961 = vmatprep.subr.mxu0 0.0
  %3962 = vmatpush1.msra.mxu0 0.0
  %3963 = vmatprep.subr.mxu0 0.0
  %3964 = vmatpush1.msra.mxu0 0.0
  %3965 = vmatprep.subr.mxu0 0.0
  %3966 = vmatpush1.msra.mxu0 0.0
  %3967 = vmatprep.subr.mxu0 0.0
  %3968 = vmatpush1.msra.mxu0 0.0
  %3969 = vmatprep.subr.mxu0 0.0
  %3970 = vmatpush1.msra.mxu0 0.0
  %3971 = vmatprep.subr.mxu0 0.0
  %3972 = vmatpush1.msra.mxu0 0.0
  %3973 = vmatprep.subr.mxu0 0.0
  %3974 = vmatpush1.msra.mxu0 0.0
  %3975 = vmatprep.subr.mxu0 0.0
  %3976 = vmatpush1.msra.mxu0 0.0
  %3977 = vmatprep.subr.mxu0 0.0
  %3978 = vmatpush1.msra.mxu0 0.0
  %3979 = vmatprep.subr.mxu0 0.0
  %3980 = vmatpush1.msra.mxu0 0.0
  %3981 = vmatprep.subr.mxu0 0.0
  %3982 = vmatpush1.msra.mxu0 0.0
  %3983 = vmatprep.subr.mxu0 0.0
  %3984 = vmatpush1.msra.mxu0 0.0
  %3985 = vmatprep.subr.mxu0 0.0
  %3986 = vmatpush1.msra.mxu0 0.0
  %3987 = vmatprep.subr.mxu0 0.0
  %3988 = vmatpush1.msra.mxu0 0.0
  %3989 = vmatprep.subr.mxu0 0.0
  %3990 = vmatpush1.msra.mxu0 0.0
  %3991 = vmatprep.subr.mxu0 0.0
  %3992 = vmatpush1.msra.mxu0 0.0
  %3993 = vmatprep.subr.mxu0 0.0
  %3994 = vmatpush1.msra.mxu0 0.0
  %3995 = vmatprep.mubr.f32.mxu0 0.0
  %3996 = vmatmul.mubr.f32.gmra.mrb[0].mxu0 %v3929
  %v3997 = vpop.f32.mrb[0].mxu0
  %v3998 = vadd.f32 0.0, %v3997
  %v3999 = vpop.f32.mrb[0].mxu0
  %4000 = vdwg.mxu0
  %v4001 = vadd.f32 %v3924, %v3998
  %v4002 = vld [vmem:[#allocation2 + $0x20] sm:$0x3]
  %s4003 = scalar_lea.vmem %s6, 128
  %v4004 = vld [vmem:[%s4003] sm:$0xff]
  %v4006 = vsel %vm277, %v4002, 0
  %4008 = vmatprep.subr.mxu0 0.0
  %4009 = vmatpush1.msra.mxu0 %v4004
  %4010 = vmatprep.subr.mxu0 0.0
  %4011 = vmatpush1.msra.mxu0 0.0
  %4012 = vmatprep.subr.mxu0 0.0
  %4013 = vmatpush1.msra.mxu0 0.0
  %4014 = vmatprep.subr.mxu0 0.0
  %4015 = vmatpush1.msra.mxu0 0.0
  %4016 = vmatprep.subr.mxu0 0.0
  %4017 = vmatpush1.msra.mxu0 0.0
  %4018 = vmatprep.subr.mxu0 0.0
  %4019 = vmatpush1.msra.mxu0 0.0
  %4020 = vmatprep.subr.mxu0 0.0
  %4021 = vmatpush1.msra.mxu0 0.0
  %4022 = vmatprep.subr.mxu0 0.0
  %4023 = vmatpush1.msra.mxu0 0.0
  %4024 = vmatprep.subr.mxu0 0.0
  %4025 = vmatpush1.msra.mxu0 0.0
  %4026 = vmatprep.subr.mxu0 0.0
  %4027 = vmatpush1.msra.mxu0 0.0
  %4028 = vmatprep.subr.mxu0 0.0
  %4029 = vmatpush1.msra.mxu0 0.0
  %4030 = vmatprep.subr.mxu0 0.0
  %4031 = vmatpush1.msra.mxu0 0.0
  %4032 = vmatprep.subr.mxu0 0.0
  %4033 = vmatpush1.msra.mxu0 0.0
  %4034 = vmatprep.subr.mxu0 0.0
  %4035 = vmatpush1.msra.mxu0 0.0
  %4036 = vmatprep.subr.mxu0 0.0
  %4037 = vmatpush1.msra.mxu0 0.0
  %4038 = vmatprep.subr.mxu0 0.0
  %4039 = vmatpush1.msra.mxu0 0.0
  %4040 = vmatprep.subr.mxu0 0.0
  %4041 = vmatpush1.msra.mxu0 0.0
  %4042 = vmatprep.subr.mxu0 0.0
  %4043 = vmatpush1.msra.mxu0 0.0
  %4044 = vmatprep.subr.mxu0 0.0
  %4045 = vmatpush1.msra.mxu0 0.0
  %4046 = vmatprep.subr.mxu0 0.0
  %4047 = vmatpush1.msra.mxu0 0.0
  %4048 = vmatprep.subr.mxu0 0.0
  %4049 = vmatpush1.msra.mxu0 0.0
  %4050 = vmatprep.subr.mxu0 0.0
  %4051 = vmatpush1.msra.mxu0 0.0
  %4052 = vmatprep.subr.mxu0 0.0
  %4053 = vmatpush1.msra.mxu0 0.0
  %4054 = vmatprep.subr.mxu0 0.0
  %4055 = vmatpush1.msra.mxu0 0.0
  %4056 = vmatprep.subr.mxu0 0.0
  %4057 = vmatpush1.msra.mxu0 0.0
  %4058 = vmatprep.subr.mxu0 0.0
  %4059 = vmatpush1.msra.mxu0 0.0
  %4060 = vmatprep.subr.mxu0 0.0
  %4061 = vmatpush1.msra.mxu0 0.0
  %4062 = vmatprep.subr.mxu0 0.0
  %4063 = vmatpush1.msra.mxu0 0.0
  %4064 = vmatprep.subr.mxu0 0.0
  %4065 = vmatpush1.msra.mxu0 0.0
  %4066 = vmatprep.subr.mxu0 0.0
  %4067 = vmatpush1.msra.mxu0 0.0
  %4068 = vmatprep.subr.mxu0 0.0
  %4069 = vmatpush1.msra.mxu0 0.0
  %4070 = vmatprep.subr.mxu0 0.0
  %4071 = vmatpush1.msra.mxu0 0.0
  %4072 = vmatprep.mubr.f32.mxu0 0.0
  %4073 = vmatmul.mubr.f32.gmra.mrb[0].mxu0 %v4006
  %v4074 = vpop.f32.mrb[0].mxu0
  %v4075 = vadd.f32 0.0, %v4074
  %v4076 = vpop.f32.mrb[0].mxu0
  %4077 = vdwg.mxu0
  %v4078 = vadd.f32 %v4001, %v4075
  %v4079 = vld [vmem:[#allocation2 + $0x22] sm:$0x3]
  %s4080 = scalar_lea.vmem %s6, 136
  %v4081 = vld [vmem:[%s4080] sm:$0xff]
  %v4083 = vsel %vm277, %v4079, 0
  %4085 = vmatprep.subr.mxu0 0.0
  %4086 = vmatpush1.msra.mxu0 %v4081
  %4087 = vmatprep.subr.mxu0 0.0
  %4088 = vmatpush1.msra.mxu0 0.0
  %4089 = vmatprep.subr.mxu0 0.0
  %4090 = vmatpush1.msra.mxu0 0.0
  %4091 = vmatprep.subr.mxu0 0.0
  %4092 = vmatpush1.msra.mxu0 0.0
  %4093 = vmatprep.subr.mxu0 0.0
  %4094 = vmatpush1.msra.mxu0 0.0
  %4095 = vmatprep.subr.mxu0 0.0
  %4096 = vmatpush1.msra.mxu0 0.0
  %4097 = vmatprep.subr.mxu0 0.0
  %4098 = vmatpush1.msra.mxu0 0.0
  %4099 = vmatprep.subr.mxu0 0.0
  %4100 = vmatpush1.msra.mxu0 0.0
  %4101 = vmatprep.subr.mxu0 0.0
  %4102 = vmatpush1.msra.mxu0 0.0
  %4103 = vmatprep.subr.mxu0 0.0
  %4104 = vmatpush1.msra.mxu0 0.0
  %4105 = vmatprep.subr.mxu0 0.0
  %4106 = vmatpush1.msra.mxu0 0.0
  %4107 = vmatprep.subr.mxu0 0.0
  %4108 = vmatpush1.msra.mxu0 0.0
  %4109 = vmatprep.subr.mxu0 0.0
  %4110 = vmatpush1.msra.mxu0 0.0
  %4111 = vmatprep.subr.mxu0 0.0
  %4112 = vmatpush1.msra.mxu0 0.0
  %4113 = vmatprep.subr.mxu0 0.0
  %4114 = vmatpush1.msra.mxu0 0.0
  %4115 = vmatprep.subr.mxu0 0.0
  %4116 = vmatpush1.msra.mxu0 0.0
  %4117 = vmatprep.subr.mxu0 0.0
  %4118 = vmatpush1.msra.mxu0 0.0
  %4119 = vmatprep.subr.mxu0 0.0
  %4120 = vmatpush1.msra.mxu0 0.0
  %4121 = vmatprep.subr.mxu0 0.0
  %4122 = vmatpush1.msra.mxu0 0.0
  %4123 = vmatprep.subr.mxu0 0.0
  %4124 = vmatpush1.msra.mxu0 0.0
  %4125 = vmatprep.subr.mxu0 0.0
  %4126 = vmatpush1.msra.mxu0 0.0
  %4127 = vmatprep.subr.mxu0 0.0
  %4128 = vmatpush1.msra.mxu0 0.0
  %4129 = vmatprep.subr.mxu0 0.0
  %4130 = vmatpush1.msra.mxu0 0.0
  %4131 = vmatprep.subr.mxu0 0.0
  %4132 = vmatpush1.msra.mxu0 0.0
  %4133 = vmatprep.subr.mxu0 0.0
  %4134 = vmatpush1.msra.mxu0 0.0
  %4135 = vmatprep.subr.mxu0 0.0
  %4136 = vmatpush1.msra.mxu0 0.0
  %4137 = vmatprep.subr.mxu0 0.0
  %4138 = vmatpush1.msra.mxu0 0.0
  %4139 = vmatprep.subr.mxu0 0.0
  %4140 = vmatpush1.msra.mxu0 0.0
  %4141 = vmatprep.subr.mxu0 0.0
  %4142 = vmatpush1.msra.mxu0 0.0
  %4143 = vmatprep.subr.mxu0 0.0
  %4144 = vmatpush1.msra.mxu0 0.0
  %4145 = vmatprep.subr.mxu0 0.0
  %4146 = vmatpush1.msra.mxu0 0.0
  %4147 = vmatprep.subr.mxu0 0.0
  %4148 = vmatpush1.msra.mxu0 0.0
  %4149 = vmatprep.mubr.f32.mxu0 0.0
  %4150 = vmatmul.mubr.f32.gmra.mrb[0].mxu0 %v4083
  %v4151 = vpop.f32.mrb[0].mxu0
  %v4152 = vadd.f32 0.0, %v4151
  %v4153 = vpop.f32.mrb[0].mxu0
  %4154 = vdwg.mxu0
  %v4155 = vadd.f32 %v4078, %v4152
  %v4156 = vld [vmem:[#allocation2 + $0x24] sm:$0x3]
  %s4157 = scalar_lea.vmem %s6, 144
  %v4158 = vld [vmem:[%s4157] sm:$0xff]
  %v4160 = vsel %vm277, %v4156, 0
  %4162 = vmatprep.subr.mxu0 0.0
  %4163 = vmatpush1.msra.mxu0 %v4158
  %4164 = vmatprep.subr.mxu0 0.0
  %4165 = vmatpush1.msra.mxu0 0.0
  %4166 = vmatprep.subr.mxu0 0.0
  %4167 = vmatpush1.msra.mxu0 0.0
  %4168 = vmatprep.subr.mxu0 0.0
  %4169 = vmatpush1.msra.mxu0 0.0
  %4170 = vmatprep.subr.mxu0 0.0
  %4171 = vmatpush1.msra.mxu0 0.0
  %4172 = vmatprep.subr.mxu0 0.0
  %4173 = vmatpush1.msra.mxu0 0.0
  %4174 = vmatprep.subr.mxu0 0.0
  %4175 = vmatpush1.msra.mxu0 0.0
  %4176 = vmatprep.subr.mxu0 0.0
  %4177 = vmatpush1.msra.mxu0 0.0
  %4178 = vmatprep.subr.mxu0 0.0
  %4179 = vmatpush1.msra.mxu0 0.0
  %4180 = vmatprep.subr.mxu0 0.0
  %4181 = vmatpush1.msra.mxu0 0.0
  %4182 = vmatprep.subr.mxu0 0.0
  %4183 = vmatpush1.msra.mxu0 0.0
  %4184 = vmatprep.subr.mxu0 0.0
  %4185 = vmatpush1.msra.mxu0 0.0
  %4186 = vmatprep.subr.mxu0 0.0
  %4187 = vmatpush1.msra.mxu0 0.0
  %4188 = vmatprep.subr.mxu0 0.0
  %4189 = vmatpush1.msra.mxu0 0.0
  %4190 = vmatprep.subr.mxu0 0.0
  %4191 = vmatpush1.msra.mxu0 0.0
  %4192 = vmatprep.subr.mxu0 0.0
  %4193 = vmatpush1.msra.mxu0 0.0
  %4194 = vmatprep.subr.mxu0 0.0
  %4195 = vmatpush1.msra.mxu0 0.0
  %4196 = vmatprep.subr.mxu0 0.0
  %4197 = vmatpush1.msra.mxu0 0.0
  %4198 = vmatprep.subr.mxu0 0.0
  %4199 = vmatpush1.msra.mxu0 0.0
  %4200 = vmatprep.subr.mxu0 0.0
  %4201 = vmatpush1.msra.mxu0 0.0
  %4202 = vmatprep.subr.mxu0 0.0
  %4203 = vmatpush1.msra.mxu0 0.0
  %4204 = vmatprep.subr.mxu0 0.0
  %4205 = vmatpush1.msra.mxu0 0.0
  %4206 = vmatprep.subr.mxu0 0.0
  %4207 = vmatpush1.msra.mxu0 0.0
  %4208 = vmatprep.subr.mxu0 0.0
  %4209 = vmatpush1.msra.mxu0 0.0
  %4210 = vmatprep.subr.mxu0 0.0
  %4211 = vmatpush1.msra.mxu0 0.0
  %4212 = vmatprep.subr.mxu0 0.0
  %4213 = vmatpush1.msra.mxu0 0.0
  %4214 = vmatprep.subr.mxu0 0.0
  %4215 = vmatpush1.msra.mxu0 0.0
  %4216 = vmatprep.subr.mxu0 0.0
  %4217 = vmatpush1.msra.mxu0 0.0
  %4218 = vmatprep.subr.mxu0 0.0
  %4219 = vmatpush1.msra.mxu0 0.0
  %4220 = vmatprep.subr.mxu0 0.0
  %4221 = vmatpush1.msra.mxu0 0.0
  %4222 = vmatprep.subr.mxu0 0.0
  %4223 = vmatpush1.msra.mxu0 0.0
  %4224 = vmatprep.subr.mxu0 0.0
  %4225 = vmatpush1.msra.mxu0 0.0
  %4226 = vmatprep.mubr.f32.mxu0 0.0
  %4227 = vmatmul.mubr.f32.gmra.mrb[0].mxu0 %v4160
  %v4228 = vpop.f32.mrb[0].mxu0
  %v4229 = vadd.f32 0.0, %v4228
  %v4230 = vpop.f32.mrb[0].mxu0
  %4231 = vdwg.mxu0
  %v4232 = vadd.f32 %v4155, %v4229
  %v4233 = vld [vmem:[#allocation2 + $0x26] sm:$0x3]
  %s4234 = scalar_lea.vmem %s6, 152
  %v4235 = vld [vmem:[%s4234] sm:$0xff]
  %v4237 = vsel %vm277, %v4233, 0
  %4239 = vmatprep.subr.mxu0 0.0
  %4240 = vmatpush1.msra.mxu0 %v4235
  %4241 = vmatprep.subr.mxu0 0.0
  %4242 = vmatpush1.msra.mxu0 0.0
  %4243 = vmatprep.subr.mxu0 0.0
  %4244 = vmatpush1.msra.mxu0 0.0
  %4245 = vmatprep.subr.mxu0 0.0
  %4246 = vmatpush1.msra.mxu0 0.0
  %4247 = vmatprep.subr.mxu0 0.0
  %4248 = vmatpush1.msra.mxu0 0.0
  %4249 = vmatprep.subr.mxu0 0.0
  %4250 = vmatpush1.msra.mxu0 0.0
  %4251 = vmatprep.subr.mxu0 0.0
  %4252 = vmatpush1.msra.mxu0 0.0
  %4253 = vmatprep.subr.mxu0 0.0
  %4254 = vmatpush1.msra.mxu0 0.0
  %4255 = vmatprep.subr.mxu0 0.0
  %4256 = vmatpush1.msra.mxu0 0.0
  %4257 = vmatprep.subr.mxu0 0.0
  %4258 = vmatpush1.msra.mxu0 0.0
  %4259 = vmatprep.subr.mxu0 0.0
  %4260 = vmatpush1.msra.mxu0 0.0
  %4261 = vmatprep.subr.mxu0 0.0
  %4262 = vmatpush1.msra.mxu0 0.0
  %4263 = vmatprep.subr.mxu0 0.0
  %4264 = vmatpush1.msra.mxu0 0.0
  %4265 = vmatprep.subr.mxu0 0.0
  %4266 = vmatpush1.msra.mxu0 0.0
  %4267 = vmatprep.subr.mxu0 0.0
  %4268 = vmatpush1.msra.mxu0 0.0
  %4269 = vmatprep.subr.mxu0 0.0
  %4270 = vmatpush1.msra.mxu0 0.0
  %4271 = vmatprep.subr.mxu0 0.0
  %4272 = vmatpush1.msra.mxu0 0.0
  %4273 = vmatprep.subr.mxu0 0.0
  %4274 = vmatpush1.msra.mxu0 0.0
  %4275 = vmatprep.subr.mxu0 0.0
  %4276 = vmatpush1.msra.mxu0 0.0
  %4277 = vmatprep.subr.mxu0 0.0
  %4278 = vmatpush1.msra.mxu0 0.0
  %4279 = vmatprep.subr.mxu0 0.0
  %4280 = vmatpush1.msra.mxu0 0.0
  %4281 = vmatprep.subr.mxu0 0.0
  %4282 = vmatpush1.msra.mxu0 0.0
  %4283 = vmatprep.subr.mxu0 0.0
  %4284 = vmatpush1.msra.mxu0 0.0
  %4285 = vmatprep.subr.mxu0 0.0
  %4286 = vmatpush1.msra.mxu0 0.0
  %4287 = vmatprep.subr.mxu0 0.0
  %4288 = vmatpush1.msra.mxu0 0.0
  %4289 = vmatprep.subr.mxu0 0.0
  %4290 = vmatpush1.msra.mxu0 0.0
  %4291 = vmatprep.subr.mxu0 0.0
  %4292 = vmatpush1.msra.mxu0 0.0
  %4293 = vmatprep.subr.mxu0 0.0
  %4294 = vmatpush1.msra.mxu0 0.0
  %4295 = vmatprep.subr.mxu0 0.0
  %4296 = vmatpush1.msra.mxu0 0.0
  %4297 = vmatprep.subr.mxu0 0.0
  %4298 = vmatpush1.msra.mxu0 0.0
  %4299 = vmatprep.subr.mxu0 0.0
  %4300 = vmatpush1.msra.mxu0 0.0
  %4301 = vmatprep.subr.mxu0 0.0
  %4302 = vmatpush1.msra.mxu0 0.0
  %4303 = vmatprep.mubr.f32.mxu0 0.0
  %4304 = vmatmul.mubr.f32.gmra.mrb[0].mxu0 %v4237
  %v4305 = vpop.f32.mrb[0].mxu0
  %v4306 = vadd.f32 0.0, %v4305
  %v4307 = vpop.f32.mrb[0].mxu0
  %4308 = vdwg.mxu0
  %v4309 = vadd.f32 %v4232, %v4306
  %v4310 = vld [vmem:[#allocation2 + $0x28] sm:$0x3]
  %s4311 = scalar_lea.vmem %s6, 160
  %v4312 = vld [vmem:[%s4311] sm:$0xff]
  %v4314 = vsel %vm277, %v4310, 0
  %4316 = vmatprep.subr.mxu0 0.0
  %4317 = vmatpush1.msra.mxu0 %v4312
  %4318 = vmatprep.subr.mxu0 0.0
  %4319 = vmatpush1.msra.mxu0 0.0
  %4320 = vmatprep.subr.mxu0 0.0
  %4321 = vmatpush1.msra.mxu0 0.0
  %4322 = vmatprep.subr.mxu0 0.0
  %4323 = vmatpush1.msra.mxu0 0.0
  %4324 = vmatprep.subr.mxu0 0.0
  %4325 = vmatpush1.msra.mxu0 0.0
  %4326 = vmatprep.subr.mxu0 0.0
  %4327 = vmatpush1.msra.mxu0 0.0
  %4328 = vmatprep.subr.mxu0 0.0
  %4329 = vmatpush1.msra.mxu0 0.0
  %4330 = vmatprep.subr.mxu0 0.0
  %4331 = vmatpush1.msra.mxu0 0.0
  %4332 = vmatprep.subr.mxu0 0.0
  %4333 = vmatpush1.msra.mxu0 0.0
  %4334 = vmatprep.subr.mxu0 0.0
  %4335 = vmatpush1.msra.mxu0 0.0
  %4336 = vmatprep.subr.mxu0 0.0
  %4337 = vmatpush1.msra.mxu0 0.0
  %4338 = vmatprep.subr.mxu0 0.0
  %4339 = vmatpush1.msra.mxu0 0.0
  %4340 = vmatprep.subr.mxu0 0.0
  %4341 = vmatpush1.msra.mxu0 0.0
  %4342 = vmatprep.subr.mxu0 0.0
  %4343 = vmatpush1.msra.mxu0 0.0
  %4344 = vmatprep.subr.mxu0 0.0
  %4345 = vmatpush1.msra.mxu0 0.0
  %4346 = vmatprep.subr.mxu0 0.0
  %4347 = vmatpush1.msra.mxu0 0.0
  %4348 = vmatprep.subr.mxu0 0.0
  %4349 = vmatpush1.msra.mxu0 0.0
  %4350 = vmatprep.subr.mxu0 0.0
  %4351 = vmatpush1.msra.mxu0 0.0
  %4352 = vmatprep.subr.mxu0 0.0
  %4353 = vmatpush1.msra.mxu0 0.0
  %4354 = vmatprep.subr.mxu0 0.0
  %4355 = vmatpush1.msra.mxu0 0.0
  %4356 = vmatprep.subr.mxu0 0.0
  %4357 = vmatpush1.msra.mxu0 0.0
  %4358 = vmatprep.subr.mxu0 0.0
  %4359 = vmatpush1.msra.mxu0 0.0
  %4360 = vmatprep.subr.mxu0 0.0
  %4361 = vmatpush1.msra.mxu0 0.0
  %4362 = vmatprep.subr.mxu0 0.0
  %4363 = vmatpush1.msra.mxu0 0.0
  %4364 = vmatprep.subr.mxu0 0.0
  %4365 = vmatpush1.msra.mxu0 0.0
  %4366 = vmatprep.subr.mxu0 0.0
  %4367 = vmatpush1.msra.mxu0 0.0
  %4368 = vmatprep.subr.mxu0 0.0
  %4369 = vmatpush1.msra.mxu0 0.0
  %4370 = vmatprep.subr.mxu0 0.0
  %4371 = vmatpush1.msra.mxu0 0.0
  %4372 = vmatprep.subr.mxu0 0.0
  %4373 = vmatpush1.msra.mxu0 0.0
  %4374 = vmatprep.subr.mxu0 0.0
  %4375 = vmatpush1.msra.mxu0 0.0
  %4376 = vmatprep.subr.mxu0 0.0
  %4377 = vmatpush1.msra.mxu0 0.0
  %4378 = vmatprep.subr.mxu0 0.0
  %4379 = vmatpush1.msra.mxu0 0.0
  %4380 = vmatprep.mubr.f32.mxu0 0.0
  %4381 = vmatmul.mubr.f32.gmra.mrb[0].mxu0 %v4314
  %v4382 = vpop.f32.mrb[0].mxu0
  %v4383 = vadd.f32 0.0, %v4382
  %v4384 = vpop.f32.mrb[0].mxu0
  %4385 = vdwg.mxu0
  %v4386 = vadd.f32 %v4309, %v4383
  %v4387 = vld [vmem:[#allocation2 + $0x2a] sm:$0x3]
  %s4388 = scalar_lea.vmem %s6, 168
  %v4389 = vld [vmem:[%s4388] sm:$0xff]
  %v4391 = vsel %vm277, %v4387, 0
  %4393 = vmatprep.subr.mxu0 0.0
  %4394 = vmatpush1.msra.mxu0 %v4389
  %4395 = vmatprep.subr.mxu0 0.0
  %4396 = vmatpush1.msra.mxu0 0.0
  %4397 = vmatprep.subr.mxu0 0.0
  %4398 = vmatpush1.msra.mxu0 0.0
  %4399 = vmatprep.subr.mxu0 0.0
  %4400 = vmatpush1.msra.mxu0 0.0
  %4401 = vmatprep.subr.mxu0 0.0
  %4402 = vmatpush1.msra.mxu0 0.0
  %4403 = vmatprep.subr.mxu0 0.0
  %4404 = vmatpush1.msra.mxu0 0.0
  %4405 = vmatprep.subr.mxu0 0.0
  %4406 = vmatpush1.msra.mxu0 0.0
  %4407 = vmatprep.subr.mxu0 0.0
  %4408 = vmatpush1.msra.mxu0 0.0
  %4409 = vmatprep.subr.mxu0 0.0
  %4410 = vmatpush1.msra.mxu0 0.0
  %4411 = vmatprep.subr.mxu0 0.0
  %4412 = vmatpush1.msra.mxu0 0.0
  %4413 = vmatprep.subr.mxu0 0.0
  %4414 = vmatpush1.msra.mxu0 0.0
  %4415 = vmatprep.subr.mxu0 0.0
  %4416 = vmatpush1.msra.mxu0 0.0
  %4417 = vmatprep.subr.mxu0 0.0
  %4418 = vmatpush1.msra.mxu0 0.0
  %4419 = vmatprep.subr.mxu0 0.0
  %4420 = vmatpush1.msra.mxu0 0.0
  %4421 = vmatprep.subr.mxu0 0.0
  %4422 = vmatpush1.msra.mxu0 0.0
  %4423 = vmatprep.subr.mxu0 0.0
  %4424 = vmatpush1.msra.mxu0 0.0
  %4425 = vmatprep.subr.mxu0 0.0
  %4426 = vmatpush1.msra.mxu0 0.0
  %4427 = vmatprep.subr.mxu0 0.0
  %4428 = vmatpush1.msra.mxu0 0.0
  %4429 = vmatprep.subr.mxu0 0.0
  %4430 = vmatpush1.msra.mxu0 0.0
  %4431 = vmatprep.subr.mxu0 0.0
  %4432 = vmatpush1.msra.mxu0 0.0
  %4433 = vmatprep.subr.mxu0 0.0
  %4434 = vmatpush1.msra.mxu0 0.0
  %4435 = vmatprep.subr.mxu0 0.0
  %4436 = vmatpush1.msra.mxu0 0.0
  %4437 = vmatprep.subr.mxu0 0.0
  %4438 = vmatpush1.msra.mxu0 0.0
  %4439 = vmatprep.subr.mxu0 0.0
  %4440 = vmatpush1.msra.mxu0 0.0
  %4441 = vmatprep.subr.mxu0 0.0
  %4442 = vmatpush1.msra.mxu0 0.0
  %4443 = vmatprep.subr.mxu0 0.0
  %4444 = vmatpush1.msra.mxu0 0.0
  %4445 = vmatprep.subr.mxu0 0.0
  %4446 = vmatpush1.msra.mxu0 0.0
  %4447 = vmatprep.subr.mxu0 0.0
  %4448 = vmatpush1.msra.mxu0 0.0
  %4449 = vmatprep.subr.mxu0 0.0
  %4450 = vmatpush1.msra.mxu0 0.0
  %4451 = vmatprep.subr.mxu0 0.0
  %4452 = vmatpush1.msra.mxu0 0.0
  %4453 = vmatprep.subr.mxu0 0.0
  %4454 = vmatpush1.msra.mxu0 0.0
  %4455 = vmatprep.subr.mxu0 0.0
  %4456 = vmatpush1.msra.mxu0 0.0
  %4457 = vmatprep.mubr.f32.mxu0 0.0
  %4458 = vmatmul.mubr.f32.gmra.mrb[0].mxu0 %v4391
  %v4459 = vpop.f32.mrb[0].mxu0
  %v4460 = vadd.f32 0.0, %v4459
  %v4461 = vpop.f32.mrb[0].mxu0
  %4462 = vdwg.mxu0
  %v4463 = vadd.f32 %v4386, %v4460
  %v4464 = vld [vmem:[#allocation2 + $0x2c] sm:$0x3]
  %s4465 = scalar_lea.vmem %s6, 176
  %v4466 = vld [vmem:[%s4465] sm:$0xff]
  %v4468 = vsel %vm277, %v4464, 0
  %4470 = vmatprep.subr.mxu0 0.0
  %4471 = vmatpush1.msra.mxu0 %v4466
  %4472 = vmatprep.subr.mxu0 0.0
  %4473 = vmatpush1.msra.mxu0 0.0
  %4474 = vmatprep.subr.mxu0 0.0
  %4475 = vmatpush1.msra.mxu0 0.0
  %4476 = vmatprep.subr.mxu0 0.0
  %4477 = vmatpush1.msra.mxu0 0.0
  %4478 = vmatprep.subr.mxu0 0.0
  %4479 = vmatpush1.msra.mxu0 0.0
  %4480 = vmatprep.subr.mxu0 0.0
  %4481 = vmatpush1.msra.mxu0 0.0
  %4482 = vmatprep.subr.mxu0 0.0
  %4483 = vmatpush1.msra.mxu0 0.0
  %4484 = vmatprep.subr.mxu0 0.0
  %4485 = vmatpush1.msra.mxu0 0.0
  %4486 = vmatprep.subr.mxu0 0.0
  %4487 = vmatpush1.msra.mxu0 0.0
  %4488 = vmatprep.subr.mxu0 0.0
  %4489 = vmatpush1.msra.mxu0 0.0
  %4490 = vmatprep.subr.mxu0 0.0
  %4491 = vmatpush1.msra.mxu0 0.0
  %4492 = vmatprep.subr.mxu0 0.0
  %4493 = vmatpush1.msra.mxu0 0.0
  %4494 = vmatprep.subr.mxu0 0.0
  %4495 = vmatpush1.msra.mxu0 0.0
  %4496 = vmatprep.subr.mxu0 0.0
  %4497 = vmatpush1.msra.mxu0 0.0
  %4498 = vmatprep.subr.mxu0 0.0
  %4499 = vmatpush1.msra.mxu0 0.0
  %4500 = vmatprep.subr.mxu0 0.0
  %4501 = vmatpush1.msra.mxu0 0.0
  %4502 = vmatprep.subr.mxu0 0.0
  %4503 = vmatpush1.msra.mxu0 0.0
  %4504 = vmatprep.subr.mxu0 0.0
  %4505 = vmatpush1.msra.mxu0 0.0
  %4506 = vmatprep.subr.mxu0 0.0
  %4507 = vmatpush1.msra.mxu0 0.0
  %4508 = vmatprep.subr.mxu0 0.0
  %4509 = vmatpush1.msra.mxu0 0.0
  %4510 = vmatprep.subr.mxu0 0.0
  %4511 = vmatpush1.msra.mxu0 0.0
  %4512 = vmatprep.subr.mxu0 0.0
  %4513 = vmatpush1.msra.mxu0 0.0
  %4514 = vmatprep.subr.mxu0 0.0
  %4515 = vmatpush1.msra.mxu0 0.0
  %4516 = vmatprep.subr.mxu0 0.0
  %4517 = vmatpush1.msra.mxu0 0.0
  %4518 = vmatprep.subr.mxu0 0.0
  %4519 = vmatpush1.msra.mxu0 0.0
  %4520 = vmatprep.subr.mxu0 0.0
  %4521 = vmatpush1.msra.mxu0 0.0
  %4522 = vmatprep.subr.mxu0 0.0
  %4523 = vmatpush1.msra.mxu0 0.0
  %4524 = vmatprep.subr.mxu0 0.0
  %4525 = vmatpush1.msra.mxu0 0.0
  %4526 = vmatprep.subr.mxu0 0.0
  %4527 = vmatpush1.msra.mxu0 0.0
  %4528 = vmatprep.subr.mxu0 0.0
  %4529 = vmatpush1.msra.mxu0 0.0
  %4530 = vmatprep.subr.mxu0 0.0
  %4531 = vmatpush1.msra.mxu0 0.0
  %4532 = vmatprep.subr.mxu0 0.0
  %4533 = vmatpush1.msra.mxu0 0.0
  %4534 = vmatprep.mubr.f32.mxu0 0.0
  %4535 = vmatmul.mubr.f32.gmra.mrb[0].mxu0 %v4468
  %v4536 = vpop.f32.mrb[0].mxu0
  %v4537 = vadd.f32 0.0, %v4536
  %v4538 = vpop.f32.mrb[0].mxu0
  %4539 = vdwg.mxu0
  %v4540 = vadd.f32 %v4463, %v4537
  %v4541 = vld [vmem:[#allocation2 + $0x2e] sm:$0x3]
  %s4542 = scalar_lea.vmem %s6, 184
  %v4543 = vld [vmem:[%s4542] sm:$0xff]
  %v4545 = vsel %vm277, %v4541, 0
  %4547 = vmatprep.subr.mxu0 0.0
  %4548 = vmatpush1.msra.mxu0 %v4543
  %4549 = vmatprep.subr.mxu0 0.0
  %4550 = vmatpush1.msra.mxu0 0.0
  %4551 = vmatprep.subr.mxu0 0.0
  %4552 = vmatpush1.msra.mxu0 0.0
  %4553 = vmatprep.subr.mxu0 0.0
  %4554 = vmatpush1.msra.mxu0 0.0
  %4555 = vmatprep.subr.mxu0 0.0
  %4556 = vmatpush1.msra.mxu0 0.0
  %4557 = vmatprep.subr.mxu0 0.0
  %4558 = vmatpush1.msra.mxu0 0.0
  %4559 = vmatprep.subr.mxu0 0.0
  %4560 = vmatpush1.msra.mxu0 0.0
  %4561 = vmatprep.subr.mxu0 0.0
  %4562 = vmatpush1.msra.mxu0 0.0
  %4563 = vmatprep.subr.mxu0 0.0
  %4564 = vmatpush1.msra.mxu0 0.0
  %4565 = vmatprep.subr.mxu0 0.0
  %4566 = vmatpush1.msra.mxu0 0.0
  %4567 = vmatprep.subr.mxu0 0.0
  %4568 = vmatpush1.msra.mxu0 0.0
  %4569 = vmatprep.subr.mxu0 0.0
  %4570 = vmatpush1.msra.mxu0 0.0
  %4571 = vmatprep.subr.mxu0 0.0
  %4572 = vmatpush1.msra.mxu0 0.0
  %4573 = vmatprep.subr.mxu0 0.0
  %4574 = vmatpush1.msra.mxu0 0.0
  %4575 = vmatprep.subr.mxu0 0.0
  %4576 = vmatpush1.msra.mxu0 0.0
  %4577 = vmatprep.subr.mxu0 0.0
  %4578 = vmatpush1.msra.mxu0 0.0
  %4579 = vmatprep.subr.mxu0 0.0
  %4580 = vmatpush1.msra.mxu0 0.0
  %4581 = vmatprep.subr.mxu0 0.0
  %4582 = vmatpush1.msra.mxu0 0.0
  %4583 = vmatprep.subr.mxu0 0.0
  %4584 = vmatpush1.msra.mxu0 0.0
  %4585 = vmatprep.subr.mxu0 0.0
  %4586 = vmatpush1.msra.mxu0 0.0
  %4587 = vmatprep.subr.mxu0 0.0
  %4588 = vmatpush1.msra.mxu0 0.0
  %4589 = vmatprep.subr.mxu0 0.0
  %4590 = vmatpush1.msra.mxu0 0.0
  %4591 = vmatprep.subr.mxu0 0.0
  %4592 = vmatpush1.msra.mxu0 0.0
  %4593 = vmatprep.subr.mxu0 0.0
  %4594 = vmatpush1.msra.mxu0 0.0
  %4595 = vmatprep.subr.mxu0 0.0
  %4596 = vmatpush1.msra.mxu0 0.0
  %4597 = vmatprep.subr.mxu0 0.0
  %4598 = vmatpush1.msra.mxu0 0.0
  %4599 = vmatprep.subr.mxu0 0.0
  %4600 = vmatpush1.msra.mxu0 0.0
  %4601 = vmatprep.subr.mxu0 0.0
  %4602 = vmatpush1.msra.mxu0 0.0
  %4603 = vmatprep.subr.mxu0 0.0
  %4604 = vmatpush1.msra.mxu0 0.0
  %4605 = vmatprep.subr.mxu0 0.0
  %4606 = vmatpush1.msra.mxu0 0.0
  %4607 = vmatprep.subr.mxu0 0.0
  %4608 = vmatpush1.msra.mxu0 0.0
  %4609 = vmatprep.subr.mxu0 0.0
  %4610 = vmatpush1.msra.mxu0 0.0
  %4611 = vmatprep.mubr.f32.mxu0 0.0
  %4612 = vmatmul.mubr.f32.gmra.mrb[0].mxu0 %v4545
  %v4613 = vpop.f32.mrb[0].mxu0
  %v4614 = vadd.f32 0.0, %v4613
  %v4615 = vpop.f32.mrb[0].mxu0
  %4616 = vdwg.mxu0
  %v4617 = vadd.f32 %v4540, %v4614
  %v4618 = vld [vmem:[#allocation2 + $0x30] sm:$0x3]
  %s4619 = scalar_lea.vmem %s6, 192
  %v4620 = vld [vmem:[%s4619] sm:$0xff]
  %v4622 = vsel %vm277, %v4618, 0
  %4624 = vmatprep.subr.mxu0 0.0
  %4625 = vmatpush1.msra.mxu0 %v4620
  %4626 = vmatprep.subr.mxu0 0.0
  %4627 = vmatpush1.msra.mxu0 0.0
  %4628 = vmatprep.subr.mxu0 0.0
  %4629 = vmatpush1.msra.mxu0 0.0
  %4630 = vmatprep.subr.mxu0 0.0
  %4631 = vmatpush1.msra.mxu0 0.0
  %4632 = vmatprep.subr.mxu0 0.0
  %4633 = vmatpush1.msra.mxu0 0.0
  %4634 = vmatprep.subr.mxu0 0.0
  %4635 = vmatpush1.msra.mxu0 0.0
  %4636 = vmatprep.subr.mxu0 0.0
  %4637 = vmatpush1.msra.mxu0 0.0
  %4638 = vmatprep.subr.mxu0 0.0
  %4639 = vmatpush1.msra.mxu0 0.0
  %4640 = vmatprep.subr.mxu0 0.0
  %4641 = vmatpush1.msra.mxu0 0.0
  %4642 = vmatprep.subr.mxu0 0.0
  %4643 = vmatpush1.msra.mxu0 0.0
  %4644 = vmatprep.subr.mxu0 0.0
  %4645 = vmatpush1.msra.mxu0 0.0
  %4646 = vmatprep.subr.mxu0 0.0
  %4647 = vmatpush1.msra.mxu0 0.0
  %4648 = vmatprep.subr.mxu0 0.0
  %4649 = vmatpush1.msra.mxu0 0.0
  %4650 = vmatprep.subr.mxu0 0.0
  %4651 = vmatpush1.msra.mxu0 0.0
  %4652 = vmatprep.subr.mxu0 0.0
  %4653 = vmatpush1.msra.mxu0 0.0
  %4654 = vmatprep.subr.mxu0 0.0
  %4655 = vmatpush1.msra.mxu0 0.0
  %4656 = vmatprep.subr.mxu0 0.0
  %4657 = vmatpush1.msra.mxu0 0.0
  %4658 = vmatprep.subr.mxu0 0.0
  %4659 = vmatpush1.msra.mxu0 0.0
  %4660 = vmatprep.subr.mxu0 0.0
  %4661 = vmatpush1.msra.mxu0 0.0
  %4662 = vmatprep.subr.mxu0 0.0
  %4663 = vmatpush1.msra.mxu0 0.0
  %4664 = vmatprep.subr.mxu0 0.0
  %4665 = vmatpush1.msra.mxu0 0.0
  %4666 = vmatprep.subr.mxu0 0.0
  %4667 = vmatpush1.msra.mxu0 0.0
  %4668 = vmatprep.subr.mxu0 0.0
  %4669 = vmatpush1.msra.mxu0 0.0
  %4670 = vmatprep.subr.mxu0 0.0
  %4671 = vmatpush1.msra.mxu0 0.0
  %4672 = vmatprep.subr.mxu0 0.0
  %4673 = vmatpush1.msra.mxu0 0.0
  %4674 = vmatprep.subr.mxu0 0.0
  %4675 = vmatpush1.msra.mxu0 0.0
  %4676 = vmatprep.subr.mxu0 0.0
  %4677 = vmatpush1.msra.mxu0 0.0
  %4678 = vmatprep.subr.mxu0 0.0
  %4679 = vmatpush1.msra.mxu0 0.0
  %4680 = vmatprep.subr.mxu0 0.0
  %4681 = vmatpush1.msra.mxu0 0.0
  %4682 = vmatprep.subr.mxu0 0.0
  %4683 = vmatpush1.msra.mxu0 0.0
  %4684 = vmatprep.subr.mxu0 0.0
  %4685 = vmatpush1.msra.mxu0 0.0
  %4686 = vmatprep.subr.mxu0 0.0
  %4687 = vmatpush1.msra.mxu0 0.0
  %4688 = vmatprep.mubr.f32.mxu0 0.0
  %4689 = vmatmul.mubr.f32.gmra.mrb[0].mxu0 %v4622
  %v4690 = vpop.f32.mrb[0].mxu0
  %v4691 = vadd.f32 0.0, %v4690
  %v4692 = vpop.f32.mrb[0].mxu0
  %4693 = vdwg.mxu0
  %v4694 = vadd.f32 %v4617, %v4691
  %v4695 = vmul.f32 %v4694, 4.0
  %v4696 = vadd.f32 %v4695, 0.5
  %v4697 = vfloor.f32 %v4696
  %v4698 = vmul.f32 %v4697, 0.25
  %v4699 = vld [vmem:[%s8] sm:$0xff]
  %v4700 = vld [vmem:[%s8 + $0x8] sm:$0xff]
  %v4701 = vld [vmem:[%s8 + $0x10] sm:$0xff]
  %v4702 = vld [vmem:[%s8 + $0x18] sm:$0xff]
  %v4703 = vld [vmem:[%s9] sm:$0x1]
  %v4705 = vlaneseq
  %v4706 = vshrl.u32 %v4705, 7
  %v4707 = vsub.s32 0, %v4706
  %v4708 = vrot.slane %v4703, %v4707
  %vm4710 = vcmask 261120
  %v4712 = vsel %vm4710, %v4698, 0
  %4714 = vmatprep.subr.mxu0 0.0
  %4715 = vmatpush1.msra.mxu0 %v4699
  %4716 = vmatprep.subr.mxu0 0.0
  %4717 = vmatpush1.msra.mxu0 %v4700
  %4718 = vmatprep.subr.mxu0 0.0
  %4719 = vmatpush1.msra.mxu0 %v4701
  %4720 = vmatprep.subr.mxu0 0.0
  %4721 = vmatpush1.msra.mxu0 %v4702
  %4722 = vmatprep.subr.mxu0 0.0
  %4723 = vmatpush1.msra.mxu0 0.0
  %4724 = vmatprep.subr.mxu0 0.0
  %4725 = vmatpush1.msra.mxu0 0.0
  %4726 = vmatprep.subr.mxu0 0.0
  %4727 = vmatpush1.msra.mxu0 0.0
  %4728 = vmatprep.subr.mxu0 0.0
  %4729 = vmatpush1.msra.mxu0 0.0
  %4730 = vmatprep.subr.mxu0 0.0
  %4731 = vmatpush1.msra.mxu0 0.0
  %4732 = vmatprep.subr.mxu0 0.0
  %4733 = vmatpush1.msra.mxu0 0.0
  %4734 = vmatprep.subr.mxu0 0.0
  %4735 = vmatpush1.msra.mxu0 0.0
  %4736 = vmatprep.subr.mxu0 0.0
  %4737 = vmatpush1.msra.mxu0 0.0
  %4738 = vmatprep.subr.mxu0 0.0
  %4739 = vmatpush1.msra.mxu0 0.0
  %4740 = vmatprep.subr.mxu0 0.0
  %4741 = vmatpush1.msra.mxu0 0.0
  %4742 = vmatprep.subr.mxu0 0.0
  %4743 = vmatpush1.msra.mxu0 0.0
  %4744 = vmatprep.subr.mxu0 0.0
  %4745 = vmatpush1.msra.mxu0 0.0
  %4746 = vmatprep.subr.mxu0 0.0
  %4747 = vmatpush1.msra.mxu0 0.0
  %4748 = vmatprep.subr.mxu0 0.0
  %4749 = vmatpush1.msra.mxu0 0.0
  %4750 = vmatprep.subr.mxu0 0.0
  %4751 = vmatpush1.msra.mxu0 0.0
  %4752 = vmatprep.subr.mxu0 0.0
  %4753 = vmatpush1.msra.mxu0 0.0
  %4754 = vmatprep.subr.mxu0 0.0
  %4755 = vmatpush1.msra.mxu0 0.0
  %4756 = vmatprep.subr.mxu0 0.0
  %4757 = vmatpush1.msra.mxu0 0.0
  %4758 = vmatprep.subr.mxu0 0.0
  %4759 = vmatpush1.msra.mxu0 0.0
  %4760 = vmatprep.subr.mxu0 0.0
  %4761 = vmatpush1.msra.mxu0 0.0
  %4762 = vmatprep.subr.mxu0 0.0
  %4763 = vmatpush1.msra.mxu0 0.0
  %4764 = vmatprep.subr.mxu0 0.0
  %4765 = vmatpush1.msra.mxu0 0.0
  %4766 = vmatprep.subr.mxu0 0.0
  %4767 = vmatpush1.msra.mxu0 0.0
  %4768 = vmatprep.subr.mxu0 0.0
  %4769 = vmatpush1.msra.mxu0 0.0
  %4770 = vmatprep.subr.mxu0 0.0
  %4771 = vmatpush1.msra.mxu0 0.0
  %4772 = vmatprep.subr.mxu0 0.0
  %4773 = vmatpush1.msra.mxu0 0.0
  %4774 = vmatprep.subr.mxu0 0.0
  %4775 = vmatpush1.msra.mxu0 0.0
  %4776 = vmatprep.subr.mxu0 0.0
  %4777 = vmatpush1.msra.mxu0 0.0
  %4778 = vmatprep.mubr.f32.mxu0 0.0
  %4779 = vmatmul.mubr.f32.gmra.mrb[0].mxu0 %v4712
  %v4780 = vpop.f32.mrb[0].mxu0
  %v4781 = vadd.f32 %v4708, %v4780
  %v4782 = vpop.f32.mrb[0].mxu0
  %4783 = vdwg.mxu0
  %v4784 = vmax.f32 %v4781, 0.0
  %v4785 = vld [vmem:[%s10] sm:$0xff]
  %v4786 = vld [vmem:[%s10 + $0x8] sm:$0xff]
  %v4787 = vld [vmem:[%s10 + $0x10] sm:$0xff]
  %v4788 = vld [vmem:[%s10 + $0x18] sm:$0xff]
  %v4789 = vld [vmem:[%s11] sm:$0x1]
  %v4791 = vlaneseq
  %v4792 = vshrl.u32 %v4791, 7
  %v4793 = vsub.s32 0, %v4792
  %v4794 = vrot.slane %v4789, %v4793
  %v4797 = vsel %vm4710, %v4784, 0
  %4799 = vmatprep.subr.mxu0 0.0
  %4800 = vmatpush1.msra.mxu0 %v4785
  %4801 = vmatprep.subr.mxu0 0.0
  %4802 = vmatpush1.msra.mxu0 %v4786
  %4803 = vmatprep.subr.mxu0 0.0
  %4804 = vmatpush1.msra.mxu0 %v4787
  %4805 = vmatprep.subr.mxu0 0.0
  %4806 = vmatpush1.msra.mxu0 %v4788
  %4807 = vmatprep.subr.mxu0 0.0
  %4808 = vmatpush1.msra.mxu0 0.0
  %4809 = vmatprep.subr.mxu0 0.0
  %4810 = vmatpush1.msra.mxu0 0.0
  %4811 = vmatprep.subr.mxu0 0.0
  %4812 = vmatpush1.msra.mxu0 0.0
  %4813 = vmatprep.subr.mxu0 0.0
  %4814 = vmatpush1.msra.mxu0 0.0
  %4815 = vmatprep.subr.mxu0 0.0
  %4816 = vmatpush1.msra.mxu0 0.0
  %4817 = vmatprep.subr.mxu0 0.0
  %4818 = vmatpush1.msra.mxu0 0.0
  %4819 = vmatprep.subr.mxu0 0.0
  %4820 = vmatpush1.msra.mxu0 0.0
  %4821 = vmatprep.subr.mxu0 0.0
  %4822 = vmatpush1.msra.mxu0 0.0
  %4823 = vmatprep.subr.mxu0 0.0
  %4824 = vmatpush1.msra.mxu0 0.0
  %4825 = vmatprep.subr.mxu0 0.0
  %4826 = vmatpush1.msra.mxu0 0.0
  %4827 = vmatprep.subr.mxu0 0.0
  %4828 = vmatpush1.msra.mxu0 0.0
  %4829 = vmatprep.subr.mxu0 0.0
  %4830 = vmatpush1.msra.mxu0 0.0
  %4831 = vmatprep.subr.mxu0 0.0
  %4832 = vmatpush1.msra.mxu0 0.0
  %4833 = vmatprep.subr.mxu0 0.0
  %4834 = vmatpush1.msra.mxu0 0.0
  %4835 = vmatprep.subr.mxu0 0.0
  %4836 = vmatpush1.msra.mxu0 0.0
  %4837 = vmatprep.subr.mxu0 0.0
  %4838 = vmatpush1.msra.mxu0 0.0
  %4839 = vmatprep.subr.mxu0 0.0
  %4840 = vmatpush1.msra.mxu0 0.0
  %4841 = vmatprep.subr.mxu0 0.0
  %4842 = vmatpush1.msra.mxu0 0.0
  %4843 = vmatprep.subr.mxu0 0.0
  %4844 = vmatpush1.msra.mxu0 0.0
  %4845 = vmatprep.subr.mxu0 0.0
  %4846 = vmatpush1.msra.mxu0 0.0
  %4847 = vmatprep.subr.mxu0 0.0
  %4848 = vmatpush1.msra.mxu0 0.0
  %4849 = vmatprep.subr.mxu0 0.0
  %4850 = vmatpush1.msra.mxu0 0.0
  %4851 = vmatprep.subr.mxu0 0.0
  %4852 = vmatpush1.msra.mxu0 0.0
  %4853 = vmatprep.subr.mxu0 0.0
  %4854 = vmatpush1.msra.mxu0 0.0
  %4855 = vmatprep.subr.mxu0 0.0
  %4856 = vmatpush1.msra.mxu0 0.0
  %4857 = vmatprep.subr.mxu0 0.0
  %4858 = vmatpush1.msra.mxu0 0.0
  %4859 = vmatprep.subr.mxu0 0.0
  %4860 = vmatpush1.msra.mxu0 0.0
  %4861 = vmatprep.subr.mxu0 0.0
  %4862 = vmatpush1.msra.mxu0 0.0
  %4863 = vmatprep.mubr.f32.mxu0 0.0
  %4864 = vmatmul.mubr.f32.gmra.mrb[0].mxu0 %v4797
  %v4865 = vpop.f32.mrb[0].mxu0
  %v4866 = vadd.f32 %v4794, %v4865
  %v4867 = vpop.f32.mrb[0].mxu0
  %4868 = vdwg.mxu0
  %v4869 = vmax.f32 %v4866, 0.0
  %v4870 = vld [vmem:[%s12] sm:$0xff]
  %v4871 = vld [vmem:[%s12 + $0x8] sm:$0xff]
  %v4872 = vld [vmem:[%s12 + $0x10] sm:$0xff]
  %v4873 = vld [vmem:[%s12 + $0x18] sm:$0xff]
  %v4874 = vld [vmem:[%s13] sm:$0x1]
  %v4876 = vlaneseq
  %v4877 = vshrl.u32 %v4876, 7
  %v4878 = vsub.s32 0, %v4877
  %v4879 = vrot.slane %v4874, %v4878
  %v4882 = vsel %vm4710, %v4869, 0
  %4884 = vmatprep.subr.mxu0 0.0
  %4885 = vmatpush1.msra.mxu0 %v4870
  %4886 = vmatprep.subr.mxu0 0.0
  %4887 = vmatpush1.msra.mxu0 %v4871
  %4888 = vmatprep.subr.mxu0 0.0
  %4889 = vmatpush1.msra.mxu0 %v4872
  %4890 = vmatprep.subr.mxu0 0.0
  %4891 = vmatpush1.msra.mxu0 %v4873
  %4892 = vmatprep.subr.mxu0 0.0
  %4893 = vmatpush1.msra.mxu0 0.0
  %4894 = vmatprep.subr.mxu0 0.0
  %4895 = vmatpush1.msra.mxu0 0.0
  %4896 = vmatprep.subr.mxu0 0.0
  %4897 = vmatpush1.msra.mxu0 0.0
  %4898 = vmatprep.subr.mxu0 0.0
  %4899 = vmatpush1.msra.mxu0 0.0
  %4900 = vmatprep.subr.mxu0 0.0
  %4901 = vmatpush1.msra.mxu0 0.0
  %4902 = vmatprep.subr.mxu0 0.0
  %4903 = vmatpush1.msra.mxu0 0.0
  %4904 = vmatprep.subr.mxu0 0.0
  %4905 = vmatpush1.msra.mxu0 0.0
  %4906 = vmatprep.subr.mxu0 0.0
  %4907 = vmatpush1.msra.mxu0 0.0
  %4908 = vmatprep.subr.mxu0 0.0
  %4909 = vmatpush1.msra.mxu0 0.0
  %4910 = vmatprep.subr.mxu0 0.0
  %4911 = vmatpush1.msra.mxu0 0.0
  %4912 = vmatprep.subr.mxu0 0.0
  %4913 = vmatpush1.msra.mxu0 0.0
  %4914 = vmatprep.subr.mxu0 0.0
  %4915 = vmatpush1.msra.mxu0 0.0
  %4916 = vmatprep.subr.mxu0 0.0
  %4917 = vmatpush1.msra.mxu0 0.0
  %4918 = vmatprep.subr.mxu0 0.0
  %4919 = vmatpush1.msra.mxu0 0.0
  %4920 = vmatprep.subr.mxu0 0.0
  %4921 = vmatpush1.msra.mxu0 0.0
  %4922 = vmatprep.subr.mxu0 0.0
  %4923 = vmatpush1.msra.mxu0 0.0
  %4924 = vmatprep.subr.mxu0 0.0
  %4925 = vmatpush1.msra.mxu0 0.0
  %4926 = vmatprep.subr.mxu0 0.0
  %4927 = vmatpush1.msra.mxu0 0.0
  %4928 = vmatprep.subr.mxu0 0.0
  %4929 = vmatpush1.msra.mxu0 0.0
  %4930 = vmatprep.subr.mxu0 0.0
  %4931 = vmatpush1.msra.mxu0 0.0
  %4932 = vmatprep.subr.mxu0 0.0
  %4933 = vmatpush1.msra.mxu0 0.0
  %4934 = vmatprep.subr.mxu0 0.0
  %4935 = vmatpush1.msra.mxu0 0.0
  %4936 = vmatprep.subr.mxu0 0.0
  %4937 = vmatpush1.msra.mxu0 0.0
  %4938 = vmatprep.subr.mxu0 0.0
  %4939 = vmatpush1.msra.mxu0 0.0
  %4940 = vmatprep.subr.mxu0 0.0
  %4941 = vmatpush1.msra.mxu0 0.0
  %4942 = vmatprep.subr.mxu0 0.0
  %4943 = vmatpush1.msra.mxu0 0.0
  %4944 = vmatprep.subr.mxu0 0.0
  %4945 = vmatpush1.msra.mxu0 0.0
  %4946 = vmatprep.subr.mxu0 0.0
  %4947 = vmatpush1.msra.mxu0 0.0
  %4948 = vmatprep.mubr.f32.mxu0 0.0
  %4949 = vmatmul.mubr.f32.gmra.mrb[0].mxu0 %v4882
  %v4950 = vpop.f32.mrb[0].mxu0
  %v4951 = vadd.f32 %v4879, %v4950
  %v4952 = vpop.f32.mrb[0].mxu0
  %4953 = vdwg.mxu0
  %v4954 = vtanh.pop %v4951
  %v4955 = vadd.f32 %v4954, 1.0
  %v4956 = vmul.f32 %v4955, 6.0
  %v4957 = vadd.f32 %v4956, -10.0
  %v4958 = vmul.f32 %v4957, 1.442695
  %v4959 = vpow.pop %v4958
  %v4960 = vld [vmem:[%s14] sm:$0x3]
  %4962 = vrot.lane.b32.xlu0 %v4959, 124
  %v4963 = vpop.permute.xlu0 %4962
  %v4965 = vmul.f32 %v4960, %v4963
  %v4966 = vadd.f32 %v4951, %v4965
  %v4967 = vmul.f32 %v4960, -0.5
  %v4968 = vmul.f32 %v4967, %v4960
  %4970 = vrot.lane.b32.xlu0 %v4957, 124
  %v4971 = vpop.permute.xlu0 %4970
  %v4973 = vsub.f32 %v4968, %v4971
  %vm4974 = vcmask 25600
  %v4975 = vsel %vm4974, %v4973, 0.0
  %4976 = vadd.xlane.f32.xlu0 %v4975
  %v4977 = vpop.xlane.xlu0 %4976
  %v4978 = vsub.f32 %v4977, 3.675754
  %v4979 = vtanh.pop %v4966
  %v4980 = vmul.f32 %v4979, %v4979
  %v4981 = vsub.f32 1.0, %v4980
  %v4982 = vmax.f32 %v4981, 0.0
  %v4983 = vadd.f32 %v4982, 1e-06
  %v4984 = vlog2.pop %v4983
  %v4985 = vmul.f32 %v4984, 0.6931472
  %v4986 = vsel %vm4974, %v4985, 0.0
  %4987 = vadd.xlane.f32.xlu0 %v4986
  %v4988 = vpop.xlane.xlu0 %4987
  %v4989 = vsub.f32 %v4978, %v4988
  %4990 = vst [vmem:[%s15] sm:$0x3] 0.0
  %4991 = vst.msk [vmem:[%s15] sm:$0x3] %vm4974, %v4954
  %4993 = vrot.lane.b32.xlu0 %v4979, 4
  %v4994 = vpop.permute.xlu0 %4993
  %vm4996 = vcmask 58400
  %4997 = vst.msk [vmem:[%s15] sm:$0x3] %vm4996, %v4994
  %4998 = vrot.lane.b32.xlu0 %v4957, 4
  %v4999 = vpop.permute.xlu0 %4998
  %vm5001 = vcmask 91200
  %5002 = vst.msk [vmem:[%s15] sm:$0x3] %vm5001, %v4999
  %vm5003 = vcmask 99424
  %5004 = vst.msk [vmem:[%s15] sm:$0x3] %vm5003, %v4989
  // Predicated region
  $region62: #{actor_forward.1} parent=0 // pred_check
    _
  $region63: #{actor_forward.1} parent=0 // pred_check_branch
    %5006 = sbr.rel (0) target = $region65
  $region64: #{actor_forward.1} parent=0 // pred_region
    _
  $region65: #{actor_forward.1} parent=0 // pred_fallthru
    _
  // Predicated region
  $region66: #{actor_forward.1} parent=0 // pred_check
    _
  $region67: #{actor_forward.1} parent=0 // pred_check_branch
    %5008 = sbr.rel (0) target = $region69
  $region68: #{actor_forward.1} parent=0 // pred_region
    _
  $region69: #{actor_forward.1} parent=0 // pred_fallthru
    _

</llo_original>
